<compile_context>
chip_gen: v7x
topology: tpu7x:2x2x1
jax: 0.10.0
libtpu: 0.0.40
codegen_flags: <defaults>
</compile_context>

<pallas_src>
import jax
import jax.numpy as jnp
from jax.experimental import pallas as pl
from jax.experimental.pallas import tpu as pltpu

EPS = 1e-5
LANE = 128


# ----------------------------- in-kernel helpers -----------------------------

def _zero_border(pad, nb, hp, wp, c):
    """Zero ONLY the 1-px border strips of the padded scratch (done once per core)."""
    zrow = jnp.zeros((nb, 1, wp + 2, c), jnp.float32)
    zcol = jnp.zeros((nb, hp + 2, 1, c), jnp.float32)
    pad[:, 0:1, :, :] = zrow
    pad[:, hp + 1:hp + 2, :, :] = zrow
    pad[:, :, 0:1, :] = zcol
    pad[:, :, wp + 1:wp + 2, :] = zcol


def _conv3x3_bias(pad, w_ref, b_ref, nb, hp, wp, cin):
    """im2col (K = 9*cin, lane-aligned since cin % 128 == 0) + ONE MXU matmul + bias.

    pad   : VMEM ref (nb, hp+2, wp+2, cin), zero border, interior already written.
    w_ref : VMEM ref (9*cin, cout), row index = (dy*3 + dx)*cin + ci.
    b_ref : VMEM ref (1, cout).
    Returns (nb*hp*wp, cout) f32.
    """
    # TODO(synk): at production channel counts cast `a` and the weights to bf16 (keep
    # preferred_element_type=f32) and split into 3 accumulating matmuls over dy to cap the
    # live im2col slab for v7x's 64 MiB VMEM; at the padded-toy sizes here it is not needed.
    cols = jnp.concatenate(
        [pad[:, dy:dy + hp, dx:dx + wp, :] for dy in range(3) for dx in range(3)],
        axis=-1)                                          # (nb, hp, wp, 9*cin)
    a = cols.reshape(nb * hp * wp, 9 * cin)               # free major-dim merge
    return jnp.dot(a, w_ref[...], preferred_element_type=jnp.float32) + b_ref[...]


def _emit_partial_stats(y, st_ref, cout):
    """Single pass over y: per-channel sum and sum-of-squares for this block."""
    s = jnp.sum(y, axis=0, keepdims=True)                 # (1, cout)
    ss = jnp.sum(y * y, axis=0, keepdims=True)            # (1, cout)
    st_ref[...] = jnp.concatenate([s, ss], axis=0).reshape(1, 2, cout)


# --------------------------------- kernels -----------------------------------

def _pool_conv1_kernel(x_ref, w_ref, b_ref, y_ref, st_ref, pad):
    """MaxPool2d(2) + Conv1(3x3, pad=1) + bias for nb images; emits partial BN1 stats."""
    nb, hp, _, wp, c2 = x_ref.shape                       # block: (nb, Hp, 2, Wp, 2*Cp_in)
    c = c2 // 2
    cout = w_ref.shape[1]

    @pl.when(pl.program_id(0) == 0)                       # scratch persists across grid steps
    def _():
        _zero_border(pad, nb, hp, wp, c)

    xv = x_ref[...]
    rows = jnp.maximum(xv[:, :, 0, :, :], xv[:, :, 1, :, :])   # max over H-parity
    pooled = jnp.maximum(rows[..., :c], rows[..., c:])         # max over W-parity (128-aligned)
    pad[:, 1:hp + 1, 1:wp + 1, :] = pooled                     # straight into pad interior
    y = _conv3x3_bias(pad, w_ref, b_ref, nb, hp, wp, c)        # (nb*hp*wp, cout)
    _emit_partial_stats(y, st_ref, cout)
    y_ref[...] = y.reshape(nb, hp, wp, cout)                   # lane-dense store (cout%128==0)


def _make_bn_relu_conv2_kernel(inv_npix):
    """BN1(affine, stats reduced in-kernel) + ReLU + Conv2(3x3, pad=1) + bias; partial BN2 stats."""
    def kernel(y1_ref, st1_ref, g_ref, be_ref, w_ref, b_ref, y_ref, st_ref, pad):
        nb, hp, wp, c = y1_ref.shape
        cout = w_ref.shape[1]

        @pl.when(pl.program_id(0) == 0)
        def _():
            _zero_border(pad, nb, hp, wp, c)

        # Tiny per-channel reduction of the per-block partial stats -> BN1 scale/shift.
        st = st1_ref[...]                                  # (n_blocks, 2, c)
        s = jnp.sum(st[:, 0:1, :], axis=0)                 # (1, c)
        ss = jnp.sum(st[:, 1:2, :], axis=0)                # (1, c)
        mean = s * inv_npix
        var = ss * inv_npix - mean * mean                  # biased (training-mode) variance
        scale = g_ref[...] * jax.lax.rsqrt(var + EPS)
        shift = be_ref[...] - mean * scale

        h = jnp.maximum(y1_ref[...] * scale.reshape(1, 1, 1, c)
                        + shift.reshape(1, 1, 1, c), 0.0)
        pad[:, 1:hp + 1, 1:wp + 1, :] = h
        y = _conv3x3_bias(pad, w_ref, b_ref, nb, hp, wp, c)
        _emit_partial_stats(y, st_ref, cout)
        y_ref[...] = y.reshape(nb, hp, wp, cout)
    return kernel


# --------------------------------- wrapper ------------------------------------

def _round_up_lane(c):
    return ((c + LANE - 1) // LANE) * LANE


def _pad_im2col_w(w, cin, cout, cpi, cpo):
    """(9*cin, cout) -> (9*cpi, cpo): zero-pad each tap's channel slot to the lane width."""
    w9 = w.reshape(9, cin, cout)
    w9 = jnp.pad(w9, ((0, 0), (0, cpi - cin), (0, cpo - cout)))
    return w9.reshape(9 * cpi, cpo)


def _pad_vec(v, cp):
    return jnp.pad(v, ((0, 0), (0, cp - v.shape[1])))


def _pick_images_per_block(n, hp, wp, cp):
    """Largest divisor of N that keeps the per-step VMEM working set small while giving the
    MXU >= ~256 rows per matmul when possible."""
    budget = 20 * 1024 * 1024          # stay well inside the 32 MiB scoped-VMEM limit
    nb = 1
    for d in range(1, n + 1):
        if n % d:
            continue
        m = d * hp * wp
        # f32 bytes: im2col slab + pad scratch + (2x in + 2x out) pipeline buffers
        need = 4 * (9 * m * cp + d * (hp + 2) * (wp + 2) * cp + 4 * m * cp)
        if need > budget:
            break
        nb = d
        if m >= 256:
            break
    return nb


def down_forward(x_nchw, params):
    """Down.forward.  x_nchw: (N, Cin, H, W) f32 -> (N, Cout, H//2, W//2) f32."""
    N, Cin, H, W = x_nchw.shape
    Hp, Wp = H // 2, W // 2
    w1, b1, g1, be1, w2, b2, g2, be2 = params             # w1: (9*Cin, Cout), w2: (9*Cout, Cout)
    Cout = w1.shape[1]
    Cpi, Cpo = _round_up_lane(Cin), _round_up_lane(Cout)  # lane-friendly padded channel counts
    n_pix = float(N * Hp * Wp)

    nb = _pick_images_per_block(N, Hp, Wp, max(Cpi, Cpo))
    n_blk = N // nb

    # ---- layout / padding glue (plain XLA, fuses; no kernel work) ----
    # NCHW -> NHWC, crop trailing odd row/col exactly like MaxPool2d(2) floors, pad channels.
    x = jnp.transpose(x_nchw, (0, 2, 3, 1))[:, :2 * Hp, :2 * Wp, :]
    x = jnp.pad(x, ((0, 0), (0, 0), (0, 0), (0, Cpi - Cin)))
    # Free metadata reshape exposing the 2x2 pooling structure: (N, Hp, 2, Wp, 2*Cp_in).
    x5 = x.reshape(N, Hp, 2, Wp, 2 * Cpi)
    w1p = _pad_im2col_w(w1, Cin, Cout, Cpi, Cpo)
    w2p = _pad_im2col_w(w2, Cout, Cout, Cpo, Cpo)
    b1p, g1p, be1p = _pad_vec(b1, Cpo), _pad_vec(g1, Cpo), _pad_vec(be1, Cpo)
    b2p, g2p, be2p = _pad_vec(b2, Cpo), _pad_vec(g2, Cpo), _pad_vec(be2, Cpo)

    # "arbitrary": one TensorCore walks the whole grid, which makes the one-time pad-border
    # init (pl.when(program_id==0)) valid.  At the tested sizes the grid has a single step.
    # TODO(synk): for v7x megacore, add a parallel (N, row-block) grid with a per-core border
    #             init (or re-zero per step) plus 1-row-halo spatial tiling for UNet-scale H,W.
    cparams = pltpu.CompilerParams(
        dimension_semantics=("arbitrary",),
        vmem_limit_bytes=32 * 1024 * 1024)                # safe on v7x's 64 MiB / TC

    # ---- stage 1: maxpool + conv1 + bias, per-block partial BN1 stats ----
    y1, st1 = pl.pallas_call(
        _pool_conv1_kernel,
        grid=(n_blk,),
        in_specs=[
            pl.BlockSpec((nb, Hp, 2, Wp, 2 * Cpi), lambda i: (i, 0, 0, 0, 0)),
            pl.BlockSpec((9 * Cpi, Cpo), lambda i: (0, 0)),
            pl.BlockSpec((1, Cpo), lambda i: (0, 0)),
        ],
        out_specs=(
            pl.BlockSpec((nb, Hp, Wp, Cpo), lambda i: (i, 0, 0, 0)),
            pl.BlockSpec((1, 2, Cpo), lambda i: (i, 0, 0)),
        ),
        out_shape=(
            jax.ShapeDtypeStruct((N, Hp, Wp, Cpo), jnp.float32),
            jax.ShapeDtypeStruct((n_blk, 2, Cpo), jnp.float32),
        ),
        scratch_shapes=[pltpu.VMEM((nb, Hp + 2, Wp + 2, Cpi), jnp.float32)],
        compiler_params=cparams,
    )(x5, w1p, b1p)

    # ---- stage 2: BN1 (stats reduced in-kernel) + ReLU + conv2 + bias, partial BN2 stats ----
    y2, st2 = pl.pallas_call(
        _make_bn_relu_conv2_kernel(1.0 / n_pix),
        grid=(n_blk,),
        in_specs=[
            pl.BlockSpec((nb, Hp, Wp, Cpo), lambda i: (i, 0, 0, 0)),
            pl.BlockSpec((n_blk, 2, Cpo), lambda i: (0, 0, 0)),
            pl.BlockSpec((1, Cpo), lambda i: (0, 0)),
            pl.BlockSpec((1, Cpo), lambda i: (0, 0)),
            pl.BlockSpec((9 * Cpo, Cpo), lambda i: (0, 0)),
            pl.BlockSpec((1, Cpo), lambda i: (0, 0)),
        ],
        out_specs=(
            pl.BlockSpec((nb, Hp, Wp, Cpo), lambda i: (i, 0, 0, 0)),
            pl.BlockSpec((1, 2, Cpo), lambda i: (i, 0, 0)),
        ),
        out_shape=(
            jax.ShapeDtypeStruct((N, Hp, Wp, Cpo), jnp.float32),
            jax.ShapeDtypeStruct((n_blk, 2, Cpo), jnp.float32),
        ),
        scratch_shapes=[pltpu.VMEM((nb, Hp + 2, Wp + 2, Cpo), jnp.float32)],
        compiler_params=cparams,
    )(y1, st1, g1p, be1p, w2p, b2p)

    # ---- final BN2 + ReLU in plain jnp: fuses with channel slice + NHWC->NCHW transpose ----
    s = jnp.sum(st2[:, 0, :], axis=0)
    ss = jnp.sum(st2[:, 1, :], axis=0)
    mean = s / n_pix
    var = ss / n_pix - mean * mean                        # biased (training-mode) variance
    scale = g2p[0] * jax.lax.rsqrt(var + EPS)
    shift = be2p[0] - mean * scale
    out = jnp.maximum(y2 * scale.reshape(1, 1, 1, Cpo) + shift.reshape(1, 1, 1, Cpo), 0.0)
    out = out[..., :Cout]                                 # drop padded channels (all zeros)
    return jnp.transpose(out, (0, 3, 1, 2))               # back to NCHW


# ------------------------------ params & reference ----------------------------

def init_params(key, cin, cout):
    """Deterministic synthetic parameters (shapes match nn.Conv2d / nn.BatchNorm2d)."""
    ks = jax.random.split(key, 8)
    w1 = 0.1 * jax.random.normal(ks[0], (3, 3, cin, cout), jnp.float32)
    b1 = 0.1 * jax.random.normal(ks[1], (1, cout), jnp.float32)
    g1 = 1.0 + 0.1 * jax.random.normal(ks[2], (1, cout), jnp.float32)
    be1 = 0.1 * jax.random.normal(ks[3], (1, cout), jnp.float32)
    w2 = 0.1 * jax.random.normal(ks[4], (3, 3, cout, cout), jnp.float32)
    b2 = 0.1 * jax.random.normal(ks[5], (1, cout), jnp.float32)
    g2 = 1.0 + 0.1 * jax.random.normal(ks[6], (1, cout), jnp.float32)
    be2 = 0.1 * jax.random.normal(ks[7], (1, cout), jnp.float32)
    # im2col weight layout: row index = (dy*3 + dx)*cin + ci
    return (w1.reshape(9 * cin, cout), b1, g1, be1,
            w2.reshape(9 * cout, cout), b2, g2, be2)


def down_reference(x_nchw, params):
    """Pure-JAX reference of Down.forward (NCHW), for correctness checking."""
    w1, b1, g1, be1, w2, b2, g2, be2 = params

    p = jax.lax.reduce_window(x_nchw, -jnp.inf, jax.lax.max,
                              (1, 1, 2, 2), (1, 1, 2, 2), 'VALID')

    def conv_bn_relu(h, wim, b, g, be):
        cin, cout = wim.shape[0] // 9, wim.shape[1]
        w_oihw = jnp.transpose(wim.reshape(3, 3, cin, cout), (3, 2, 0, 1))
        y = jax.lax.conv_general_dilated(
            h, w_oihw, (1, 1), ((1, 1), (1, 1)),
            dimension_numbers=('NCHW', 'OIHW', 'NCHW'))
        y = y + b.reshape(1, cout, 1, 1)
        mean = jnp.mean(y, axis=(0, 2, 3), keepdims=True)
        var = jnp.mean((y - mean) ** 2, axis=(0, 2, 3), keepdims=True)
        y = (y - mean) * jax.lax.rsqrt(var + EPS) * g.reshape(1, cout, 1, 1) \
            + be.reshape(1, cout, 1, 1)
        return jnp.maximum(y, 0.0)

    h = conv_bn_relu(p, w1, b1, g1, be1)
    return conv_bn_relu(h, w2, b2, g2, be2)


if __name__ == "__main__":
    key = jax.random.PRNGKey(0)
    k_x, k_p = jax.random.split(key)

    N, C_IN, C_OUT, H, W = 2, 4, 8, 16, 16
    x = jax.random.normal(k_x, (N, C_IN, H, W), jnp.float32)
    params = init_params(k_p, C_IN, C_OUT)

    down = jax.jit(down_forward)
    out = jax.block_until_ready(down(x, params))

    ref = jax.block_until_ready(down_reference(x, params))
    assert out.shape == (N, C_OUT, H // 2, W // 2), out.shape
    assert jnp.allclose(out, ref, rtol=2e-3, atol=2e-3), \
        float(jnp.max(jnp.abs(out - ref)))

    print("KERNEL_OK")
</pallas_src>

<mosaic_0001>
module attributes {stable_mosaic.version = 11 : i64} {
  func.func @_pool_conv1_kernel(%arg0: i32, %arg1: memref<2x8x2x8x256xf32, #tpu.memory_space<vmem>>, %arg2: memref<1152x128xf32, #tpu.memory_space<vmem>>, %arg3: memref<1x128xf32, #tpu.memory_space<vmem>>, %arg4: memref<2x8x8x128xf32, #tpu.memory_space<vmem>>, %arg5: memref<1x2x128xf32, #tpu.memory_space<vmem>>, %arg6: memref<2x10x10x128xf32, #tpu.memory_space<vmem>>) attributes {dimension_semantics = [#tpu.dimension_semantics<arbitrary>], iteration_bounds = array<i64: 1>, scalar_prefetch = 0 : i64, scratch_operands = 1 : i64, tpu.core_type = #tpu.core_type<tc>, window_params = [{transform_indices = @transform_0, window_bounds = array<i64: 2, 8, 2, 8, 256>}, {pipeline_mode = #tpu.pipeline_mode<synchronous>, transform_indices = @transform_1, window_bounds = array<i64: 1152, 128>}, {pipeline_mode = #tpu.pipeline_mode<synchronous>, transform_indices = @transform_2, window_bounds = array<i64: 1, 128>}, {transform_indices = @transform_3, window_bounds = array<i64: 2, 8, 8, 128>}, {transform_indices = @transform_4, window_bounds = array<i64: 1, 2, 128>}]} {
    %c0_i32 = arith.constant 0 : i32
    %0 = arith.cmpi eq, %arg0, %c0_i32 : i32
    %1 = arith.extui %0 : i1 to i32
    %c0_i32_0 = arith.constant 0 : i32
    %2 = arith.cmpi ne, %1, %c0_i32_0 : i32
    scf.if %2 {
      %cst_56 = arith.constant 0.000000e+00 : f32
      %39 = vector.broadcast %cst_56 : f32 to vector<2x1x10x128xf32>
      %cst_57 = arith.constant 0.000000e+00 : f32
      %40 = vector.broadcast %cst_57 : f32 to vector<2x10x1x128xf32>
      %c0_58 = arith.constant 0 : index
      %c0_59 = arith.constant 0 : index
      %c0_60 = arith.constant 0 : index
      %c0_61 = arith.constant 0 : index
      %41 = vector.load %arg6[%c0_58, %c0_59, %c0_60, %c0_61] : memref<2x10x10x128xf32, #tpu.memory_space<vmem>>, vector<2x1x10x128xf32>
      tpu.vector_store %arg6[%c0_58, %c0_59, %c0_60, %c0_61], %39 {strides = array<i32>} : memref<2x10x10x128xf32, #tpu.memory_space<vmem>>, vector<2x1x10x128xf32>,
      %c0_62 = arith.constant 0 : index
      %c9 = arith.constant 9 : index
      %c0_63 = arith.constant 0 : index
      %c0_64 = arith.constant 0 : index
      %42 = vector.load %arg6[%c0_62, %c9, %c0_63, %c0_64] : memref<2x10x10x128xf32, #tpu.memory_space<vmem>>, vector<2x1x10x128xf32>
      tpu.vector_store %arg6[%c0_62, %c9, %c0_63, %c0_64], %39 {strides = array<i32>} : memref<2x10x10x128xf32, #tpu.memory_space<vmem>>, vector<2x1x10x128xf32>,
      %c0_65 = arith.constant 0 : index
      %c0_66 = arith.constant 0 : index
      %c0_67 = arith.constant 0 : index
      %c0_68 = arith.constant 0 : index
      %43 = vector.load %arg6[%c0_65, %c0_66, %c0_67, %c0_68] : memref<2x10x10x128xf32, #tpu.memory_space<vmem>>, vector<2x10x1x128xf32>
      tpu.vector_store %arg6[%c0_65, %c0_66, %c0_67, %c0_68], %40 {strides = array<i32>} : memref<2x10x10x128xf32, #tpu.memory_space<vmem>>, vector<2x10x1x128xf32>,
      %c0_69 = arith.constant 0 : index
      %c0_70 = arith.constant 0 : index
      %c9_71 = arith.constant 9 : index
      %c0_72 = arith.constant 0 : index
      %44 = vector.load %arg6[%c0_69, %c0_70, %c9_71, %c0_72] : memref<2x10x10x128xf32, #tpu.memory_space<vmem>>, vector<2x10x1x128xf32>
      tpu.vector_store %arg6[%c0_69, %c0_70, %c9_71, %c0_72], %40 {strides = array<i32>} : memref<2x10x10x128xf32, #tpu.memory_space<vmem>>, vector<2x10x1x128xf32>,
    } else {
    }
    %c0 = arith.constant 0 : index
    %c0_1 = arith.constant 0 : index
    %c0_2 = arith.constant 0 : index
    %c0_3 = arith.constant 0 : index
    %c0_4 = arith.constant 0 : index
    %3 = vector.load %arg1[%c0, %c0_1, %c0_2, %c0_3, %c0_4] : memref<2x8x2x8x256xf32, #tpu.memory_space<vmem>>, vector<2x8x2x8x256xf32>
    %4 = vector.extract_strided_slice %3 {offsets = [0, 0, 0, 0, 0], sizes = [2, 8, 1, 8, 256], strides = [1, 1, 1, 1, 1]} : vector<2x8x2x8x256xf32> to vector<2x8x1x8x256xf32>
    %5 = vector.shape_cast %4 : vector<2x8x1x8x256xf32> to vector<2x8x8x256xf32>
    %6 = vector.extract_strided_slice %3 {offsets = [0, 0, 1, 0, 0], sizes = [2, 8, 1, 8, 256], strides = [1, 1, 1, 1, 1]} : vector<2x8x2x8x256xf32> to vector<2x8x1x8x256xf32>
    %7 = vector.shape_cast %6 : vector<2x8x1x8x256xf32> to vector<2x8x8x256xf32>
    %8 = arith.maximumf %5, %7 : vector<2x8x8x256xf32>
    %9 = vector.extract_strided_slice %8 {offsets = [0, 0, 0, 0], sizes = [2, 8, 8, 128], strides = [1, 1, 1, 1]} : vector<2x8x8x256xf32> to vector<2x8x8x128xf32>
    %10 = vector.extract_strided_slice %8 {offsets = [0, 0, 0, 128], sizes = [2, 8, 8, 128], strides = [1, 1, 1, 1]} : vector<2x8x8x256xf32> to vector<2x8x8x128xf32>
    %11 = arith.maximumf %9, %10 : vector<2x8x8x128xf32>
    %c0_5 = arith.constant 0 : index
    %c1 = arith.constant 1 : index
    %c1_6 = arith.constant 1 : index
    %c0_7 = arith.constant 0 : index
    %12 = vector.load %arg6[%c0_5, %c1, %c1_6, %c0_7] : memref<2x10x10x128xf32, #tpu.memory_space<vmem>>, vector<2x8x8x128xf32>
    tpu.vector_store %arg6[%c0_5, %c1, %c1_6, %c0_7], %11 {strides = array<i32>} : memref<2x10x10x128xf32, #tpu.memory_space<vmem>>, vector<2x8x8x128xf32>,
    %c0_8 = arith.constant 0 : index
    %c0_9 = arith.constant 0 : index
    %c0_10 = arith.constant 0 : index
    %c0_11 = arith.constant 0 : index
    %13 = vector.load %arg6[%c0_8, %c0_9, %c0_10, %c0_11] : memref<2x10x10x128xf32, #tpu.memory_space<vmem>>, vector<2x8x8x128xf32>
    %c0_12 = arith.constant 0 : index
    %c0_13 = arith.constant 0 : index
    %c1_14 = arith.constant 1 : index
    %c0_15 = arith.constant 0 : index
    %14 = vector.load %arg6[%c0_12, %c0_13, %c1_14, %c0_15] : memref<2x10x10x128xf32, #tpu.memory_space<vmem>>, vector<2x8x8x128xf32>
    %c0_16 = arith.constant 0 : index
    %c0_17 = arith.constant 0 : index
    %c2 = arith.constant 2 : index
    %c0_18 = arith.constant 0 : index
    %15 = vector.load %arg6[%c0_16, %c0_17, %c2, %c0_18] : memref<2x10x10x128xf32, #tpu.memory_space<vmem>>, vector<2x8x8x128xf32>
    %c0_19 = arith.constant 0 : index
    %c1_20 = arith.constant 1 : index
    %c0_21 = arith.constant 0 : index
    %c0_22 = arith.constant 0 : index
    %16 = vector.load %arg6[%c0_19, %c1_20, %c0_21, %c0_22] : memref<2x10x10x128xf32, #tpu.memory_space<vmem>>, vector<2x8x8x128xf32>
    %c0_23 = arith.constant 0 : index
    %c1_24 = arith.constant 1 : index
    %c1_25 = arith.constant 1 : index
    %c0_26 = arith.constant 0 : index
    %17 = vector.load %arg6[%c0_23, %c1_24, %c1_25, %c0_26] : memref<2x10x10x128xf32, #tpu.memory_space<vmem>>, vector<2x8x8x128xf32>
    %c0_27 = arith.constant 0 : index
    %c1_28 = arith.constant 1 : index
    %c2_29 = arith.constant 2 : index
    %c0_30 = arith.constant 0 : index
    %18 = vector.load %arg6[%c0_27, %c1_28, %c2_29, %c0_30] : memref<2x10x10x128xf32, #tpu.memory_space<vmem>>, vector<2x8x8x128xf32>
    %c0_31 = arith.constant 0 : index
    %c2_32 = arith.constant 2 : index
    %c0_33 = arith.constant 0 : index
    %c0_34 = arith.constant 0 : index
    %19 = vector.load %arg6[%c0_31, %c2_32, %c0_33, %c0_34] : memref<2x10x10x128xf32, #tpu.memory_space<vmem>>, vector<2x8x8x128xf32>
    %c0_35 = arith.constant 0 : index
    %c2_36 = arith.constant 2 : index
    %c1_37 = arith.constant 1 : index
    %c0_38 = arith.constant 0 : index
    %20 = vector.load %arg6[%c0_35, %c2_36, %c1_37, %c0_38] : memref<2x10x10x128xf32, #tpu.memory_space<vmem>>, vector<2x8x8x128xf32>
    %c0_39 = arith.constant 0 : index
    %c2_40 = arith.constant 2 : index
    %c2_41 = arith.constant 2 : index
    %c0_42 = arith.constant 0 : index
    %21 = vector.load %arg6[%c0_39, %c2_40, %c2_41, %c0_42] : memref<2x10x10x128xf32, #tpu.memory_space<vmem>>, vector<2x8x8x128xf32>
    %22 = tpu.concatenate %13, %14, %15, %16, %17, %18, %19, %20, %21 in 3 : vector<2x8x8x128xf32>, vector<2x8x8x128xf32>, vector<2x8x8x128xf32>, vector<2x8x8x128xf32>, vector<2x8x8x128xf32>, vector<2x8x8x128xf32>, vector<2x8x8x128xf32>, vector<2x8x8x128xf32>, vector<2x8x8x128xf32> -> vector<2x8x8x1152xf32>
    %23 = vector.shape_cast %22 : vector<2x8x8x1152xf32> to vector<128x1152xf32>
    %c0_43 = arith.constant 0 : index
    %c0_44 = arith.constant 0 : index
    %24 = vector.load %arg2[%c0_43, %c0_44] : memref<1152x128xf32, #tpu.memory_space<vmem>>, vector<1152x128xf32>
    %cst = arith.constant dense<0.000000e+00> : vector<128x128xf32>
    %25 = tpu.matmul %23, %24, %cst {dimension_numbers = #tpu.dot_dimension_numbers<[1], [0], [0], [1], [0, 0, 1, 1], [], []>} : vector<128x1152xf32>, vector<1152x128xf32>, vector<128x128xf32> -> vector<128x128xf32>
    %c0_45 = arith.constant 0 : index
    %c0_46 = arith.constant 0 : index
    %26 = vector.load %arg3[%c0_45, %c0_46] : memref<1x128xf32, #tpu.memory_space<vmem>>, vector<1x128xf32>
    %27 = vector.broadcast %26 : vector<1x128xf32> to vector<128x128xf32>
    %28 = arith.addf %25, %27 : vector<128x128xf32>
    %cst_47 = arith.constant dense<0.000000e+00> : vector<128xf32>
    %29 = vector.multi_reduction <add>, %28, %cst_47 [0] : vector<128x128xf32> to vector<128xf32>
    %30 = vector.shape_cast %29 : vector<128xf32> to vector<1x128xf32>
    %31 = arith.mulf %28, %28 : vector<128x128xf32>
    %cst_48 = arith.constant dense<0.000000e+00> : vector<128xf32>
    %32 = vector.multi_reduction <add>, %31, %cst_48 [0] : vector<128x128xf32> to vector<128xf32>
    %33 = vector.shape_cast %32 : vector<128xf32> to vector<1x128xf32>
    %34 = tpu.concatenate %30, %33 in 0 : vector<1x128xf32>, vector<1x128xf32> -> vector<2x128xf32>
    %35 = vector.shape_cast %34 : vector<2x128xf32> to vector<1x2x128xf32>
    %c0_49 = arith.constant 0 : index
    %c0_50 = arith.constant 0 : index
    %c0_51 = arith.constant 0 : index
    %36 = vector.load %arg5[%c0_49, %c0_50, %c0_51] : memref<1x2x128xf32, #tpu.memory_space<vmem>>, vector<1x2x128xf32>
    tpu.vector_store %arg5[%c0_49, %c0_50, %c0_51], %35 {strides = array<i32>} : memref<1x2x128xf32, #tpu.memory_space<vmem>>, vector<1x2x128xf32>,
    %37 = vector.shape_cast %28 : vector<128x128xf32> to vector<2x8x8x128xf32>
    %c0_52 = arith.constant 0 : index
    %c0_53 = arith.constant 0 : index
    %c0_54 = arith.constant 0 : index
    %c0_55 = arith.constant 0 : index
    %38 = vector.load %arg4[%c0_52, %c0_53, %c0_54, %c0_55] : memref<2x8x8x128xf32, #tpu.memory_space<vmem>>, vector<2x8x8x128xf32>
    tpu.vector_store %arg4[%c0_52, %c0_53, %c0_54, %c0_55], %37 {strides = array<i32>} : memref<2x8x8x128xf32, #tpu.memory_space<vmem>>, vector<2x8x8x128xf32>,
    return
  }
  func.func @transform_0(%arg0: i32) -> (i32, i32, i32, i32, i32) {
    %c0_i32 = arith.constant 0 : i32
    %c0_i32_0 = arith.constant 0 : i32
    %c0_i32_1 = arith.constant 0 : i32
    %c0_i32_2 = arith.constant 0 : i32
    %c0_i32_3 = arith.constant 0 : i32
    return %arg0, %c0_i32, %c0_i32_0, %c0_i32_1, %c0_i32_2 : i32, i32, i32, i32, i32
  }
  func.func @transform_1(%arg0: i32) -> (i32, i32) {
    %c0_i32 = arith.constant 0 : i32
    %c0_i32_0 = arith.constant 0 : i32
    %c0_i32_1 = arith.constant 0 : i32
    return %c0_i32, %c0_i32_0 : i32, i32
  }
  func.func @transform_2(%arg0: i32) -> (i32, i32) {
    %c0_i32 = arith.constant 0 : i32
    %c0_i32_0 = arith.constant 0 : i32
    %c0_i32_1 = arith.constant 0 : i32
    return %c0_i32, %c0_i32_0 : i32, i32
  }
  func.func @transform_3(%arg0: i32) -> (i32, i32, i32, i32) {
    %c0_i32 = arith.constant 0 : i32
    %c0_i32_0 = arith.constant 0 : i32
    %c0_i32_1 = arith.constant 0 : i32
    %c0_i32_2 = arith.constant 0 : i32
    return %arg0, %c0_i32, %c0_i32_0, %c0_i32_1 : i32, i32, i32, i32
  }
  func.func @transform_4(%arg0: i32) -> (i32, i32, i32) {
    %c0_i32 = arith.constant 0 : i32
    %c0_i32_0 = arith.constant 0 : i32
    %c0_i32_1 = arith.constant 0 : i32
    return %arg0, %c0_i32, %c0_i32_0 : i32, i32, i32
  }
}

module attributes {stable_mosaic.version = 11 : i64} {
  func.func @kernel(%arg0: i32, %arg1: memref<2x8x8x128xf32, #tpu.memory_space<vmem>>, %arg2: memref<1x2x128xf32, #tpu.memory_space<vmem>>, %arg3: memref<1x128xf32, #tpu.memory_space<vmem>>, %arg4: memref<1x128xf32, #tpu.memory_space<vmem>>, %arg5: memref<1152x128xf32, #tpu.memory_space<vmem>>, %arg6: memref<1x128xf32, #tpu.memory_space<vmem>>, %arg7: memref<2x8x8x128xf32, #tpu.memory_space<vmem>>, %arg8: memref<1x2x128xf32, #tpu.memory_space<vmem>>, %arg9: memref<2x10x10x128xf32, #tpu.memory_space<vmem>>) attributes {dimension_semantics = [#tpu.dimension_semantics<arbitrary>], iteration_bounds = array<i64: 1>, scalar_prefetch = 0 : i64, scratch_operands = 1 : i64, tpu.core_type = #tpu.core_type<tc>, window_params = [{transform_indices = @transform_0, window_bounds = array<i64: 2, 8, 8, 128>}, {pipeline_mode = #tpu.pipeline_mode<synchronous>, transform_indices = @transform_1, window_bounds = array<i64: 1, 2, 128>}, {pipeline_mode = #tpu.pipeline_mode<synchronous>, transform_indices = @transform_2, window_bounds = array<i64: 1, 128>}, {pipeline_mode = #tpu.pipeline_mode<synchronous>, transform_indices = @transform_3, window_bounds = array<i64: 1, 128>}, {pipeline_mode = #tpu.pipeline_mode<synchronous>, transform_indices = @transform_4, window_bounds = array<i64: 1152, 128>}, {pipeline_mode = #tpu.pipeline_mode<synchronous>, transform_indices = @transform_5, window_bounds = array<i64: 1, 128>}, {transform_indices = @transform_6, window_bounds = array<i64: 2, 8, 8, 128>}, {transform_indices = @transform_7, window_bounds = array<i64: 1, 2, 128>}]} {
    %c0_i32 = arith.constant 0 : i32
    %0 = arith.cmpi eq, %arg0, %c0_i32 : i32
    %1 = arith.extui %0 : i1 to i32
    %c0_i32_0 = arith.constant 0 : i32
    %2 = arith.cmpi ne, %1, %c0_i32_0 : i32
    scf.if %2 {
      %cst_68 = arith.constant 0.000000e+00 : f32
      %58 = vector.broadcast %cst_68 : f32 to vector<2x1x10x128xf32>
      %cst_69 = arith.constant 0.000000e+00 : f32
      %59 = vector.broadcast %cst_69 : f32 to vector<2x10x1x128xf32>
      %c0_70 = arith.constant 0 : index
      %c0_71 = arith.constant 0 : index
      %c0_72 = arith.constant 0 : index
      %c0_73 = arith.constant 0 : index
      %60 = vector.load %arg9[%c0_70, %c0_71, %c0_72, %c0_73] : memref<2x10x10x128xf32, #tpu.memory_space<vmem>>, vector<2x1x10x128xf32>
      tpu.vector_store %arg9[%c0_70, %c0_71, %c0_72, %c0_73], %58 {strides = array<i32>} : memref<2x10x10x128xf32, #tpu.memory_space<vmem>>, vector<2x1x10x128xf32>,
      %c0_74 = arith.constant 0 : index
      %c9 = arith.constant 9 : index
      %c0_75 = arith.constant 0 : index
      %c0_76 = arith.constant 0 : index
      %61 = vector.load %arg9[%c0_74, %c9, %c0_75, %c0_76] : memref<2x10x10x128xf32, #tpu.memory_space<vmem>>, vector<2x1x10x128xf32>
      tpu.vector_store %arg9[%c0_74, %c9, %c0_75, %c0_76], %58 {strides = array<i32>} : memref<2x10x10x128xf32, #tpu.memory_space<vmem>>, vector<2x1x10x128xf32>,
      %c0_77 = arith.constant 0 : index
      %c0_78 = arith.constant 0 : index
      %c0_79 = arith.constant 0 : index
      %c0_80 = arith.constant 0 : index
      %62 = vector.load %arg9[%c0_77, %c0_78, %c0_79, %c0_80] : memref<2x10x10x128xf32, #tpu.memory_space<vmem>>, vector<2x10x1x128xf32>
      tpu.vector_store %arg9[%c0_77, %c0_78, %c0_79, %c0_80], %59 {strides = array<i32>} : memref<2x10x10x128xf32, #tpu.memory_space<vmem>>, vector<2x10x1x128xf32>,
      %c0_81 = arith.constant 0 : index
      %c0_82 = arith.constant 0 : index
      %c9_83 = arith.constant 9 : index
      %c0_84 = arith.constant 0 : index
      %63 = vector.load %arg9[%c0_81, %c0_82, %c9_83, %c0_84] : memref<2x10x10x128xf32, #tpu.memory_space<vmem>>, vector<2x10x1x128xf32>
      tpu.vector_store %arg9[%c0_81, %c0_82, %c9_83, %c0_84], %59 {strides = array<i32>} : memref<2x10x10x128xf32, #tpu.memory_space<vmem>>, vector<2x10x1x128xf32>,
    } else {
    }
    %c0 = arith.constant 0 : index
    %c0_1 = arith.constant 0 : index
    %c0_2 = arith.constant 0 : index
    %3 = vector.load %arg2[%c0, %c0_1, %c0_2] : memref<1x2x128xf32, #tpu.memory_space<vmem>>, vector<1x2x128xf32>
    %4 = vector.extract_strided_slice %3 {offsets = [0, 0, 0], sizes = [1, 1, 128], strides = [1, 1, 1]} : vector<1x2x128xf32> to vector<1x1x128xf32>
    %cst = arith.constant dense<0.000000e+00> : vector<1x128xf32>
    %5 = vector.multi_reduction <add>, %4, %cst [0] : vector<1x1x128xf32> to vector<1x128xf32>
    %6 = vector.extract_strided_slice %3 {offsets = [0, 1, 0], sizes = [1, 1, 128], strides = [1, 1, 1]} : vector<1x2x128xf32> to vector<1x1x128xf32>
    %cst_3 = arith.constant dense<0.000000e+00> : vector<1x128xf32>
    %7 = vector.multi_reduction <add>, %6, %cst_3 [0] : vector<1x1x128xf32> to vector<1x128xf32>
    %cst_4 = arith.constant 7.812500e-03 : f32
    %8 = vector.broadcast %cst_4 : f32 to vector<1x128xf32>
    %9 = arith.mulf %5, %8 : vector<1x128xf32>
    %cst_5 = arith.constant 7.812500e-03 : f32
    %10 = vector.broadcast %cst_5 : f32 to vector<1x128xf32>
    %11 = arith.mulf %7, %10 : vector<1x128xf32>
    %12 = arith.mulf %9, %9 : vector<1x128xf32>
    %13 = arith.subf %11, %12 : vector<1x128xf32>
    %c0_6 = arith.constant 0 : index
    %c0_7 = arith.constant 0 : index
    %14 = vector.load %arg3[%c0_6, %c0_7] : memref<1x128xf32, #tpu.memory_space<vmem>>, vector<1x128xf32>
    %cst_8 = arith.constant 9.99999974E-6 : f32
    %15 = vector.broadcast %cst_8 : f32 to vector<1x128xf32>
    %16 = arith.addf %13, %15 : vector<1x128xf32>
    %17 = math.rsqrt %16 : vector<1x128xf32>
    %18 = arith.mulf %14, %17 : vector<1x128xf32>
    %c0_9 = arith.constant 0 : index
    %c0_10 = arith.constant 0 : index
    %19 = vector.load %arg4[%c0_9, %c0_10] : memref<1x128xf32, #tpu.memory_space<vmem>>, vector<1x128xf32>
    %20 = arith.mulf %9, %18 : vector<1x128xf32>
    %21 = arith.subf %19, %20 : vector<1x128xf32>
    %c0_11 = arith.constant 0 : index
    %c0_12 = arith.constant 0 : index
    %c0_13 = arith.constant 0 : index
    %c0_14 = arith.constant 0 : index
    %22 = vector.load %arg1[%c0_11, %c0_12, %c0_13, %c0_14] : memref<2x8x8x128xf32, #tpu.memory_space<vmem>>, vector<2x8x8x128xf32>
    %23 = vector.shape_cast %18 : vector<1x128xf32> to vector<1x1x1x128xf32>
    %24 = vector.broadcast %23 : vector<1x1x1x128xf32> to vector<2x8x8x128xf32>
    %25 = arith.mulf %22, %24 : vector<2x8x8x128xf32>
    %26 = vector.shape_cast %21 : vector<1x128xf32> to vector<1x1x1x128xf32>
    %27 = vector.broadcast %26 : vector<1x1x1x128xf32> to vector<2x8x8x128xf32>
    %28 = arith.addf %25, %27 : vector<2x8x8x128xf32>
    %cst_15 = arith.constant 0.000000e+00 : f32
    %29 = vector.broadcast %cst_15 : f32 to vector<2x8x8x128xf32>
    %30 = arith.maximumf %28, %29 : vector<2x8x8x128xf32>
    %c0_16 = arith.constant 0 : index
    %c1 = arith.constant 1 : index
    %c1_17 = arith.constant 1 : index
    %c0_18 = arith.constant 0 : index
    %31 = vector.load %arg9[%c0_16, %c1, %c1_17, %c0_18] : memref<2x10x10x128xf32, #tpu.memory_space<vmem>>, vector<2x8x8x128xf32>
    tpu.vector_store %arg9[%c0_16, %c1, %c1_17, %c0_18], %30 {strides = array<i32>} : memref<2x10x10x128xf32, #tpu.memory_space<vmem>>, vector<2x8x8x128xf32>,
    %c0_19 = arith.constant 0 : index
    %c0_20 = arith.constant 0 : index
    %c0_21 = arith.constant 0 : index
    %c0_22 = arith.constant 0 : index
    %32 = vector.load %arg9[%c0_19, %c0_20, %c0_21, %c0_22] : memref<2x10x10x128xf32, #tpu.memory_space<vmem>>, vector<2x8x8x128xf32>
    %c0_23 = arith.constant 0 : index
    %c0_24 = arith.constant 0 : index
    %c1_25 = arith.constant 1 : index
    %c0_26 = arith.constant 0 : index
    %33 = vector.load %arg9[%c0_23, %c0_24, %c1_25, %c0_26] : memref<2x10x10x128xf32, #tpu.memory_space<vmem>>, vector<2x8x8x128xf32>
    %c0_27 = arith.constant 0 : index
    %c0_28 = arith.constant 0 : index
    %c2 = arith.constant 2 : index
    %c0_29 = arith.constant 0 : index
    %34 = vector.load %arg9[%c0_27, %c0_28, %c2, %c0_29] : memref<2x10x10x128xf32, #tpu.memory_space<vmem>>, vector<2x8x8x128xf32>
    %c0_30 = arith.constant 0 : index
    %c1_31 = arith.constant 1 : index
    %c0_32 = arith.constant 0 : index
    %c0_33 = arith.constant 0 : index
    %35 = vector.load %arg9[%c0_30, %c1_31, %c0_32, %c0_33] : memref<2x10x10x128xf32, #tpu.memory_space<vmem>>, vector<2x8x8x128xf32>
    %c0_34 = arith.constant 0 : index
    %c1_35 = arith.constant 1 : index
    %c1_36 = arith.constant 1 : index
    %c0_37 = arith.constant 0 : index
    %36 = vector.load %arg9[%c0_34, %c1_35, %c1_36, %c0_37] : memref<2x10x10x128xf32, #tpu.memory_space<vmem>>, vector<2x8x8x128xf32>
    %c0_38 = arith.constant 0 : index
    %c1_39 = arith.constant 1 : index
    %c2_40 = arith.constant 2 : index
    %c0_41 = arith.constant 0 : index
    %37 = vector.load %arg9[%c0_38, %c1_39, %c2_40, %c0_41] : memref<2x10x10x128xf32, #tpu.memory_space<vmem>>, vector<2x8x8x128xf32>
    %c0_42 = arith.constant 0 : index
    %c2_43 = arith.constant 2 : index
    %c0_44 = arith.constant 0 : index
    %c0_45 = arith.constant 0 : index
    %38 = vector.load %arg9[%c0_42, %c2_43, %c0_44, %c0_45] : memref<2x10x10x128xf32, #tpu.memory_space<vmem>>, vector<2x8x8x128xf32>
    %c0_46 = arith.constant 0 : index
    %c2_47 = arith.constant 2 : index
    %c1_48 = arith.constant 1 : index
    %c0_49 = arith.constant 0 : index
    %39 = vector.load %arg9[%c0_46, %c2_47, %c1_48, %c0_49] : memref<2x10x10x128xf32, #tpu.memory_space<vmem>>, vector<2x8x8x128xf32>
    %c0_50 = arith.constant 0 : index
    %c2_51 = arith.constant 2 : index
    %c2_52 = arith.constant 2 : index
    %c0_53 = arith.constant 0 : index
    %40 = vector.load %arg9[%c0_50, %c2_51, %c2_52, %c0_53] : memref<2x10x10x128xf32, #tpu.memory_space<vmem>>, vector<2x8x8x128xf32>
    %41 = tpu.concatenate %32, %33, %34, %35, %36, %37, %38, %39, %40 in 3 : vector<2x8x8x128xf32>, vector<2x8x8x128xf32>, vector<2x8x8x128xf32>, vector<2x8x8x128xf32>, vector<2x8x8x128xf32>, vector<2x8x8x128xf32>, vector<2x8x8x128xf32>, vector<2x8x8x128xf32>, vector<2x8x8x128xf32> -> vector<2x8x8x1152xf32>
    %42 = vector.shape_cast %41 : vector<2x8x8x1152xf32> to vector<128x1152xf32>
    %c0_54 = arith.constant 0 : index
    %c0_55 = arith.constant 0 : index
    %43 = vector.load %arg5[%c0_54, %c0_55] : memref<1152x128xf32, #tpu.memory_space<vmem>>, vector<1152x128xf32>
    %cst_56 = arith.constant dense<0.000000e+00> : vector<128x128xf32>
    %44 = tpu.matmul %42, %43, %cst_56 {dimension_numbers = #tpu.dot_dimension_numbers<[1], [0], [0], [1], [0, 0, 1, 1], [], []>} : vector<128x1152xf32>, vector<1152x128xf32>, vector<128x128xf32> -> vector<128x128xf32>
    %c0_57 = arith.constant 0 : index
    %c0_58 = arith.constant 0 : index
    %45 = vector.load %arg6[%c0_57, %c0_58] : memref<1x128xf32, #tpu.memory_space<vmem>>, vector<1x128xf32>
    %46 = vector.broadcast %45 : vector<1x128xf32> to vector<128x128xf32>
    %47 = arith.addf %44, %46 : vector<128x128xf32>
    %cst_59 = arith.constant dense<0.000000e+00> : vector<128xf32>
    %48 = vector.multi_reduction <add>, %47, %cst_59 [0] : vector<128x128xf32> to vector<128xf32>
    %49 = vector.shape_cast %48 : vector<128xf32> to vector<1x128xf32>
    %50 = arith.mulf %47, %47 : vector<128x128xf32>
    %cst_60 = arith.constant dense<0.000000e+00> : vector<128xf32>
    %51 = vector.multi_reduction <add>, %50, %cst_60 [0] : vector<128x128xf32> to vector<128xf32>
    %52 = vector.shape_cast %51 : vector<128xf32> to vector<1x128xf32>
    %53 = tpu.concatenate %49, %52 in 0 : vector<1x128xf32>, vector<1x128xf32> -> vector<2x128xf32>
    %54 = vector.shape_cast %53 : vector<2x128xf32> to vector<1x2x128xf32>
    %c0_61 = arith.constant 0 : index
    %c0_62 = arith.constant 0 : index
    %c0_63 = arith.constant 0 : index
    %55 = vector.load %arg8[%c0_61, %c0_62, %c0_63] : memref<1x2x128xf32, #tpu.memory_space<vmem>>, vector<1x2x128xf32>
    tpu.vector_store %arg8[%c0_61, %c0_62, %c0_63], %54 {strides = array<i32>} : memref<1x2x128xf32, #tpu.memory_space<vmem>>, vector<1x2x128xf32>,
    %56 = vector.shape_cast %47 : vector<128x128xf32> to vector<2x8x8x128xf32>
    %c0_64 = arith.constant 0 : index
    %c0_65 = arith.constant 0 : index
    %c0_66 = arith.constant 0 : index
    %c0_67 = arith.constant 0 : index
    %57 = vector.load %arg7[%c0_64, %c0_65, %c0_66, %c0_67] : memref<2x8x8x128xf32, #tpu.memory_space<vmem>>, vector<2x8x8x128xf32>
    tpu.vector_store %arg7[%c0_64, %c0_65, %c0_66, %c0_67], %56 {strides = array<i32>} : memref<2x8x8x128xf32, #tpu.memory_space<vmem>>, vector<2x8x8x128xf32>,
    return
  }
  func.func @transform_0(%arg0: i32) -> (i32, i32, i32, i32) {
    %c0_i32 = arith.constant 0 : i32
    %c0_i32_0 = arith.constant 0 : i32
    %c0_i32_1 = arith.constant 0 : i32
    %c0_i32_2 = arith.constant 0 : i32
    return %arg0, %c0_i32, %c0_i32_0, %c0_i32_1 : i32, i32, i32, i32
  }
  func.func @transform_1(%arg0: i32) -> (i32, i32, i32) {
    %c0_i32 = arith.constant 0 : i32
    %c0_i32_0 = arith.constant 0 : i32
    %c0_i32_1 = arith.constant 0 : i32
    %c0_i32_2 = arith.constant 0 : i32
    return %c0_i32, %c0_i32_0, %c0_i32_1 : i32, i32, i32
  }
  func.func @transform_2(%arg0: i32) -> (i32, i32) {
    %c0_i32 = arith.constant 0 : i32
    %c0_i32_0 = arith.constant 0 : i32
    %c0_i32_1 = arith.constant 0 : i32
    return %c0_i32, %c0_i32_0 : i32, i32
  }
  func.func @transform_3(%arg0: i32) -> (i32, i32) {
    %c0_i32 = arith.constant 0 : i32
    %c0_i32_0 = arith.constant 0 : i32
    %c0_i32_1 = arith.constant 0 : i32
    return %c0_i32, %c0_i32_0 : i32, i32
  }
  func.func @transform_4(%arg0: i32) -> (i32, i32) {
    %c0_i32 = arith.constant 0 : i32
    %c0_i32_0 = arith.constant 0 : i32
    %c0_i32_1 = arith.constant 0 : i32
    return %c0_i32, %c0_i32_0 : i32, i32
  }
  func.func @transform_5(%arg0: i32) -> (i32, i32) {
    %c0_i32 = arith.constant 0 : i32
    %c0_i32_0 = arith.constant 0 : i32
    %c0_i32_1 = arith.constant 0 : i32
    return %c0_i32, %c0_i32_0 : i32, i32
  }
  func.func @transform_6(%arg0: i32) -> (i32, i32, i32, i32) {
    %c0_i32 = arith.constant 0 : i32
    %c0_i32_0 = arith.constant 0 : i32
    %c0_i32_1 = arith.constant 0 : i32
    %c0_i32_2 = arith.constant 0 : i32
    return %arg0, %c0_i32, %c0_i32_0, %c0_i32_1 : i32, i32, i32, i32
  }
  func.func @transform_7(%arg0: i32) -> (i32, i32, i32) {
    %c0_i32 = arith.constant 0 : i32
    %c0_i32_0 = arith.constant 0 : i32
    %c0_i32_1 = arith.constant 0 : i32
    return %arg0, %c0_i32, %c0_i32_0 : i32, i32, i32
  }
}

</mosaic_0001>

<llo_original>
// kernel: down_forward.3
$region0: #{down_forward.3}
  #allocation0 [shape = 'u32[]', space=smem, size = 0x4, offset = 0x4, fixed_abs, tag = 'smem constant byte address 0x4 - core index']
  #allocation1 [shape = 'u32[144,128]{1,0:T(1,128)}', space=vmem, size = 0x12000, scoped, tag = 'internal scratch']
  #allocation2 [shape = 'f32[2,10,10,128]{3,2,1,0:T(8,128)}', space=vmem, size = 0x28000, scoped, tag = 'scratch operand']
  %s0 = inlined_call_operand.vmem [shape: f32[2,8,8,128], index: 0, kind: input, shape index: {}]
  %s1 = inlined_call_operand.vmem [shape: f32[1,2,128], index: 1, kind: input, shape index: {}]
  %s2 = inlined_call_operand.vmem [shape: f32[1,128], index: 2, kind: input, shape index: {}]
  %s3 = inlined_call_operand.vmem [shape: f32[1,128], index: 3, kind: input, shape index: {}]
  %s4 = inlined_call_operand.vmem [shape: f32[1152,128], index: 4, kind: input, shape index: {}]
  %s5 = inlined_call_operand.vmem [shape: f32[1,128], index: 5, kind: input, shape index: {}]
  %s6 = inlined_call_operand.vmem [shape: f32[2,8,8,128], index: 6, kind: output, shape index: {0}]
  %s7 = inlined_call_operand.vmem [shape: f32[1,2,128], index: 7, kind: output, shape index: {1}]
  %8 = xla_tuple %s6, %s7
  %s9 = sld [smem:[#allocation0]]
  $region46: #{down_forward.3} parent=0
    _
  %s11 = ssub.s32 1, %s9
  %s12 = scalar_select 0, %s11, %s9
  // Predicated region
  $region2: #{down_forward.3} parent=0 // pred_check
    _
  $region3: #{down_forward.3} parent=0 // pred_check_branch
    %14 = sbr.rel (0) target = $region5
  $region4: #{down_forward.3} parent=0 // pred_region
    _
  $region5: #{down_forward.3} parent=0 // pred_fallthru
    _
  // Predicated region
  $region6: #{down_forward.3} parent=0 // pred_check
    _
  $region7: #{down_forward.3} parent=0 // pred_check_branch
    %16 = sbr.rel (0) target = $region9
  $region8: #{down_forward.3} parent=0 // pred_region
    _
  $region9: #{down_forward.3} parent=0 // pred_fallthru
    _
  // Predicated region
  $region10: #{down_forward.3} parent=0 // pred_check
    _
  $region11: #{down_forward.3} parent=0 // pred_check_branch
    %18 = sbr.rel (0) target = $region13
  $region12: #{down_forward.3} parent=0 // pred_region
    _
  $region13: #{down_forward.3} parent=0 // pred_fallthru
    _
  // Predicated region
  $region14: #{down_forward.3} parent=0 // pred_check
    _
  $region15: #{down_forward.3} parent=0 // pred_check_branch
    %20 = sbr.rel (0) target = $region17
  $region16: #{down_forward.3} parent=0 // pred_region
    _
  $region17: #{down_forward.3} parent=0 // pred_fallthru
    _
  // Predicated region
  $region18: #{down_forward.3} parent=0 // pred_check
    _
  $region19: #{down_forward.3} parent=0 // pred_check_branch
    %22 = sbr.rel (0) target = $region21
  $region20: #{down_forward.3} parent=0 // pred_region
    _
  $region21: #{down_forward.3} parent=0 // pred_fallthru
    _
  // Predicated region
  $region22: #{down_forward.3} parent=0 // pred_check
    _
  $region23: #{down_forward.3} parent=0 // pred_check_branch
    %24 = sbr.rel (0) target = $region25
  $region24: #{down_forward.3} parent=0 // pred_region
    _
  $region25: #{down_forward.3} parent=0 // pred_fallthru
    _
  %p25 = scmp.eq.s32.totalorder 0, 0
  // Predicated region
  $region26: #{down_forward.3} parent=0 // pred_check
    %p26 = pneg %p25
  $region27: #{down_forward.3} parent=0 // pred_check_branch
    %28 = sbr.rel (%p26) target = $region29
  $region28: #{down_forward.3} parent=0 // pred_region
    %29 = vst [vmem:[#allocation2] sm:$0xff] 0.0
    %30 = vst [vmem:[#allocation2 + $0x8] sm:$0x3] 0.0
    %31 = vst [vmem:[#allocation2 + $0xa0] sm:$0xff] 0.0
    %32 = vst [vmem:[#allocation2 + $0xa8] sm:$0x3] 0.0
    %s33 = scalar_lea.vmem [#allocation2], 144
    %34 = vst [vmem:[%s33] sm:$0xff] 0.0
    %35 = vst [vmem:[%s33 + $0x8] sm:$0x3] 0.0
    %36 = vst [vmem:[%s33 + $0xa0] sm:$0xff] 0.0
    %37 = vst [vmem:[%s33 + $0xa8] sm:$0x3] 0.0
    %38 = vst [vmem:[#allocation2] sm:$0x1] 0.0
    %39 = vst [vmem:[#allocation2 + $0x10] sm:$0x1] 0.0
    %40 = vst [vmem:[#allocation2 + $0x20] sm:$0x1] 0.0
    %41 = vst [vmem:[#allocation2 + $0x30] sm:$0x1] 0.0
    %42 = vst [vmem:[#allocation2 + $0x40] sm:$0x1] 0.0
    %43 = vst [vmem:[#allocation2 + $0x50] sm:$0x1] 0.0
    %44 = vst [vmem:[#allocation2 + $0x60] sm:$0x1] 0.0
    %45 = vst [vmem:[#allocation2 + $0x70] sm:$0x1] 0.0
    %46 = vst [vmem:[#allocation2 + $0x80] sm:$0x1] 0.0
    %47 = vst [vmem:[#allocation2 + $0x90] sm:$0x1] 0.0
    %48 = vst [vmem:[#allocation2 + $0xa0] sm:$0x1] 0.0
    %49 = vst [vmem:[#allocation2 + $0xb0] sm:$0x1] 0.0
    %50 = vst [vmem:[#allocation2 + $0xc0] sm:$0x1] 0.0
    %51 = vst [vmem:[#allocation2 + $0xd0] sm:$0x1] 0.0
    %52 = vst [vmem:[#allocation2 + $0xe0] sm:$0x1] 0.0
    %53 = vst [vmem:[#allocation2 + $0xf0] sm:$0x1] 0.0
    %54 = vst [vmem:[#allocation2 + $0x100] sm:$0x1] 0.0
    %55 = vst [vmem:[#allocation2 + $0x110] sm:$0x1] 0.0
    %56 = vst [vmem:[#allocation2 + $0x120] sm:$0x1] 0.0
    %57 = vst [vmem:[#allocation2 + $0x130] sm:$0x1] 0.0
    %58 = vst [vmem:[#allocation2 + $0x9] sm:$0x1] 0.0
    %59 = vst [vmem:[#allocation2 + $0x19] sm:$0x1] 0.0
    %60 = vst [vmem:[#allocation2 + $0x29] sm:$0x1] 0.0
    %61 = vst [vmem:[#allocation2 + $0x39] sm:$0x1] 0.0
    %62 = vst [vmem:[#allocation2 + $0x49] sm:$0x1] 0.0
    %63 = vst [vmem:[#allocation2 + $0x59] sm:$0x1] 0.0
    %64 = vst [vmem:[#allocation2 + $0x69] sm:$0x1] 0.0
    %65 = vst [vmem:[#allocation2 + $0x79] sm:$0x1] 0.0
    %66 = vst [vmem:[#allocation2 + $0x89] sm:$0x1] 0.0
    %67 = vst [vmem:[#allocation2 + $0x99] sm:$0x1] 0.0
    %68 = vst [vmem:[#allocation2 + $0xa9] sm:$0x1] 0.0
    %69 = vst [vmem:[#allocation2 + $0xb9] sm:$0x1] 0.0
    %70 = vst [vmem:[#allocation2 + $0xc9] sm:$0x1] 0.0
    %71 = vst [vmem:[#allocation2 + $0xd9] sm:$0x1] 0.0
    %72 = vst [vmem:[#allocation2 + $0xe9] sm:$0x1] 0.0
    %73 = vst [vmem:[#allocation2 + $0xf9] sm:$0x1] 0.0
    %74 = vst [vmem:[#allocation2 + $0x109] sm:$0x1] 0.0
    %75 = vst [vmem:[#allocation2 + $0x119] sm:$0x1] 0.0
    %76 = vst [vmem:[#allocation2 + $0x129] sm:$0x1] 0.0
    %77 = vst [vmem:[#allocation2 + $0x139] sm:$0x1] 0.0
  $region29: #{down_forward.3} parent=0 // pred_fallthru
    _
  %v78 = vld [vmem:[%s1] sm:$0x3]
  %v79 = vadd.f32 %v78, 0.0
  %v80 = vmul.f32 %v79, 0.0078125
  %v81 = vmul.f32 %v80, %v80
  %v83 = vrot.slane %v81, 7
  %v85 = vsub.f32 %v80, %v83
  %v86 = vld [vmem:[%s2] sm:$0x1]
  %v87 = vadd.f32 %v85, 1e-05
  %v88 = vrsqrt.pop %v87
  %v91 = vunpack.c.l.s4 1966171168
  %v92 = vunpack.c.0.s8 %v91
  %v93 = vlaneseq
  %v94 = vshrl.u32 %v93, 7
  %v95 = vsub.s32 %v92, %v94
  %v96 = vrot.slane %v88, %v95
  %v97 = vcombine.high %v96, %v96
  %v99 = vunpack.c.l.s4 1966171168
  %v100 = vunpack.c.0.s8 %v99
  %v101 = vlaneseq
  %v102 = vshrl.u32 %v101, 7
  %v103 = vsub.s32 %v100, %v102
  %v104 = vrot.slane %v97, %v103
  %v106 = vmul.f32 %v86, %v104
  %v107 = vld [vmem:[%s3] sm:$0x1]
  %v108 = vmul.f32 %v80, %v106
  %v109 = vsub.f32 %v107, %v108
  %v110 = vld [vmem:[%s0] sm:$0xff]
  %v111 = vld [vmem:[%s0 + $0x8] sm:$0xff]
  %v112 = vld [vmem:[%s0 + $0x10] sm:$0xff]
  %v113 = vld [vmem:[%s0 + $0x18] sm:$0xff]
  %v114 = vld [vmem:[%s0 + $0x20] sm:$0xff]
  %v115 = vld [vmem:[%s0 + $0x28] sm:$0xff]
  %v116 = vld [vmem:[%s0 + $0x30] sm:$0xff]
  %v117 = vld [vmem:[%s0 + $0x38] sm:$0xff]
  %v118 = vld [vmem:[%s0 + $0x40] sm:$0xff]
  %v119 = vld [vmem:[%s0 + $0x48] sm:$0xff]
  %v120 = vld [vmem:[%s0 + $0x50] sm:$0xff]
  %v121 = vld [vmem:[%s0 + $0x58] sm:$0xff]
  %v122 = vld [vmem:[%s0 + $0x60] sm:$0xff]
  %v123 = vld [vmem:[%s0 + $0x68] sm:$0xff]
  %v124 = vld [vmem:[%s0 + $0x70] sm:$0xff]
  %v125 = vld [vmem:[%s0 + $0x78] sm:$0xff]
  %v127 = vlaneseq
  %v128 = vshrl.u32 %v127, 7
  %v129 = vsub.s32 0, %v128
  %v130 = vrot.slane %v106, %v129
  %v132 = vmul.f32 %v110, %v130
  %v133 = vmul.f32 %v111, %v130
  %v134 = vmul.f32 %v112, %v130
  %v135 = vmul.f32 %v113, %v130
  %v136 = vmul.f32 %v114, %v130
  %v137 = vmul.f32 %v115, %v130
  %v138 = vmul.f32 %v116, %v130
  %v139 = vmul.f32 %v117, %v130
  %v140 = vmul.f32 %v118, %v130
  %v141 = vmul.f32 %v119, %v130
  %v142 = vmul.f32 %v120, %v130
  %v143 = vmul.f32 %v121, %v130
  %v144 = vmul.f32 %v122, %v130
  %v145 = vmul.f32 %v123, %v130
  %v146 = vmul.f32 %v124, %v130
  %v147 = vmul.f32 %v125, %v130
  %v149 = vlaneseq
  %v150 = vshrl.u32 %v149, 7
  %v151 = vsub.s32 0, %v150
  %v152 = vrot.slane %v109, %v151
  %v154 = vadd.f32 %v132, %v152
  %v155 = vadd.f32 %v133, %v152
  %v156 = vadd.f32 %v134, %v152
  %v157 = vadd.f32 %v135, %v152
  %v158 = vadd.f32 %v136, %v152
  %v159 = vadd.f32 %v137, %v152
  %v160 = vadd.f32 %v138, %v152
  %v161 = vadd.f32 %v139, %v152
  %v162 = vadd.f32 %v140, %v152
  %v163 = vadd.f32 %v141, %v152
  %v164 = vadd.f32 %v142, %v152
  %v165 = vadd.f32 %v143, %v152
  %v166 = vadd.f32 %v144, %v152
  %v167 = vadd.f32 %v145, %v152
  %v168 = vadd.f32 %v146, %v152
  %v169 = vadd.f32 %v147, %v152
  %v170 = vmax.f32 %v154, 0.0
  %v171 = vmax.f32 %v155, 0.0
  %v172 = vmax.f32 %v156, 0.0
  %v173 = vmax.f32 %v157, 0.0
  %v174 = vmax.f32 %v158, 0.0
  %v175 = vmax.f32 %v159, 0.0
  %v176 = vmax.f32 %v160, 0.0
  %v177 = vmax.f32 %v161, 0.0
  %v178 = vmax.f32 %v162, 0.0
  %v179 = vmax.f32 %v163, 0.0
  %v180 = vmax.f32 %v164, 0.0
  %v181 = vmax.f32 %v165, 0.0
  %v182 = vmax.f32 %v166, 0.0
  %v183 = vmax.f32 %v167, 0.0
  %v184 = vmax.f32 %v168, 0.0
  %v185 = vmax.f32 %v169, 0.0
  %s186 = scalar_lea.vmem [#allocation2], 16
  %187 = vst [vmem:[%s186 + $0x1] sm:$0xff] %v170
  %188 = vst [vmem:[%s186 + $0x11] sm:$0xff] %v171
  %189 = vst [vmem:[%s186 + $0x21] sm:$0xff] %v172
  %190 = vst [vmem:[%s186 + $0x31] sm:$0xff] %v173
  %191 = vst [vmem:[%s186 + $0x41] sm:$0xff] %v174
  %192 = vst [vmem:[%s186 + $0x51] sm:$0xff] %v175
  %193 = vst [vmem:[%s186 + $0x61] sm:$0xff] %v176
  %194 = vst [vmem:[%s186 + $0x71] sm:$0xff] %v177
  %195 = vst [vmem:[%s186 + $0xa1] sm:$0xff] %v178
  %196 = vst [vmem:[%s186 + $0xb1] sm:$0xff] %v179
  %197 = vst [vmem:[%s186 + $0xc1] sm:$0xff] %v180
  %198 = vst [vmem:[%s186 + $0xd1] sm:$0xff] %v181
  %199 = vst [vmem:[%s186 + $0xe1] sm:$0xff] %v182
  %200 = vst [vmem:[%s186 + $0xf1] sm:$0xff] %v183
  %201 = vst [vmem:[%s186 + $0x101] sm:$0xff] %v184
  %202 = vst [vmem:[%s186 + $0x111] sm:$0xff] %v185
  %v203 = vld [vmem:[#allocation2] sm:$0xff]
  %v204 = vld [vmem:[#allocation2 + $0x10] sm:$0xff]
  %v205 = vld [vmem:[#allocation2 + $0x20] sm:$0xff]
  %v206 = vld [vmem:[#allocation2 + $0x30] sm:$0xff]
  %v207 = vld [vmem:[#allocation2 + $0x40] sm:$0xff]
  %v208 = vld [vmem:[#allocation2 + $0x50] sm:$0xff]
  %v209 = vld [vmem:[#allocation2 + $0x60] sm:$0xff]
  %v210 = vld [vmem:[#allocation2 + $0x70] sm:$0xff]
  %v211 = vld [vmem:[#allocation2 + $0xa0] sm:$0xff]
  %v212 = vld [vmem:[#allocation2 + $0xb0] sm:$0xff]
  %v213 = vld [vmem:[#allocation2 + $0xc0] sm:$0xff]
  %v214 = vld [vmem:[#allocation2 + $0xd0] sm:$0xff]
  %v215 = vld [vmem:[#allocation2 + $0xe0] sm:$0xff]
  %v216 = vld [vmem:[#allocation2 + $0xf0] sm:$0xff]
  %v217 = vld [vmem:[#allocation2 + $0x100] sm:$0xff]
  %v218 = vld [vmem:[#allocation2 + $0x110] sm:$0xff]
  %v219 = vld [vmem:[#allocation2 + $0x1] sm:$0xff]
  %v220 = vld [vmem:[#allocation2 + $0x11] sm:$0xff]
  %v221 = vld [vmem:[#allocation2 + $0x21] sm:$0xff]
  %v222 = vld [vmem:[#allocation2 + $0x31] sm:$0xff]
  %v223 = vld [vmem:[#allocation2 + $0x41] sm:$0xff]
  %v224 = vld [vmem:[#allocation2 + $0x51] sm:$0xff]
  %v225 = vld [vmem:[#allocation2 + $0x61] sm:$0xff]
  %v226 = vld [vmem:[#allocation2 + $0x71] sm:$0xff]
  %v227 = vld [vmem:[#allocation2 + $0xa1] sm:$0xff]
  %v228 = vld [vmem:[#allocation2 + $0xb1] sm:$0xff]
  %v229 = vld [vmem:[#allocation2 + $0xc1] sm:$0xff]
  %v230 = vld [vmem:[#allocation2 + $0xd1] sm:$0xff]
  %v231 = vld [vmem:[#allocation2 + $0xe1] sm:$0xff]
  %v232 = vld [vmem:[#allocation2 + $0xf1] sm:$0xff]
  %v233 = vld [vmem:[#allocation2 + $0x101] sm:$0xff]
  %v234 = vld [vmem:[#allocation2 + $0x111] sm:$0xff]
  %v235 = vld [vmem:[#allocation2 + $0x2] sm:$0xff]
  %v236 = vld [vmem:[#allocation2 + $0x12] sm:$0xff]
  %v237 = vld [vmem:[#allocation2 + $0x22] sm:$0xff]
  %v238 = vld [vmem:[#allocation2 + $0x32] sm:$0xff]
  %v239 = vld [vmem:[#allocation2 + $0x42] sm:$0xff]
  %v240 = vld [vmem:[#allocation2 + $0x52] sm:$0xff]
  %v241 = vld [vmem:[#allocation2 + $0x62] sm:$0xff]
  %v242 = vld [vmem:[#allocation2 + $0x72] sm:$0xff]
  %v243 = vld [vmem:[#allocation2 + $0xa2] sm:$0xff]
  %v244 = vld [vmem:[#allocation2 + $0xb2] sm:$0xff]
  %v245 = vld [vmem:[#allocation2 + $0xc2] sm:$0xff]
  %v246 = vld [vmem:[#allocation2 + $0xd2] sm:$0xff]
  %v247 = vld [vmem:[#allocation2 + $0xe2] sm:$0xff]
  %v248 = vld [vmem:[#allocation2 + $0xf2] sm:$0xff]
  %v249 = vld [vmem:[#allocation2 + $0x102] sm:$0xff]
  %v250 = vld [vmem:[#allocation2 + $0x112] sm:$0xff]
  %v251 = vld [vmem:[%s186] sm:$0xff]
  %v252 = vld [vmem:[%s186 + $0x10] sm:$0xff]
  %v253 = vld [vmem:[%s186 + $0x20] sm:$0xff]
  %v254 = vld [vmem:[%s186 + $0x30] sm:$0xff]
  %v255 = vld [vmem:[%s186 + $0x40] sm:$0xff]
  %v256 = vld [vmem:[%s186 + $0x50] sm:$0xff]
  %v257 = vld [vmem:[%s186 + $0x60] sm:$0xff]
  %v258 = vld [vmem:[%s186 + $0x70] sm:$0xff]
  %v259 = vld [vmem:[%s186 + $0xa0] sm:$0xff]
  %v260 = vld [vmem:[%s186 + $0xb0] sm:$0xff]
  %v261 = vld [vmem:[%s186 + $0xc0] sm:$0xff]
  %v262 = vld [vmem:[%s186 + $0xd0] sm:$0xff]
  %v263 = vld [vmem:[%s186 + $0xe0] sm:$0xff]
  %v264 = vld [vmem:[%s186 + $0xf0] sm:$0xff]
  %v265 = vld [vmem:[%s186 + $0x100] sm:$0xff]
  %v266 = vld [vmem:[%s186 + $0x110] sm:$0xff]
  %v267 = vld [vmem:[%s186 + $0x1] sm:$0xff]
  %v268 = vld [vmem:[%s186 + $0x11] sm:$0xff]
  %v269 = vld [vmem:[%s186 + $0x21] sm:$0xff]
  %v270 = vld [vmem:[%s186 + $0x31] sm:$0xff]
  %v271 = vld [vmem:[%s186 + $0x41] sm:$0xff]
  %v272 = vld [vmem:[%s186 + $0x51] sm:$0xff]
  %v273 = vld [vmem:[%s186 + $0x61] sm:$0xff]
  %v274 = vld [vmem:[%s186 + $0x71] sm:$0xff]
  %v275 = vld [vmem:[%s186 + $0xa1] sm:$0xff]
  %v276 = vld [vmem:[%s186 + $0xb1] sm:$0xff]
  %v277 = vld [vmem:[%s186 + $0xc1] sm:$0xff]
  %v278 = vld [vmem:[%s186 + $0xd1] sm:$0xff]
  %v279 = vld [vmem:[%s186 + $0xe1] sm:$0xff]
  %v280 = vld [vmem:[%s186 + $0xf1] sm:$0xff]
  %v281 = vld [vmem:[%s186 + $0x101] sm:$0xff]
  %v282 = vld [vmem:[%s186 + $0x111] sm:$0xff]
  %v283 = vld [vmem:[%s186 + $0x2] sm:$0xff]
  %v284 = vld [vmem:[%s186 + $0x12] sm:$0xff]
  %v285 = vld [vmem:[%s186 + $0x22] sm:$0xff]
  %v286 = vld [vmem:[%s186 + $0x32] sm:$0xff]
  %v287 = vld [vmem:[%s186 + $0x42] sm:$0xff]
  %v288 = vld [vmem:[%s186 + $0x52] sm:$0xff]
  %v289 = vld [vmem:[%s186 + $0x62] sm:$0xff]
  %v290 = vld [vmem:[%s186 + $0x72] sm:$0xff]
  %v291 = vld [vmem:[%s186 + $0xa2] sm:$0xff]
  %v292 = vld [vmem:[%s186 + $0xb2] sm:$0xff]
  %v293 = vld [vmem:[%s186 + $0xc2] sm:$0xff]
  %v294 = vld [vmem:[%s186 + $0xd2] sm:$0xff]
  %v295 = vld [vmem:[%s186 + $0xe2] sm:$0xff]
  %v296 = vld [vmem:[%s186 + $0xf2] sm:$0xff]
  %v297 = vld [vmem:[%s186 + $0x102] sm:$0xff]
  %v298 = vld [vmem:[%s186 + $0x112] sm:$0xff]
  %s299 = scalar_lea.vmem [#allocation2], 32
  %v300 = vld [vmem:[%s299] sm:$0xff]
  %v301 = vld [vmem:[%s299 + $0x10] sm:$0xff]
  %v302 = vld [vmem:[%s299 + $0x20] sm:$0xff]
  %v303 = vld [vmem:[%s299 + $0x30] sm:$0xff]
  %v304 = vld [vmem:[%s299 + $0x40] sm:$0xff]
  %v305 = vld [vmem:[%s299 + $0x50] sm:$0xff]
  %v306 = vld [vmem:[%s299 + $0x60] sm:$0xff]
  %v307 = vld [vmem:[%s299 + $0x70] sm:$0xff]
  %v308 = vld [vmem:[%s299 + $0xa0] sm:$0xff]
  %v309 = vld [vmem:[%s299 + $0xb0] sm:$0xff]
  %v310 = vld [vmem:[%s299 + $0xc0] sm:$0xff]
  %v311 = vld [vmem:[%s299 + $0xd0] sm:$0xff]
  %v312 = vld [vmem:[%s299 + $0xe0] sm:$0xff]
  %v313 = vld [vmem:[%s299 + $0xf0] sm:$0xff]
  %v314 = vld [vmem:[%s299 + $0x100] sm:$0xff]
  %v315 = vld [vmem:[%s299 + $0x110] sm:$0xff]
  %v316 = vld [vmem:[%s299 + $0x1] sm:$0xff]
  %v317 = vld [vmem:[%s299 + $0x11] sm:$0xff]
  %v318 = vld [vmem:[%s299 + $0x21] sm:$0xff]
  %v319 = vld [vmem:[%s299 + $0x31] sm:$0xff]
  %v320 = vld [vmem:[%s299 + $0x41] sm:$0xff]
  %v321 = vld [vmem:[%s299 + $0x51] sm:$0xff]
  %v322 = vld [vmem:[%s299 + $0x61] sm:$0xff]
  %v323 = vld [vmem:[%s299 + $0x71] sm:$0xff]
  %v324 = vld [vmem:[%s299 + $0xa1] sm:$0xff]
  %v325 = vld [vmem:[%s299 + $0xb1] sm:$0xff]
  %v326 = vld [vmem:[%s299 + $0xc1] sm:$0xff]
  %v327 = vld [vmem:[%s299 + $0xd1] sm:$0xff]
  %v328 = vld [vmem:[%s299 + $0xe1] sm:$0xff]
  %v329 = vld [vmem:[%s299 + $0xf1] sm:$0xff]
  %v330 = vld [vmem:[%s299 + $0x101] sm:$0xff]
  %v331 = vld [vmem:[%s299 + $0x111] sm:$0xff]
  %v332 = vld [vmem:[%s299 + $0x2] sm:$0xff]
  %v333 = vld [vmem:[%s299 + $0x12] sm:$0xff]
  %v334 = vld [vmem:[%s299 + $0x22] sm:$0xff]
  %v335 = vld [vmem:[%s299 + $0x32] sm:$0xff]
  %v336 = vld [vmem:[%s299 + $0x42] sm:$0xff]
  %v337 = vld [vmem:[%s299 + $0x52] sm:$0xff]
  %v338 = vld [vmem:[%s299 + $0x62] sm:$0xff]
  %v339 = vld [vmem:[%s299 + $0x72] sm:$0xff]
  %v340 = vld [vmem:[%s299 + $0xa2] sm:$0xff]
  %v341 = vld [vmem:[%s299 + $0xb2] sm:$0xff]
  %v342 = vld [vmem:[%s299 + $0xc2] sm:$0xff]
  %v343 = vld [vmem:[%s299 + $0xd2] sm:$0xff]
  %v344 = vld [vmem:[%s299 + $0xe2] sm:$0xff]
  %v345 = vld [vmem:[%s299 + $0xf2] sm:$0xff]
  %v346 = vld [vmem:[%s299 + $0x102] sm:$0xff]
  %v347 = vld [vmem:[%s299 + $0x112] sm:$0xff]
  %v348 = vld [vmem:[%s4] sm:$0xff]
  %v349 = vld [vmem:[%s4 + $0x8] sm:$0xff]
  %v350 = vld [vmem:[%s4 + $0x10] sm:$0xff]
  %v351 = vld [vmem:[%s4 + $0x18] sm:$0xff]
  %v352 = vld [vmem:[%s4 + $0x20] sm:$0xff]
  %v353 = vld [vmem:[%s4 + $0x28] sm:$0xff]
  %v354 = vld [vmem:[%s4 + $0x30] sm:$0xff]
  %v355 = vld [vmem:[%s4 + $0x38] sm:$0xff]
  %v356 = vld [vmem:[%s4 + $0x40] sm:$0xff]
  %v357 = vld [vmem:[%s4 + $0x48] sm:$0xff]
  %v358 = vld [vmem:[%s4 + $0x50] sm:$0xff]
  %v359 = vld [vmem:[%s4 + $0x58] sm:$0xff]
  %v360 = vld [vmem:[%s4 + $0x60] sm:$0xff]
  %v361 = vld [vmem:[%s4 + $0x68] sm:$0xff]
  %v362 = vld [vmem:[%s4 + $0x70] sm:$0xff]
  %v363 = vld [vmem:[%s4 + $0x78] sm:$0xff]
  %v364 = vld [vmem:[%s4 + $0x80] sm:$0xff]
  %v365 = vld [vmem:[%s4 + $0x88] sm:$0xff]
  %v366 = vld [vmem:[%s4 + $0x90] sm:$0xff]
  %v367 = vld [vmem:[%s4 + $0x98] sm:$0xff]
  %v368 = vld [vmem:[%s4 + $0xa0] sm:$0xff]
  %v369 = vld [vmem:[%s4 + $0xa8] sm:$0xff]
  %v370 = vld [vmem:[%s4 + $0xb0] sm:$0xff]
  %v371 = vld [vmem:[%s4 + $0xb8] sm:$0xff]
  %v372 = vld [vmem:[%s4 + $0xc0] sm:$0xff]
  %v373 = vld [vmem:[%s4 + $0xc8] sm:$0xff]
  %v374 = vld [vmem:[%s4 + $0xd0] sm:$0xff]
  %v375 = vld [vmem:[%s4 + $0xd8] sm:$0xff]
  %v376 = vld [vmem:[%s4 + $0xe0] sm:$0xff]
  %v377 = vld [vmem:[%s4 + $0xe8] sm:$0xff]
  %v378 = vld [vmem:[%s4 + $0xf0] sm:$0xff]
  %v379 = vld [vmem:[%s4 + $0xf8] sm:$0xff]
  %v380 = vld [vmem:[%s4 + $0x100] sm:$0xff]
  %v381 = vld [vmem:[%s4 + $0x108] sm:$0xff]
  %v382 = vld [vmem:[%s4 + $0x110] sm:$0xff]
  %v383 = vld [vmem:[%s4 + $0x118] sm:$0xff]
  %v384 = vld [vmem:[%s4 + $0x120] sm:$0xff]
  %v385 = vld [vmem:[%s4 + $0x128] sm:$0xff]
  %v386 = vld [vmem:[%s4 + $0x130] sm:$0xff]
  %v387 = vld [vmem:[%s4 + $0x138] sm:$0xff]
  %v388 = vld [vmem:[%s4 + $0x140] sm:$0xff]
  %v389 = vld [vmem:[%s4 + $0x148] sm:$0xff]
  %v390 = vld [vmem:[%s4 + $0x150] sm:$0xff]
  %v391 = vld [vmem:[%s4 + $0x158] sm:$0xff]
  %v392 = vld [vmem:[%s4 + $0x160] sm:$0xff]
  %v393 = vld [vmem:[%s4 + $0x168] sm:$0xff]
  %v394 = vld [vmem:[%s4 + $0x170] sm:$0xff]
  %v395 = vld [vmem:[%s4 + $0x178] sm:$0xff]
  %v396 = vld [vmem:[%s4 + $0x180] sm:$0xff]
  %v397 = vld [vmem:[%s4 + $0x188] sm:$0xff]
  %v398 = vld [vmem:[%s4 + $0x190] sm:$0xff]
  %v399 = vld [vmem:[%s4 + $0x198] sm:$0xff]
  %v400 = vld [vmem:[%s4 + $0x1a0] sm:$0xff]
  %v401 = vld [vmem:[%s4 + $0x1a8] sm:$0xff]
  %v402 = vld [vmem:[%s4 + $0x1b0] sm:$0xff]
  %v403 = vld [vmem:[%s4 + $0x1b8] sm:$0xff]
  %v404 = vld [vmem:[%s4 + $0x1c0] sm:$0xff]
  %v405 = vld [vmem:[%s4 + $0x1c8] sm:$0xff]
  %v406 = vld [vmem:[%s4 + $0x1d0] sm:$0xff]
  %v407 = vld [vmem:[%s4 + $0x1d8] sm:$0xff]
  %v408 = vld [vmem:[%s4 + $0x1e0] sm:$0xff]
  %v409 = vld [vmem:[%s4 + $0x1e8] sm:$0xff]
  %v410 = vld [vmem:[%s4 + $0x1f0] sm:$0xff]
  %v411 = vld [vmem:[%s4 + $0x1f8] sm:$0xff]
  %v412 = vld [vmem:[%s4 + $0x200] sm:$0xff]
  %v413 = vld [vmem:[%s4 + $0x208] sm:$0xff]
  %v414 = vld [vmem:[%s4 + $0x210] sm:$0xff]
  %v415 = vld [vmem:[%s4 + $0x218] sm:$0xff]
  %v416 = vld [vmem:[%s4 + $0x220] sm:$0xff]
  %v417 = vld [vmem:[%s4 + $0x228] sm:$0xff]
  %v418 = vld [vmem:[%s4 + $0x230] sm:$0xff]
  %v419 = vld [vmem:[%s4 + $0x238] sm:$0xff]
  %v420 = vld [vmem:[%s4 + $0x240] sm:$0xff]
  %v421 = vld [vmem:[%s4 + $0x248] sm:$0xff]
  %v422 = vld [vmem:[%s4 + $0x250] sm:$0xff]
  %v423 = vld [vmem:[%s4 + $0x258] sm:$0xff]
  %v424 = vld [vmem:[%s4 + $0x260] sm:$0xff]
  %v425 = vld [vmem:[%s4 + $0x268] sm:$0xff]
  %v426 = vld [vmem:[%s4 + $0x270] sm:$0xff]
  %v427 = vld [vmem:[%s4 + $0x278] sm:$0xff]
  %v428 = vld [vmem:[%s4 + $0x280] sm:$0xff]
  %v429 = vld [vmem:[%s4 + $0x288] sm:$0xff]
  %v430 = vld [vmem:[%s4 + $0x290] sm:$0xff]
  %v431 = vld [vmem:[%s4 + $0x298] sm:$0xff]
  %v432 = vld [vmem:[%s4 + $0x2a0] sm:$0xff]
  %v433 = vld [vmem:[%s4 + $0x2a8] sm:$0xff]
  %v434 = vld [vmem:[%s4 + $0x2b0] sm:$0xff]
  %v435 = vld [vmem:[%s4 + $0x2b8] sm:$0xff]
  %v436 = vld [vmem:[%s4 + $0x2c0] sm:$0xff]
  %v437 = vld [vmem:[%s4 + $0x2c8] sm:$0xff]
  %v438 = vld [vmem:[%s4 + $0x2d0] sm:$0xff]
  %v439 = vld [vmem:[%s4 + $0x2d8] sm:$0xff]
  %v440 = vld [vmem:[%s4 + $0x2e0] sm:$0xff]
  %v441 = vld [vmem:[%s4 + $0x2e8] sm:$0xff]
  %v442 = vld [vmem:[%s4 + $0x2f0] sm:$0xff]
  %v443 = vld [vmem:[%s4 + $0x2f8] sm:$0xff]
  %v444 = vld [vmem:[%s4 + $0x300] sm:$0xff]
  %v445 = vld [vmem:[%s4 + $0x308] sm:$0xff]
  %v446 = vld [vmem:[%s4 + $0x310] sm:$0xff]
  %v447 = vld [vmem:[%s4 + $0x318] sm:$0xff]
  %v448 = vld [vmem:[%s4 + $0x320] sm:$0xff]
  %v449 = vld [vmem:[%s4 + $0x328] sm:$0xff]
  %v450 = vld [vmem:[%s4 + $0x330] sm:$0xff]
  %v451 = vld [vmem:[%s4 + $0x338] sm:$0xff]
  %v452 = vld [vmem:[%s4 + $0x340] sm:$0xff]
  %v453 = vld [vmem:[%s4 + $0x348] sm:$0xff]
  %v454 = vld [vmem:[%s4 + $0x350] sm:$0xff]
  %v455 = vld [vmem:[%s4 + $0x358] sm:$0xff]
  %v456 = vld [vmem:[%s4 + $0x360] sm:$0xff]
  %v457 = vld [vmem:[%s4 + $0x368] sm:$0xff]
  %v458 = vld [vmem:[%s4 + $0x370] sm:$0xff]
  %v459 = vld [vmem:[%s4 + $0x378] sm:$0xff]
  %v460 = vld [vmem:[%s4 + $0x380] sm:$0xff]
  %v461 = vld [vmem:[%s4 + $0x388] sm:$0xff]
  %v462 = vld [vmem:[%s4 + $0x390] sm:$0xff]
  %v463 = vld [vmem:[%s4 + $0x398] sm:$0xff]
  %v464 = vld [vmem:[%s4 + $0x3a0] sm:$0xff]
  %v465 = vld [vmem:[%s4 + $0x3a8] sm:$0xff]
  %v466 = vld [vmem:[%s4 + $0x3b0] sm:$0xff]
  %v467 = vld [vmem:[%s4 + $0x3b8] sm:$0xff]
  %v468 = vld [vmem:[%s4 + $0x3c0] sm:$0xff]
  %v469 = vld [vmem:[%s4 + $0x3c8] sm:$0xff]
  %v470 = vld [vmem:[%s4 + $0x3d0] sm:$0xff]
  %v471 = vld [vmem:[%s4 + $0x3d8] sm:$0xff]
  %v472 = vld [vmem:[%s4 + $0x3e0] sm:$0xff]
  %v473 = vld [vmem:[%s4 + $0x3e8] sm:$0xff]
  %v474 = vld [vmem:[%s4 + $0x3f0] sm:$0xff]
  %v475 = vld [vmem:[%s4 + $0x3f8] sm:$0xff]
  %v476 = vld [vmem:[%s4 + $0x400] sm:$0xff]
  %v477 = vld [vmem:[%s4 + $0x408] sm:$0xff]
  %v478 = vld [vmem:[%s4 + $0x410] sm:$0xff]
  %v479 = vld [vmem:[%s4 + $0x418] sm:$0xff]
  %v480 = vld [vmem:[%s4 + $0x420] sm:$0xff]
  %v481 = vld [vmem:[%s4 + $0x428] sm:$0xff]
  %v482 = vld [vmem:[%s4 + $0x430] sm:$0xff]
  %v483 = vld [vmem:[%s4 + $0x438] sm:$0xff]
  %v484 = vld [vmem:[%s4 + $0x440] sm:$0xff]
  %v485 = vld [vmem:[%s4 + $0x448] sm:$0xff]
  %v486 = vld [vmem:[%s4 + $0x450] sm:$0xff]
  %v487 = vld [vmem:[%s4 + $0x458] sm:$0xff]
  %v488 = vld [vmem:[%s4 + $0x460] sm:$0xff]
  %v489 = vld [vmem:[%s4 + $0x468] sm:$0xff]
  %v490 = vld [vmem:[%s4 + $0x470] sm:$0xff]
  %v491 = vld [vmem:[%s4 + $0x478] sm:$0xff]
  %v492 = vld [vmem:[%s5] sm:$0x1]
  %v494 = vlaneseq
  %v495 = vshrl.u32 %v494, 7
  %v496 = vsub.s32 0, %v495
  %v497 = vrot.slane %v492, %v496
  %499 = vmatprep.subr.mxu0 0.0
  %500 = vmatpush1.msra.mxu0 %v348
  %501 = vmatprep.subr.mxu0 0.0
  %502 = vmatpush1.msra.mxu0 %v349
  %503 = vmatprep.subr.mxu0 0.0
  %504 = vmatpush1.msra.mxu0 %v350
  %505 = vmatprep.subr.mxu0 0.0
  %506 = vmatpush1.msra.mxu0 %v351
  %507 = vmatprep.subr.mxu0 0.0
  %508 = vmatpush1.msra.mxu0 %v352
  %509 = vmatprep.subr.mxu0 0.0
  %510 = vmatpush1.msra.mxu0 %v353
  %511 = vmatprep.subr.mxu0 0.0
  %512 = vmatpush1.msra.mxu0 %v354
  %513 = vmatprep.subr.mxu0 0.0
  %514 = vmatpush1.msra.mxu0 %v355
  %515 = vmatprep.subr.mxu0 0.0
  %516 = vmatpush1.msra.mxu0 %v356
  %517 = vmatprep.subr.mxu0 0.0
  %518 = vmatpush1.msra.mxu0 %v357
  %519 = vmatprep.subr.mxu0 0.0
  %520 = vmatpush1.msra.mxu0 %v358
  %521 = vmatprep.subr.mxu0 0.0
  %522 = vmatpush1.msra.mxu0 %v359
  %523 = vmatprep.subr.mxu0 0.0
  %524 = vmatpush1.msra.mxu0 %v360
  %525 = vmatprep.subr.mxu0 0.0
  %526 = vmatpush1.msra.mxu0 %v361
  %527 = vmatprep.subr.mxu0 0.0
  %528 = vmatpush1.msra.mxu0 %v362
  %529 = vmatprep.subr.mxu0 0.0
  %530 = vmatpush1.msra.mxu0 %v363
  %531 = vmatprep.subr.mxu0 0.0
  %532 = vmatpush1.msra.mxu0 %v364
  %533 = vmatprep.subr.mxu0 0.0
  %534 = vmatpush1.msra.mxu0 %v365
  %535 = vmatprep.subr.mxu0 0.0
  %536 = vmatpush1.msra.mxu0 %v366
  %537 = vmatprep.subr.mxu0 0.0
  %538 = vmatpush1.msra.mxu0 %v367
  %539 = vmatprep.subr.mxu0 0.0
  %540 = vmatpush1.msra.mxu0 %v368
  %541 = vmatprep.subr.mxu0 0.0
  %542 = vmatpush1.msra.mxu0 %v369
  %543 = vmatprep.subr.mxu0 0.0
  %544 = vmatpush1.msra.mxu0 %v370
  %545 = vmatprep.subr.mxu0 0.0
  %546 = vmatpush1.msra.mxu0 %v371
  %547 = vmatprep.subr.mxu0 0.0
  %548 = vmatpush1.msra.mxu0 %v372
  %549 = vmatprep.subr.mxu0 0.0
  %550 = vmatpush1.msra.mxu0 %v373
  %551 = vmatprep.subr.mxu0 0.0
  %552 = vmatpush1.msra.mxu0 %v374
  %553 = vmatprep.subr.mxu0 0.0
  %554 = vmatpush1.msra.mxu0 %v375
  %555 = vmatprep.subr.mxu0 0.0
  %556 = vmatpush1.msra.mxu0 %v376
  %557 = vmatprep.subr.mxu0 0.0
  %558 = vmatpush1.msra.mxu0 %v377
  %559 = vmatprep.subr.mxu0 0.0
  %560 = vmatpush1.msra.mxu0 %v378
  %561 = vmatprep.subr.mxu0 0.0
  %562 = vmatpush1.msra.mxu0 %v379
  %563 = vmatprep.mubr.f32.mxu0 %v219
  %564 = vmatmul.mubr.f32.gmra.mrb[0].mxu0 %v203
  %v565 = vpop.f32.mrb[0].mxu0
  %v566 = vadd.f32 %v497, %v565
  %v567 = vpop.f32.mrb[0].mxu0
  %568 = vmatprep.mubr.f32.mxu0 %v220
  %569 = vmatmul.mubr.f32.gmra.mrb[0].mxu0 %v204
  %v570 = vpop.f32.mrb[0].mxu0
  %v571 = vadd.f32 %v497, %v570
  %v572 = vpop.f32.mrb[0].mxu0
  %573 = vmatprep.mubr.f32.mxu0 %v221
  %574 = vmatmul.mubr.f32.gmra.mrb[0].mxu0 %v205
  %v575 = vpop.f32.mrb[0].mxu0
  %v576 = vadd.f32 %v497, %v575
  %v577 = vpop.f32.mrb[0].mxu0
  %578 = vmatprep.mubr.f32.mxu0 %v222
  %579 = vmatmul.mubr.f32.gmra.mrb[0].mxu0 %v206
  %v580 = vpop.f32.mrb[0].mxu0
  %v581 = vadd.f32 %v497, %v580
  %v582 = vpop.f32.mrb[0].mxu0
  %583 = vmatprep.mubr.f32.mxu0 %v223
  %584 = vmatmul.mubr.f32.gmra.mrb[0].mxu0 %v207
  %v585 = vpop.f32.mrb[0].mxu0
  %v586 = vadd.f32 %v497, %v585
  %v587 = vpop.f32.mrb[0].mxu0
  %588 = vmatprep.mubr.f32.mxu0 %v224
  %589 = vmatmul.mubr.f32.gmra.mrb[0].mxu0 %v208
  %v590 = vpop.f32.mrb[0].mxu0
  %v591 = vadd.f32 %v497, %v590
  %v592 = vpop.f32.mrb[0].mxu0
  %593 = vmatprep.mubr.f32.mxu0 %v225
  %594 = vmatmul.mubr.f32.gmra.mrb[0].mxu0 %v209
  %v595 = vpop.f32.mrb[0].mxu0
  %v596 = vadd.f32 %v497, %v595
  %v597 = vpop.f32.mrb[0].mxu0
  %598 = vmatprep.mubr.f32.mxu0 %v226
  %599 = vmatmul.mubr.f32.gmra.mrb[0].mxu0 %v210
  %v600 = vpop.f32.mrb[0].mxu0
  %v601 = vadd.f32 %v497, %v600
  %v602 = vpop.f32.mrb[0].mxu0
  %603 = vmatprep.mubr.f32.mxu0 %v227
  %604 = vmatmul.mubr.f32.gmra.mrb[0].mxu0 %v211
  %v605 = vpop.f32.mrb[0].mxu0
  %v606 = vadd.f32 %v497, %v605
  %v607 = vpop.f32.mrb[0].mxu0
  %608 = vmatprep.mubr.f32.mxu0 %v228
  %609 = vmatmul.mubr.f32.gmra.mrb[0].mxu0 %v212
  %v610 = vpop.f32.mrb[0].mxu0
  %v611 = vadd.f32 %v497, %v610
  %v612 = vpop.f32.mrb[0].mxu0
  %613 = vmatprep.mubr.f32.mxu0 %v229
  %614 = vmatmul.mubr.f32.gmra.mrb[0].mxu0 %v213
  %v615 = vpop.f32.mrb[0].mxu0
  %v616 = vadd.f32 %v497, %v615
  %v617 = vpop.f32.mrb[0].mxu0
  %618 = vmatprep.mubr.f32.mxu0 %v230
  %619 = vmatmul.mubr.f32.gmra.mrb[0].mxu0 %v214
  %v620 = vpop.f32.mrb[0].mxu0
  %v621 = vadd.f32 %v497, %v620
  %v622 = vpop.f32.mrb[0].mxu0
  %623 = vmatprep.mubr.f32.mxu0 %v231
  %624 = vmatmul.mubr.f32.gmra.mrb[0].mxu0 %v215
  %v625 = vpop.f32.mrb[0].mxu0
  %v626 = vadd.f32 %v497, %v625
  %v627 = vpop.f32.mrb[0].mxu0
  %628 = vmatprep.mubr.f32.mxu0 %v232
  %629 = vmatmul.mubr.f32.gmra.mrb[0].mxu0 %v216
  %v630 = vpop.f32.mrb[0].mxu0
  %v631 = vadd.f32 %v497, %v630
  %v632 = vpop.f32.mrb[0].mxu0
  %633 = vmatprep.mubr.f32.mxu0 %v233
  %634 = vmatmul.mubr.f32.gmra.mrb[0].mxu0 %v217
  %v635 = vpop.f32.mrb[0].mxu0
  %v636 = vadd.f32 %v497, %v635
  %v637 = vpop.f32.mrb[0].mxu0
  %638 = vmatprep.mubr.f32.mxu0 %v234
  %639 = vmatmul.mubr.f32.gmra.mrb[0].mxu0 %v218
  %v640 = vpop.f32.mrb[0].mxu0
  %v641 = vadd.f32 %v497, %v640
  %v642 = vpop.f32.mrb[0].mxu0
  %643 = vdwg.mxu0
  %644 = vmatprep.subr.mxu0 0.0
  %645 = vmatpush1.msra.mxu0 %v380
  %646 = vmatprep.subr.mxu0 0.0
  %647 = vmatpush1.msra.mxu0 %v381
  %648 = vmatprep.subr.mxu0 0.0
  %649 = vmatpush1.msra.mxu0 %v382
  %650 = vmatprep.subr.mxu0 0.0
  %651 = vmatpush1.msra.mxu0 %v383
  %652 = vmatprep.subr.mxu0 0.0
  %653 = vmatpush1.msra.mxu0 %v384
  %654 = vmatprep.subr.mxu0 0.0
  %655 = vmatpush1.msra.mxu0 %v385
  %656 = vmatprep.subr.mxu0 0.0
  %657 = vmatpush1.msra.mxu0 %v386
  %658 = vmatprep.subr.mxu0 0.0
  %659 = vmatpush1.msra.mxu0 %v387
  %660 = vmatprep.subr.mxu0 0.0
  %661 = vmatpush1.msra.mxu0 %v388
  %662 = vmatprep.subr.mxu0 0.0
  %663 = vmatpush1.msra.mxu0 %v389
  %664 = vmatprep.subr.mxu0 0.0
  %665 = vmatpush1.msra.mxu0 %v390
  %666 = vmatprep.subr.mxu0 0.0
  %667 = vmatpush1.msra.mxu0 %v391
  %668 = vmatprep.subr.mxu0 0.0
  %669 = vmatpush1.msra.mxu0 %v392
  %670 = vmatprep.subr.mxu0 0.0
  %671 = vmatpush1.msra.mxu0 %v393
  %672 = vmatprep.subr.mxu0 0.0
  %673 = vmatpush1.msra.mxu0 %v394
  %674 = vmatprep.subr.mxu0 0.0
  %675 = vmatpush1.msra.mxu0 %v395
  %676 = vmatprep.subr.mxu0 0.0
  %677 = vmatpush1.msra.mxu0 %v396
  %678 = vmatprep.subr.mxu0 0.0
  %679 = vmatpush1.msra.mxu0 %v397
  %680 = vmatprep.subr.mxu0 0.0
  %681 = vmatpush1.msra.mxu0 %v398
  %682 = vmatprep.subr.mxu0 0.0
  %683 = vmatpush1.msra.mxu0 %v399
  %684 = vmatprep.subr.mxu0 0.0
  %685 = vmatpush1.msra.mxu0 %v400
  %686 = vmatprep.subr.mxu0 0.0
  %687 = vmatpush1.msra.mxu0 %v401
  %688 = vmatprep.subr.mxu0 0.0
  %689 = vmatpush1.msra.mxu0 %v402
  %690 = vmatprep.subr.mxu0 0.0
  %691 = vmatpush1.msra.mxu0 %v403
  %692 = vmatprep.subr.mxu0 0.0
  %693 = vmatpush1.msra.mxu0 %v404
  %694 = vmatprep.subr.mxu0 0.0
  %695 = vmatpush1.msra.mxu0 %v405
  %696 = vmatprep.subr.mxu0 0.0
  %697 = vmatpush1.msra.mxu0 %v406
  %698 = vmatprep.subr.mxu0 0.0
  %699 = vmatpush1.msra.mxu0 %v407
  %700 = vmatprep.subr.mxu0 0.0
  %701 = vmatpush1.msra.mxu0 %v408
  %702 = vmatprep.subr.mxu0 0.0
  %703 = vmatpush1.msra.mxu0 %v409
  %704 = vmatprep.subr.mxu0 0.0
  %705 = vmatpush1.msra.mxu0 %v410
  %706 = vmatprep.subr.mxu0 0.0
  %707 = vmatpush1.msra.mxu0 %v411
  %708 = vmatprep.mubr.f32.mxu0 %v251
  %709 = vmatmul.mubr.f32.gmra.mrb[0].mxu0 %v235
  %v710 = vpop.f32.mrb[0].mxu0
  %v711 = vadd.f32 %v566, %v710
  %v712 = vpop.f32.mrb[0].mxu0
  %713 = vmatprep.mubr.f32.mxu0 %v252
  %714 = vmatmul.mubr.f32.gmra.mrb[0].mxu0 %v236
  %v715 = vpop.f32.mrb[0].mxu0
  %v716 = vadd.f32 %v571, %v715
  %v717 = vpop.f32.mrb[0].mxu0
  %718 = vmatprep.mubr.f32.mxu0 %v253
  %719 = vmatmul.mubr.f32.gmra.mrb[0].mxu0 %v237
  %v720 = vpop.f32.mrb[0].mxu0
  %v721 = vadd.f32 %v576, %v720
  %v722 = vpop.f32.mrb[0].mxu0
  %723 = vmatprep.mubr.f32.mxu0 %v254
  %724 = vmatmul.mubr.f32.gmra.mrb[0].mxu0 %v238
  %v725 = vpop.f32.mrb[0].mxu0
  %v726 = vadd.f32 %v581, %v725
  %v727 = vpop.f32.mrb[0].mxu0
  %728 = vmatprep.mubr.f32.mxu0 %v255
  %729 = vmatmul.mubr.f32.gmra.mrb[0].mxu0 %v239
  %v730 = vpop.f32.mrb[0].mxu0
  %v731 = vadd.f32 %v586, %v730
  %v732 = vpop.f32.mrb[0].mxu0
  %733 = vmatprep.mubr.f32.mxu0 %v256
  %734 = vmatmul.mubr.f32.gmra.mrb[0].mxu0 %v240
  %v735 = vpop.f32.mrb[0].mxu0
  %v736 = vadd.f32 %v591, %v735
  %v737 = vpop.f32.mrb[0].mxu0
  %738 = vmatprep.mubr.f32.mxu0 %v257
  %739 = vmatmul.mubr.f32.gmra.mrb[0].mxu0 %v241
  %v740 = vpop.f32.mrb[0].mxu0
  %v741 = vadd.f32 %v596, %v740
  %v742 = vpop.f32.mrb[0].mxu0
  %743 = vmatprep.mubr.f32.mxu0 %v258
  %744 = vmatmul.mubr.f32.gmra.mrb[0].mxu0 %v242
  %v745 = vpop.f32.mrb[0].mxu0
  %v746 = vadd.f32 %v601, %v745
  %v747 = vpop.f32.mrb[0].mxu0
  %748 = vmatprep.mubr.f32.mxu0 %v259
  %749 = vmatmul.mubr.f32.gmra.mrb[0].mxu0 %v243
  %v750 = vpop.f32.mrb[0].mxu0
  %v751 = vadd.f32 %v606, %v750
  %v752 = vpop.f32.mrb[0].mxu0
  %753 = vmatprep.mubr.f32.mxu0 %v260
  %754 = vmatmul.mubr.f32.gmra.mrb[0].mxu0 %v244
  %v755 = vpop.f32.mrb[0].mxu0
  %v756 = vadd.f32 %v611, %v755
  %v757 = vpop.f32.mrb[0].mxu0
  %758 = vmatprep.mubr.f32.mxu0 %v261
  %759 = vmatmul.mubr.f32.gmra.mrb[0].mxu0 %v245
  %v760 = vpop.f32.mrb[0].mxu0
  %v761 = vadd.f32 %v616, %v760
  %v762 = vpop.f32.mrb[0].mxu0
  %763 = vmatprep.mubr.f32.mxu0 %v262
  %764 = vmatmul.mubr.f32.gmra.mrb[0].mxu0 %v246
  %v765 = vpop.f32.mrb[0].mxu0
  %v766 = vadd.f32 %v621, %v765
  %v767 = vpop.f32.mrb[0].mxu0
  %768 = vmatprep.mubr.f32.mxu0 %v263
  %769 = vmatmul.mubr.f32.gmra.mrb[0].mxu0 %v247
  %v770 = vpop.f32.mrb[0].mxu0
  %v771 = vadd.f32 %v626, %v770
  %v772 = vpop.f32.mrb[0].mxu0
  %773 = vmatprep.mubr.f32.mxu0 %v264
  %774 = vmatmul.mubr.f32.gmra.mrb[0].mxu0 %v248
  %v775 = vpop.f32.mrb[0].mxu0
  %v776 = vadd.f32 %v631, %v775
  %v777 = vpop.f32.mrb[0].mxu0
  %778 = vmatprep.mubr.f32.mxu0 %v265
  %779 = vmatmul.mubr.f32.gmra.mrb[0].mxu0 %v249
  %v780 = vpop.f32.mrb[0].mxu0
  %v781 = vadd.f32 %v636, %v780
  %v782 = vpop.f32.mrb[0].mxu0
  %783 = vmatprep.mubr.f32.mxu0 %v266
  %784 = vmatmul.mubr.f32.gmra.mrb[0].mxu0 %v250
  %v785 = vpop.f32.mrb[0].mxu0
  %v786 = vadd.f32 %v641, %v785
  %v787 = vpop.f32.mrb[0].mxu0
  %788 = vdwg.mxu0
  %789 = vmatprep.subr.mxu0 0.0
  %790 = vmatpush1.msra.mxu0 %v412
  %791 = vmatprep.subr.mxu0 0.0
  %792 = vmatpush1.msra.mxu0 %v413
  %793 = vmatprep.subr.mxu0 0.0
  %794 = vmatpush1.msra.mxu0 %v414
  %795 = vmatprep.subr.mxu0 0.0
  %796 = vmatpush1.msra.mxu0 %v415
  %797 = vmatprep.subr.mxu0 0.0
  %798 = vmatpush1.msra.mxu0 %v416
  %799 = vmatprep.subr.mxu0 0.0
  %800 = vmatpush1.msra.mxu0 %v417
  %801 = vmatprep.subr.mxu0 0.0
  %802 = vmatpush1.msra.mxu0 %v418
  %803 = vmatprep.subr.mxu0 0.0
  %804 = vmatpush1.msra.mxu0 %v419
  %805 = vmatprep.subr.mxu0 0.0
  %806 = vmatpush1.msra.mxu0 %v420
  %807 = vmatprep.subr.mxu0 0.0
  %808 = vmatpush1.msra.mxu0 %v421
  %809 = vmatprep.subr.mxu0 0.0
  %810 = vmatpush1.msra.mxu0 %v422
  %811 = vmatprep.subr.mxu0 0.0
  %812 = vmatpush1.msra.mxu0 %v423
  %813 = vmatprep.subr.mxu0 0.0
  %814 = vmatpush1.msra.mxu0 %v424
  %815 = vmatprep.subr.mxu0 0.0
  %816 = vmatpush1.msra.mxu0 %v425
  %817 = vmatprep.subr.mxu0 0.0
  %818 = vmatpush1.msra.mxu0 %v426
  %819 = vmatprep.subr.mxu0 0.0
  %820 = vmatpush1.msra.mxu0 %v427
  %821 = vmatprep.subr.mxu0 0.0
  %822 = vmatpush1.msra.mxu0 %v428
  %823 = vmatprep.subr.mxu0 0.0
  %824 = vmatpush1.msra.mxu0 %v429
  %825 = vmatprep.subr.mxu0 0.0
  %826 = vmatpush1.msra.mxu0 %v430
  %827 = vmatprep.subr.mxu0 0.0
  %828 = vmatpush1.msra.mxu0 %v431
  %829 = vmatprep.subr.mxu0 0.0
  %830 = vmatpush1.msra.mxu0 %v432
  %831 = vmatprep.subr.mxu0 0.0
  %832 = vmatpush1.msra.mxu0 %v433
  %833 = vmatprep.subr.mxu0 0.0
  %834 = vmatpush1.msra.mxu0 %v434
  %835 = vmatprep.subr.mxu0 0.0
  %836 = vmatpush1.msra.mxu0 %v435
  %837 = vmatprep.subr.mxu0 0.0
  %838 = vmatpush1.msra.mxu0 %v436
  %839 = vmatprep.subr.mxu0 0.0
  %840 = vmatpush1.msra.mxu0 %v437
  %841 = vmatprep.subr.mxu0 0.0
  %842 = vmatpush1.msra.mxu0 %v438
  %843 = vmatprep.subr.mxu0 0.0
  %844 = vmatpush1.msra.mxu0 %v439
  %845 = vmatprep.subr.mxu0 0.0
  %846 = vmatpush1.msra.mxu0 %v440
  %847 = vmatprep.subr.mxu0 0.0
  %848 = vmatpush1.msra.mxu0 %v441
  %849 = vmatprep.subr.mxu0 0.0
  %850 = vmatpush1.msra.mxu0 %v442
  %851 = vmatprep.subr.mxu0 0.0
  %852 = vmatpush1.msra.mxu0 %v443
  %853 = vmatprep.mubr.f32.mxu0 %v283
  %854 = vmatmul.mubr.f32.gmra.mrb[0].mxu0 %v267
  %v855 = vpop.f32.mrb[0].mxu0
  %v856 = vadd.f32 %v711, %v855
  %v857 = vpop.f32.mrb[0].mxu0
  %858 = vmatprep.mubr.f32.mxu0 %v284
  %859 = vmatmul.mubr.f32.gmra.mrb[0].mxu0 %v268
  %v860 = vpop.f32.mrb[0].mxu0
  %v861 = vadd.f32 %v716, %v860
  %v862 = vpop.f32.mrb[0].mxu0
  %863 = vmatprep.mubr.f32.mxu0 %v285
  %864 = vmatmul.mubr.f32.gmra.mrb[0].mxu0 %v269
  %v865 = vpop.f32.mrb[0].mxu0
  %v866 = vadd.f32 %v721, %v865
  %v867 = vpop.f32.mrb[0].mxu0
  %868 = vmatprep.mubr.f32.mxu0 %v286
  %869 = vmatmul.mubr.f32.gmra.mrb[0].mxu0 %v270
  %v870 = vpop.f32.mrb[0].mxu0
  %v871 = vadd.f32 %v726, %v870
  %v872 = vpop.f32.mrb[0].mxu0
  %873 = vmatprep.mubr.f32.mxu0 %v287
  %874 = vmatmul.mubr.f32.gmra.mrb[0].mxu0 %v271
  %v875 = vpop.f32.mrb[0].mxu0
  %v876 = vadd.f32 %v731, %v875
  %v877 = vpop.f32.mrb[0].mxu0
  %878 = vmatprep.mubr.f32.mxu0 %v288
  %879 = vmatmul.mubr.f32.gmra.mrb[0].mxu0 %v272
  %v880 = vpop.f32.mrb[0].mxu0
  %v881 = vadd.f32 %v736, %v880
  %v882 = vpop.f32.mrb[0].mxu0
  %883 = vmatprep.mubr.f32.mxu0 %v289
  %884 = vmatmul.mubr.f32.gmra.mrb[0].mxu0 %v273
  %v885 = vpop.f32.mrb[0].mxu0
  %v886 = vadd.f32 %v741, %v885
  %v887 = vpop.f32.mrb[0].mxu0
  %888 = vmatprep.mubr.f32.mxu0 %v290
  %889 = vmatmul.mubr.f32.gmra.mrb[0].mxu0 %v274
  %v890 = vpop.f32.mrb[0].mxu0
  %v891 = vadd.f32 %v746, %v890
  %v892 = vpop.f32.mrb[0].mxu0
  %893 = vmatprep.mubr.f32.mxu0 %v291
  %894 = vmatmul.mubr.f32.gmra.mrb[0].mxu0 %v275
  %v895 = vpop.f32.mrb[0].mxu0
  %v896 = vadd.f32 %v751, %v895
  %v897 = vpop.f32.mrb[0].mxu0
  %898 = vmatprep.mubr.f32.mxu0 %v292
  %899 = vmatmul.mubr.f32.gmra.mrb[0].mxu0 %v276
  %v900 = vpop.f32.mrb[0].mxu0
  %v901 = vadd.f32 %v756, %v900
  %v902 = vpop.f32.mrb[0].mxu0
  %903 = vmatprep.mubr.f32.mxu0 %v293
  %904 = vmatmul.mubr.f32.gmra.mrb[0].mxu0 %v277
  %v905 = vpop.f32.mrb[0].mxu0
  %v906 = vadd.f32 %v761, %v905
  %v907 = vpop.f32.mrb[0].mxu0
  %908 = vmatprep.mubr.f32.mxu0 %v294
  %909 = vmatmul.mubr.f32.gmra.mrb[0].mxu0 %v278
  %v910 = vpop.f32.mrb[0].mxu0
  %v911 = vadd.f32 %v766, %v910
  %v912 = vpop.f32.mrb[0].mxu0
  %913 = vmatprep.mubr.f32.mxu0 %v295
  %914 = vmatmul.mubr.f32.gmra.mrb[0].mxu0 %v279
  %v915 = vpop.f32.mrb[0].mxu0
  %v916 = vadd.f32 %v771, %v915
  %v917 = vpop.f32.mrb[0].mxu0
  %918 = vmatprep.mubr.f32.mxu0 %v296
  %919 = vmatmul.mubr.f32.gmra.mrb[0].mxu0 %v280
  %v920 = vpop.f32.mrb[0].mxu0
  %v921 = vadd.f32 %v776, %v920
  %v922 = vpop.f32.mrb[0].mxu0
  %923 = vmatprep.mubr.f32.mxu0 %v297
  %924 = vmatmul.mubr.f32.gmra.mrb[0].mxu0 %v281
  %v925 = vpop.f32.mrb[0].mxu0
  %v926 = vadd.f32 %v781, %v925
  %v927 = vpop.f32.mrb[0].mxu0
  %928 = vmatprep.mubr.f32.mxu0 %v298
  %929 = vmatmul.mubr.f32.gmra.mrb[0].mxu0 %v282
  %v930 = vpop.f32.mrb[0].mxu0
  %v931 = vadd.f32 %v786, %v930
  %v932 = vpop.f32.mrb[0].mxu0
  %933 = vdwg.mxu0
  %934 = vmatprep.subr.mxu0 0.0
  %935 = vmatpush1.msra.mxu0 %v444
  %936 = vmatprep.subr.mxu0 0.0
  %937 = vmatpush1.msra.mxu0 %v445
  %938 = vmatprep.subr.mxu0 0.0
  %939 = vmatpush1.msra.mxu0 %v446
  %940 = vmatprep.subr.mxu0 0.0
  %941 = vmatpush1.msra.mxu0 %v447
  %942 = vmatprep.subr.mxu0 0.0
  %943 = vmatpush1.msra.mxu0 %v448
  %944 = vmatprep.subr.mxu0 0.0
  %945 = vmatpush1.msra.mxu0 %v449
  %946 = vmatprep.subr.mxu0 0.0
  %947 = vmatpush1.msra.mxu0 %v450
  %948 = vmatprep.subr.mxu0 0.0
  %949 = vmatpush1.msra.mxu0 %v451
  %950 = vmatprep.subr.mxu0 0.0
  %951 = vmatpush1.msra.mxu0 %v452
  %952 = vmatprep.subr.mxu0 0.0
  %953 = vmatpush1.msra.mxu0 %v453
  %954 = vmatprep.subr.mxu0 0.0
  %955 = vmatpush1.msra.mxu0 %v454
  %956 = vmatprep.subr.mxu0 0.0
  %957 = vmatpush1.msra.mxu0 %v455
  %958 = vmatprep.subr.mxu0 0.0
  %959 = vmatpush1.msra.mxu0 %v456
  %960 = vmatprep.subr.mxu0 0.0
  %961 = vmatpush1.msra.mxu0 %v457
  %962 = vmatprep.subr.mxu0 0.0
  %963 = vmatpush1.msra.mxu0 %v458
  %964 = vmatprep.subr.mxu0 0.0
  %965 = vmatpush1.msra.mxu0 %v459
  %966 = vmatprep.subr.mxu0 0.0
  %967 = vmatpush1.msra.mxu0 %v460
  %968 = vmatprep.subr.mxu0 0.0
  %969 = vmatpush1.msra.mxu0 %v461
  %970 = vmatprep.subr.mxu0 0.0
  %971 = vmatpush1.msra.mxu0 %v462
  %972 = vmatprep.subr.mxu0 0.0
  %973 = vmatpush1.msra.mxu0 %v463
  %974 = vmatprep.subr.mxu0 0.0
  %975 = vmatpush1.msra.mxu0 %v464
  %976 = vmatprep.subr.mxu0 0.0
  %977 = vmatpush1.msra.mxu0 %v465
  %978 = vmatprep.subr.mxu0 0.0
  %979 = vmatpush1.msra.mxu0 %v466
  %980 = vmatprep.subr.mxu0 0.0
  %981 = vmatpush1.msra.mxu0 %v467
  %982 = vmatprep.subr.mxu0 0.0
  %983 = vmatpush1.msra.mxu0 %v468
  %984 = vmatprep.subr.mxu0 0.0
  %985 = vmatpush1.msra.mxu0 %v469
  %986 = vmatprep.subr.mxu0 0.0
  %987 = vmatpush1.msra.mxu0 %v470
  %988 = vmatprep.subr.mxu0 0.0
  %989 = vmatpush1.msra.mxu0 %v471
  %990 = vmatprep.subr.mxu0 0.0
  %991 = vmatpush1.msra.mxu0 %v472
  %992 = vmatprep.subr.mxu0 0.0
  %993 = vmatpush1.msra.mxu0 %v473
  %994 = vmatprep.subr.mxu0 0.0
  %995 = vmatpush1.msra.mxu0 %v474
  %996 = vmatprep.subr.mxu0 0.0
  %997 = vmatpush1.msra.mxu0 %v475
  %998 = vmatprep.mubr.f32.mxu0 %v316
  %999 = vmatmul.mubr.f32.gmra.mrb[0].mxu0 %v300
  %v1000 = vpop.f32.mrb[0].mxu0
  %v1001 = vadd.f32 %v856, %v1000
  %v1002 = vpop.f32.mrb[0].mxu0
  %1003 = vmatprep.mubr.f32.mxu0 %v317
  %1004 = vmatmul.mubr.f32.gmra.mrb[0].mxu0 %v301
  %v1005 = vpop.f32.mrb[0].mxu0
  %v1006 = vadd.f32 %v861, %v1005
  %v1007 = vpop.f32.mrb[0].mxu0
  %1008 = vmatprep.mubr.f32.mxu0 %v318
  %1009 = vmatmul.mubr.f32.gmra.mrb[0].mxu0 %v302
  %v1010 = vpop.f32.mrb[0].mxu0
  %v1011 = vadd.f32 %v866, %v1010
  %v1012 = vpop.f32.mrb[0].mxu0
  %1013 = vmatprep.mubr.f32.mxu0 %v319
  %1014 = vmatmul.mubr.f32.gmra.mrb[0].mxu0 %v303
  %v1015 = vpop.f32.mrb[0].mxu0
  %v1016 = vadd.f32 %v871, %v1015
  %v1017 = vpop.f32.mrb[0].mxu0
  %1018 = vmatprep.mubr.f32.mxu0 %v320
  %1019 = vmatmul.mubr.f32.gmra.mrb[0].mxu0 %v304
  %v1020 = vpop.f32.mrb[0].mxu0
  %v1021 = vadd.f32 %v876, %v1020
  %v1022 = vpop.f32.mrb[0].mxu0
  %1023 = vmatprep.mubr.f32.mxu0 %v321
  %1024 = vmatmul.mubr.f32.gmra.mrb[0].mxu0 %v305
  %v1025 = vpop.f32.mrb[0].mxu0
  %v1026 = vadd.f32 %v881, %v1025
  %v1027 = vpop.f32.mrb[0].mxu0
  %1028 = vmatprep.mubr.f32.mxu0 %v322
  %1029 = vmatmul.mubr.f32.gmra.mrb[0].mxu0 %v306
  %v1030 = vpop.f32.mrb[0].mxu0
  %v1031 = vadd.f32 %v886, %v1030
  %v1032 = vpop.f32.mrb[0].mxu0
  %1033 = vmatprep.mubr.f32.mxu0 %v323
  %1034 = vmatmul.mubr.f32.gmra.mrb[0].mxu0 %v307
  %v1035 = vpop.f32.mrb[0].mxu0
  %v1036 = vadd.f32 %v891, %v1035
  %v1037 = vpop.f32.mrb[0].mxu0
  %1038 = vmatprep.mubr.f32.mxu0 %v324
  %1039 = vmatmul.mubr.f32.gmra.mrb[0].mxu0 %v308
  %v1040 = vpop.f32.mrb[0].mxu0
  %v1041 = vadd.f32 %v896, %v1040
  %v1042 = vpop.f32.mrb[0].mxu0
  %1043 = vmatprep.mubr.f32.mxu0 %v325
  %1044 = vmatmul.mubr.f32.gmra.mrb[0].mxu0 %v309
  %v1045 = vpop.f32.mrb[0].mxu0
  %v1046 = vadd.f32 %v901, %v1045
  %v1047 = vpop.f32.mrb[0].mxu0
  %1048 = vmatprep.mubr.f32.mxu0 %v326
  %1049 = vmatmul.mubr.f32.gmra.mrb[0].mxu0 %v310
  %v1050 = vpop.f32.mrb[0].mxu0
  %v1051 = vadd.f32 %v906, %v1050
  %v1052 = vpop.f32.mrb[0].mxu0
  %1053 = vmatprep.mubr.f32.mxu0 %v327
  %1054 = vmatmul.mubr.f32.gmra.mrb[0].mxu0 %v311
  %v1055 = vpop.f32.mrb[0].mxu0
  %v1056 = vadd.f32 %v911, %v1055
  %v1057 = vpop.f32.mrb[0].mxu0
  %1058 = vmatprep.mubr.f32.mxu0 %v328
  %1059 = vmatmul.mubr.f32.gmra.mrb[0].mxu0 %v312
  %v1060 = vpop.f32.mrb[0].mxu0
  %v1061 = vadd.f32 %v916, %v1060
  %v1062 = vpop.f32.mrb[0].mxu0
  %1063 = vmatprep.mubr.f32.mxu0 %v329
  %1064 = vmatmul.mubr.f32.gmra.mrb[0].mxu0 %v313
  %v1065 = vpop.f32.mrb[0].mxu0
  %v1066 = vadd.f32 %v921, %v1065
  %v1067 = vpop.f32.mrb[0].mxu0
  %1068 = vmatprep.mubr.f32.mxu0 %v330
  %1069 = vmatmul.mubr.f32.gmra.mrb[0].mxu0 %v314
  %v1070 = vpop.f32.mrb[0].mxu0
  %v1071 = vadd.f32 %v926, %v1070
  %v1072 = vpop.f32.mrb[0].mxu0
  %1073 = vmatprep.mubr.f32.mxu0 %v331
  %1074 = vmatmul.mubr.f32.gmra.mrb[0].mxu0 %v315
  %v1075 = vpop.f32.mrb[0].mxu0
  %v1076 = vadd.f32 %v931, %v1075
  %v1077 = vpop.f32.mrb[0].mxu0
  %1078 = vdwg.mxu0
  %1079 = vmatprep.subr.mxu0 0.0
  %1080 = vmatpush1.msra.mxu0 %v476
  %1081 = vmatprep.subr.mxu0 0.0
  %1082 = vmatpush1.msra.mxu0 %v477
  %1083 = vmatprep.subr.mxu0 0.0
  %1084 = vmatpush1.msra.mxu0 %v478
  %1085 = vmatprep.subr.mxu0 0.0
  %1086 = vmatpush1.msra.mxu0 %v479
  %1087 = vmatprep.subr.mxu0 0.0
  %1088 = vmatpush1.msra.mxu0 %v480
  %1089 = vmatprep.subr.mxu0 0.0
  %1090 = vmatpush1.msra.mxu0 %v481
  %1091 = vmatprep.subr.mxu0 0.0
  %1092 = vmatpush1.msra.mxu0 %v482
  %1093 = vmatprep.subr.mxu0 0.0
  %1094 = vmatpush1.msra.mxu0 %v483
  %1095 = vmatprep.subr.mxu0 0.0
  %1096 = vmatpush1.msra.mxu0 %v484
  %1097 = vmatprep.subr.mxu0 0.0
  %1098 = vmatpush1.msra.mxu0 %v485
  %1099 = vmatprep.subr.mxu0 0.0
  %1100 = vmatpush1.msra.mxu0 %v486
  %1101 = vmatprep.subr.mxu0 0.0
  %1102 = vmatpush1.msra.mxu0 %v487
  %1103 = vmatprep.subr.mxu0 0.0
  %1104 = vmatpush1.msra.mxu0 %v488
  %1105 = vmatprep.subr.mxu0 0.0
  %1106 = vmatpush1.msra.mxu0 %v489
  %1107 = vmatprep.subr.mxu0 0.0
  %1108 = vmatpush1.msra.mxu0 %v490
  %1109 = vmatprep.subr.mxu0 0.0
  %1110 = vmatpush1.msra.mxu0 %v491
  %1111 = vmatprep.subr.mxu0 0.0
  %1112 = vmatpush1.msra.mxu0 0.0
  %1113 = vmatprep.subr.mxu0 0.0
  %1114 = vmatpush1.msra.mxu0 0.0
  %1115 = vmatprep.subr.mxu0 0.0
  %1116 = vmatpush1.msra.mxu0 0.0
  %1117 = vmatprep.subr.mxu0 0.0
  %1118 = vmatpush1.msra.mxu0 0.0
  %1119 = vmatprep.subr.mxu0 0.0
  %1120 = vmatpush1.msra.mxu0 0.0
  %1121 = vmatprep.subr.mxu0 0.0
  %1122 = vmatpush1.msra.mxu0 0.0
  %1123 = vmatprep.subr.mxu0 0.0
  %1124 = vmatpush1.msra.mxu0 0.0
  %1125 = vmatprep.subr.mxu0 0.0
  %1126 = vmatpush1.msra.mxu0 0.0
  %1127 = vmatprep.subr.mxu0 0.0
  %1128 = vmatpush1.msra.mxu0 0.0
  %1129 = vmatprep.subr.mxu0 0.0
  %1130 = vmatpush1.msra.mxu0 0.0
  %1131 = vmatprep.subr.mxu0 0.0
  %1132 = vmatpush1.msra.mxu0 0.0
  %1133 = vmatprep.subr.mxu0 0.0
  %1134 = vmatpush1.msra.mxu0 0.0
  %1135 = vmatprep.subr.mxu0 0.0
  %1136 = vmatpush1.msra.mxu0 0.0
  %1137 = vmatprep.subr.mxu0 0.0
  %1138 = vmatpush1.msra.mxu0 0.0
  %1139 = vmatprep.subr.mxu0 0.0
  %1140 = vmatpush1.msra.mxu0 0.0
  %1141 = vmatprep.subr.mxu0 0.0
  %1142 = vmatpush1.msra.mxu0 0.0
  %1143 = vmatprep.mubr.f32.mxu0 0.0
  %1144 = vmatmul.mubr.f32.gmra.mrb[0].mxu0 %v332
  %v1145 = vpop.f32.mrb[0].mxu0
  %v1146 = vadd.f32 %v1001, %v1145
  %v1147 = vpop.f32.mrb[0].mxu0
  %1148 = vmatprep.mubr.f32.mxu0 0.0
  %1149 = vmatmul.mubr.f32.gmra.mrb[0].mxu0 %v333
  %v1150 = vpop.f32.mrb[0].mxu0
  %v1151 = vadd.f32 %v1006, %v1150
  %v1152 = vpop.f32.mrb[0].mxu0
  %1153 = vmatprep.mubr.f32.mxu0 0.0
  %1154 = vmatmul.mubr.f32.gmra.mrb[0].mxu0 %v334
  %v1155 = vpop.f32.mrb[0].mxu0
  %v1156 = vadd.f32 %v1011, %v1155
  %v1157 = vpop.f32.mrb[0].mxu0
  %1158 = vmatprep.mubr.f32.mxu0 0.0
  %1159 = vmatmul.mubr.f32.gmra.mrb[0].mxu0 %v335
  %v1160 = vpop.f32.mrb[0].mxu0
  %v1161 = vadd.f32 %v1016, %v1160
  %v1162 = vpop.f32.mrb[0].mxu0
  %1163 = vmatprep.mubr.f32.mxu0 0.0
  %1164 = vmatmul.mubr.f32.gmra.mrb[0].mxu0 %v336
  %v1165 = vpop.f32.mrb[0].mxu0
  %v1166 = vadd.f32 %v1021, %v1165
  %v1167 = vpop.f32.mrb[0].mxu0
  %1168 = vmatprep.mubr.f32.mxu0 0.0
  %1169 = vmatmul.mubr.f32.gmra.mrb[0].mxu0 %v337
  %v1170 = vpop.f32.mrb[0].mxu0
  %v1171 = vadd.f32 %v1026, %v1170
  %v1172 = vpop.f32.mrb[0].mxu0
  %1173 = vmatprep.mubr.f32.mxu0 0.0
  %1174 = vmatmul.mubr.f32.gmra.mrb[0].mxu0 %v338
  %v1175 = vpop.f32.mrb[0].mxu0
  %v1176 = vadd.f32 %v1031, %v1175
  %v1177 = vpop.f32.mrb[0].mxu0
  %1178 = vmatprep.mubr.f32.mxu0 0.0
  %1179 = vmatmul.mubr.f32.gmra.mrb[0].mxu0 %v339
  %v1180 = vpop.f32.mrb[0].mxu0
  %v1181 = vadd.f32 %v1036, %v1180
  %v1182 = vpop.f32.mrb[0].mxu0
  %1183 = vmatprep.mubr.f32.mxu0 0.0
  %1184 = vmatmul.mubr.f32.gmra.mrb[0].mxu0 %v340
  %v1185 = vpop.f32.mrb[0].mxu0
  %v1186 = vadd.f32 %v1041, %v1185
  %v1187 = vpop.f32.mrb[0].mxu0
  %1188 = vmatprep.mubr.f32.mxu0 0.0
  %1189 = vmatmul.mubr.f32.gmra.mrb[0].mxu0 %v341
  %v1190 = vpop.f32.mrb[0].mxu0
  %v1191 = vadd.f32 %v1046, %v1190
  %v1192 = vpop.f32.mrb[0].mxu0
  %1193 = vmatprep.mubr.f32.mxu0 0.0
  %1194 = vmatmul.mubr.f32.gmra.mrb[0].mxu0 %v342
  %v1195 = vpop.f32.mrb[0].mxu0
  %v1196 = vadd.f32 %v1051, %v1195
  %v1197 = vpop.f32.mrb[0].mxu0
  %1198 = vmatprep.mubr.f32.mxu0 0.0
  %1199 = vmatmul.mubr.f32.gmra.mrb[0].mxu0 %v343
  %v1200 = vpop.f32.mrb[0].mxu0
  %v1201 = vadd.f32 %v1056, %v1200
  %v1202 = vpop.f32.mrb[0].mxu0
  %1203 = vmatprep.mubr.f32.mxu0 0.0
  %1204 = vmatmul.mubr.f32.gmra.mrb[0].mxu0 %v344
  %v1205 = vpop.f32.mrb[0].mxu0
  %v1206 = vadd.f32 %v1061, %v1205
  %v1207 = vpop.f32.mrb[0].mxu0
  %1208 = vmatprep.mubr.f32.mxu0 0.0
  %1209 = vmatmul.mubr.f32.gmra.mrb[0].mxu0 %v345
  %v1210 = vpop.f32.mrb[0].mxu0
  %v1211 = vadd.f32 %v1066, %v1210
  %v1212 = vpop.f32.mrb[0].mxu0
  %1213 = vmatprep.mubr.f32.mxu0 0.0
  %1214 = vmatmul.mubr.f32.gmra.mrb[0].mxu0 %v346
  %v1215 = vpop.f32.mrb[0].mxu0
  %v1216 = vadd.f32 %v1071, %v1215
  %v1217 = vpop.f32.mrb[0].mxu0
  %1218 = vmatprep.mubr.f32.mxu0 0.0
  %1219 = vmatmul.mubr.f32.gmra.mrb[0].mxu0 %v347
  %v1220 = vpop.f32.mrb[0].mxu0
  %v1221 = vadd.f32 %v1076, %v1220
  %v1222 = vpop.f32.mrb[0].mxu0
  %1223 = vdwg.mxu0
  %v1224 = vadd.f32 %v1146, %v1151
  %v1225 = vadd.f32 %v1224, %v1156
  %v1226 = vadd.f32 %v1225, %v1161
  %v1227 = vadd.f32 %v1226, %v1166
  %v1228 = vadd.f32 %v1227, %v1171
  %v1229 = vadd.f32 %v1228, %v1176
  %v1230 = vadd.f32 %v1229, %v1181
  %v1231 = vadd.f32 %v1230, %v1186
  %v1232 = vadd.f32 %v1231, %v1191
  %v1233 = vadd.f32 %v1232, %v1196
  %v1234 = vadd.f32 %v1233, %v1201
  %v1235 = vadd.f32 %v1234, %v1206
  %v1236 = vadd.f32 %v1235, %v1211
  %v1237 = vadd.f32 %v1236, %v1216
  %v1238 = vadd.f32 %v1237, %v1221
  %v1239 = vrot.slane %v1238, 4
  %v1240 = vadd.f32 %v1238, %v1239
  %v1241 = vrot.slane %v1240, 2
  %v1242 = vadd.f32 %v1240, %v1241
  %v1243 = vrot.slane %v1242, 1
  %v1244 = vadd.f32 %v1242, %v1243
  %v1245 = vmul.f32 %v1146, %v1146
  %v1246 = vmul.f32 %v1151, %v1151
  %v1247 = vmul.f32 %v1156, %v1156
  %v1248 = vmul.f32 %v1161, %v1161
  %v1249 = vmul.f32 %v1166, %v1166
  %v1250 = vmul.f32 %v1171, %v1171
  %v1251 = vmul.f32 %v1176, %v1176
  %v1252 = vmul.f32 %v1181, %v1181
  %v1253 = vmul.f32 %v1186, %v1186
  %v1254 = vmul.f32 %v1191, %v1191
  %v1255 = vmul.f32 %v1196, %v1196
  %v1256 = vmul.f32 %v1201, %v1201
  %v1257 = vmul.f32 %v1206, %v1206
  %v1258 = vmul.f32 %v1211, %v1211
  %v1259 = vmul.f32 %v1216, %v1216
  %v1260 = vmul.f32 %v1221, %v1221
  %v1261 = vadd.f32 %v1245, %v1246
  %v1262 = vadd.f32 %v1261, %v1247
  %v1263 = vadd.f32 %v1262, %v1248
  %v1264 = vadd.f32 %v1263, %v1249
  %v1265 = vadd.f32 %v1264, %v1250
  %v1266 = vadd.f32 %v1265, %v1251
  %v1267 = vadd.f32 %v1266, %v1252
  %v1268 = vadd.f32 %v1267, %v1253
  %v1269 = vadd.f32 %v1268, %v1254
  %v1270 = vadd.f32 %v1269, %v1255
  %v1271 = vadd.f32 %v1270, %v1256
  %v1272 = vadd.f32 %v1271, %v1257
  %v1273 = vadd.f32 %v1272, %v1258
  %v1274 = vadd.f32 %v1273, %v1259
  %v1275 = vadd.f32 %v1274, %v1260
  %v1276 = vrot.slane %v1275, 4
  %v1277 = vadd.f32 %v1275, %v1276
  %v1278 = vrot.slane %v1277, 2
  %v1279 = vadd.f32 %v1277, %v1278
  %v1280 = vrot.slane %v1279, 1
  %v1281 = vadd.f32 %v1279, %v1280
  %vm1282 = vcmask 1040384
  %v1283 = vsel %vm1282, %v1244, %v1281
  %1284 = vst [vmem:[%s7] sm:$0x3] %v1283
  %1285 = vst [vmem:[%s6] sm:$0xff] %v1146
  %1286 = vst [vmem:[%s6 + $0x8] sm:$0xff] %v1151
  %1287 = vst [vmem:[%s6 + $0x10] sm:$0xff] %v1156
  %1288 = vst [vmem:[%s6 + $0x18] sm:$0xff] %v1161
  %1289 = vst [vmem:[%s6 + $0x20] sm:$0xff] %v1166
  %1290 = vst [vmem:[%s6 + $0x28] sm:$0xff] %v1171
  %1291 = vst [vmem:[%s6 + $0x30] sm:$0xff] %v1176
  %1292 = vst [vmem:[%s6 + $0x38] sm:$0xff] %v1181
  %1293 = vst [vmem:[%s6 + $0x40] sm:$0xff] %v1186
  %1294 = vst [vmem:[%s6 + $0x48] sm:$0xff] %v1191
  %1295 = vst [vmem:[%s6 + $0x50] sm:$0xff] %v1196
  %1296 = vst [vmem:[%s6 + $0x58] sm:$0xff] %v1201
  %1297 = vst [vmem:[%s6 + $0x60] sm:$0xff] %v1206
  %1298 = vst [vmem:[%s6 + $0x68] sm:$0xff] %v1211
  %1299 = vst [vmem:[%s6 + $0x70] sm:$0xff] %v1216
  %1300 = vst [vmem:[%s6 + $0x78] sm:$0xff] %v1221
  // Predicated region
  $region30: #{down_forward.3} parent=0 // pred_check
    _
  $region31: #{down_forward.3} parent=0 // pred_check_branch
    %1302 = sbr.rel (0) target = $region33
  $region32: #{down_forward.3} parent=0 // pred_region
    _
  $region33: #{down_forward.3} parent=0 // pred_fallthru
    _
  // Predicated region
  $region34: #{down_forward.3} parent=0 // pred_check
    _
  $region35: #{down_forward.3} parent=0 // pred_check_branch
    %1304 = sbr.rel (0) target = $region37
  $region36: #{down_forward.3} parent=0 // pred_region
    _
  $region37: #{down_forward.3} parent=0 // pred_fallthru
    _
  // Predicated region
  $region38: #{down_forward.3} parent=0 // pred_check
    _
  $region39: #{down_forward.3} parent=0 // pred_check_branch
    %1306 = sbr.rel (0) target = $region41
  $region40: #{down_forward.3} parent=0 // pred_region
    _
  $region41: #{down_forward.3} parent=0 // pred_fallthru
    _
  // Predicated region
  $region42: #{down_forward.3} parent=0 // pred_check
    _
  $region43: #{down_forward.3} parent=0 // pred_check_branch
    %1308 = sbr.rel (0) target = $region45
  $region44: #{down_forward.3} parent=0 // pred_region
    _
  $region45: #{down_forward.3} parent=0 // pred_fallthru
    _

// kernel: down_forward.2
$region0: #{down_forward.2}
  #allocation0 [shape = 'u32[]', space=smem, size = 0x4, offset = 0x4, fixed_abs, tag = 'smem constant byte address 0x4 - core index']
  #allocation1 [shape = 'u32[144,128]{1,0:T(1,128)}', space=vmem, size = 0x12000, scoped, tag = 'internal scratch']
  #allocation2 [shape = 'f32[2,10,10,128]{3,2,1,0:T(8,128)}', space=vmem, size = 0x28000, scoped, tag = 'scratch operand']
  %s0 = inlined_call_operand.vmem [shape: f32[2,8,2,8,256], index: 0, kind: input, shape index: {}]
  %s1 = inlined_call_operand.vmem [shape: f32[1152,128], index: 1, kind: input, shape index: {}]
  %s2 = inlined_call_operand.vmem [shape: f32[1,128], index: 2, kind: input, shape index: {}]
  %s3 = inlined_call_operand.vmem [shape: f32[2,8,8,128], index: 3, kind: output, shape index: {0}]
  %s4 = inlined_call_operand.vmem [shape: f32[1,2,128], index: 4, kind: output, shape index: {1}]
  %5 = xla_tuple %s3, %s4
  %s6 = sld [smem:[#allocation0]]
  $region34: #{down_forward.2} parent=0
    _
  %s8 = ssub.s32 1, %s6
  %s9 = scalar_select 0, %s8, %s6
  // Predicated region
  $region2: #{down_forward.2} parent=0 // pred_check
    _
  $region3: #{down_forward.2} parent=0 // pred_check_branch
    %11 = sbr.rel (0) target = $region5
  $region4: #{down_forward.2} parent=0 // pred_region
    _
  $region5: #{down_forward.2} parent=0 // pred_fallthru
    _
  // Predicated region
  $region6: #{down_forward.2} parent=0 // pred_check
    _
  $region7: #{down_forward.2} parent=0 // pred_check_branch
    %13 = sbr.rel (0) target = $region9
  $region8: #{down_forward.2} parent=0 // pred_region
    _
  $region9: #{down_forward.2} parent=0 // pred_fallthru
    _
  // Predicated region
  $region10: #{down_forward.2} parent=0 // pred_check
    _
  $region11: #{down_forward.2} parent=0 // pred_check_branch
    %15 = sbr.rel (0) target = $region13
  $region12: #{down_forward.2} parent=0 // pred_region
    _
  $region13: #{down_forward.2} parent=0 // pred_fallthru
    _
  %p16 = scmp.eq.s32.totalorder 0, 0
  // Predicated region
  $region14: #{down_forward.2} parent=0 // pred_check
    %p17 = pneg %p16
  $region15: #{down_forward.2} parent=0 // pred_check_branch
    %19 = sbr.rel (%p17) target = $region17
  $region16: #{down_forward.2} parent=0 // pred_region
    %20 = vst [vmem:[#allocation2] sm:$0xff] 0.0
    %21 = vst [vmem:[#allocation2 + $0x8] sm:$0x3] 0.0
    %22 = vst [vmem:[#allocation2 + $0xa0] sm:$0xff] 0.0
    %23 = vst [vmem:[#allocation2 + $0xa8] sm:$0x3] 0.0
    %s24 = scalar_lea.vmem [#allocation2], 144
    %25 = vst [vmem:[%s24] sm:$0xff] 0.0
    %26 = vst [vmem:[%s24 + $0x8] sm:$0x3] 0.0
    %27 = vst [vmem:[%s24 + $0xa0] sm:$0xff] 0.0
    %28 = vst [vmem:[%s24 + $0xa8] sm:$0x3] 0.0
    %29 = vst [vmem:[#allocation2] sm:$0x1] 0.0
    %30 = vst [vmem:[#allocation2 + $0x10] sm:$0x1] 0.0
    %31 = vst [vmem:[#allocation2 + $0x20] sm:$0x1] 0.0
    %32 = vst [vmem:[#allocation2 + $0x30] sm:$0x1] 0.0
    %33 = vst [vmem:[#allocation2 + $0x40] sm:$0x1] 0.0
    %34 = vst [vmem:[#allocation2 + $0x50] sm:$0x1] 0.0
    %35 = vst [vmem:[#allocation2 + $0x60] sm:$0x1] 0.0
    %36 = vst [vmem:[#allocation2 + $0x70] sm:$0x1] 0.0
    %37 = vst [vmem:[#allocation2 + $0x80] sm:$0x1] 0.0
    %38 = vst [vmem:[#allocation2 + $0x90] sm:$0x1] 0.0
    %39 = vst [vmem:[#allocation2 + $0xa0] sm:$0x1] 0.0
    %40 = vst [vmem:[#allocation2 + $0xb0] sm:$0x1] 0.0
    %41 = vst [vmem:[#allocation2 + $0xc0] sm:$0x1] 0.0
    %42 = vst [vmem:[#allocation2 + $0xd0] sm:$0x1] 0.0
    %43 = vst [vmem:[#allocation2 + $0xe0] sm:$0x1] 0.0
    %44 = vst [vmem:[#allocation2 + $0xf0] sm:$0x1] 0.0
    %45 = vst [vmem:[#allocation2 + $0x100] sm:$0x1] 0.0
    %46 = vst [vmem:[#allocation2 + $0x110] sm:$0x1] 0.0
    %47 = vst [vmem:[#allocation2 + $0x120] sm:$0x1] 0.0
    %48 = vst [vmem:[#allocation2 + $0x130] sm:$0x1] 0.0
    %49 = vst [vmem:[#allocation2 + $0x9] sm:$0x1] 0.0
    %50 = vst [vmem:[#allocation2 + $0x19] sm:$0x1] 0.0
    %51 = vst [vmem:[#allocation2 + $0x29] sm:$0x1] 0.0
    %52 = vst [vmem:[#allocation2 + $0x39] sm:$0x1] 0.0
    %53 = vst [vmem:[#allocation2 + $0x49] sm:$0x1] 0.0
    %54 = vst [vmem:[#allocation2 + $0x59] sm:$0x1] 0.0
    %55 = vst [vmem:[#allocation2 + $0x69] sm:$0x1] 0.0
    %56 = vst [vmem:[#allocation2 + $0x79] sm:$0x1] 0.0
    %57 = vst [vmem:[#allocation2 + $0x89] sm:$0x1] 0.0
    %58 = vst [vmem:[#allocation2 + $0x99] sm:$0x1] 0.0
    %59 = vst [vmem:[#allocation2 + $0xa9] sm:$0x1] 0.0
    %60 = vst [vmem:[#allocation2 + $0xb9] sm:$0x1] 0.0
    %61 = vst [vmem:[#allocation2 + $0xc9] sm:$0x1] 0.0
    %62 = vst [vmem:[#allocation2 + $0xd9] sm:$0x1] 0.0
    %63 = vst [vmem:[#allocation2 + $0xe9] sm:$0x1] 0.0
    %64 = vst [vmem:[#allocation2 + $0xf9] sm:$0x1] 0.0
    %65 = vst [vmem:[#allocation2 + $0x109] sm:$0x1] 0.0
    %66 = vst [vmem:[#allocation2 + $0x119] sm:$0x1] 0.0
    %67 = vst [vmem:[#allocation2 + $0x129] sm:$0x1] 0.0
    %68 = vst [vmem:[#allocation2 + $0x139] sm:$0x1] 0.0
  $region17: #{down_forward.2} parent=0 // pred_fallthru
    _
  %v69 = vld [vmem:[%s0] sm:$0xff]
  %v70 = vld [vmem:[%s0 + $0x8] sm:$0xff]
  %v71 = vld [vmem:[%s0 + $0x10] sm:$0xff]
  %v72 = vld [vmem:[%s0 + $0x18] sm:$0xff]
  %v73 = vld [vmem:[%s0 + $0x20] sm:$0xff]
  %v74 = vld [vmem:[%s0 + $0x28] sm:$0xff]
  %v75 = vld [vmem:[%s0 + $0x30] sm:$0xff]
  %v76 = vld [vmem:[%s0 + $0x38] sm:$0xff]
  %v77 = vld [vmem:[%s0 + $0x40] sm:$0xff]
  %v78 = vld [vmem:[%s0 + $0x48] sm:$0xff]
  %v79 = vld [vmem:[%s0 + $0x50] sm:$0xff]
  %v80 = vld [vmem:[%s0 + $0x58] sm:$0xff]
  %v81 = vld [vmem:[%s0 + $0x60] sm:$0xff]
  %v82 = vld [vmem:[%s0 + $0x68] sm:$0xff]
  %v83 = vld [vmem:[%s0 + $0x70] sm:$0xff]
  %v84 = vld [vmem:[%s0 + $0x78] sm:$0xff]
  %v85 = vld [vmem:[%s0 + $0x80] sm:$0xff]
  %v86 = vld [vmem:[%s0 + $0x88] sm:$0xff]
  %v87 = vld [vmem:[%s0 + $0x90] sm:$0xff]
  %v88 = vld [vmem:[%s0 + $0x98] sm:$0xff]
  %v89 = vld [vmem:[%s0 + $0xa0] sm:$0xff]
  %v90 = vld [vmem:[%s0 + $0xa8] sm:$0xff]
  %v91 = vld [vmem:[%s0 + $0xb0] sm:$0xff]
  %v92 = vld [vmem:[%s0 + $0xb8] sm:$0xff]
  %v93 = vld [vmem:[%s0 + $0xc0] sm:$0xff]
  %v94 = vld [vmem:[%s0 + $0xc8] sm:$0xff]
  %v95 = vld [vmem:[%s0 + $0xd0] sm:$0xff]
  %v96 = vld [vmem:[%s0 + $0xd8] sm:$0xff]
  %v97 = vld [vmem:[%s0 + $0xe0] sm:$0xff]
  %v98 = vld [vmem:[%s0 + $0xe8] sm:$0xff]
  %v99 = vld [vmem:[%s0 + $0xf0] sm:$0xff]
  %v100 = vld [vmem:[%s0 + $0xf8] sm:$0xff]
  %v101 = vld [vmem:[%s0 + $0x100] sm:$0xff]
  %v102 = vld [vmem:[%s0 + $0x108] sm:$0xff]
  %v103 = vld [vmem:[%s0 + $0x110] sm:$0xff]
  %v104 = vld [vmem:[%s0 + $0x118] sm:$0xff]
  %v105 = vld [vmem:[%s0 + $0x120] sm:$0xff]
  %v106 = vld [vmem:[%s0 + $0x128] sm:$0xff]
  %v107 = vld [vmem:[%s0 + $0x130] sm:$0xff]
  %v108 = vld [vmem:[%s0 + $0x138] sm:$0xff]
  %v109 = vld [vmem:[%s0 + $0x140] sm:$0xff]
  %v110 = vld [vmem:[%s0 + $0x148] sm:$0xff]
  %v111 = vld [vmem:[%s0 + $0x150] sm:$0xff]
  %v112 = vld [vmem:[%s0 + $0x158] sm:$0xff]
  %v113 = vld [vmem:[%s0 + $0x160] sm:$0xff]
  %v114 = vld [vmem:[%s0 + $0x168] sm:$0xff]
  %v115 = vld [vmem:[%s0 + $0x170] sm:$0xff]
  %v116 = vld [vmem:[%s0 + $0x178] sm:$0xff]
  %v117 = vld [vmem:[%s0 + $0x180] sm:$0xff]
  %v118 = vld [vmem:[%s0 + $0x188] sm:$0xff]
  %v119 = vld [vmem:[%s0 + $0x190] sm:$0xff]
  %v120 = vld [vmem:[%s0 + $0x198] sm:$0xff]
  %v121 = vld [vmem:[%s0 + $0x1a0] sm:$0xff]
  %v122 = vld [vmem:[%s0 + $0x1a8] sm:$0xff]
  %v123 = vld [vmem:[%s0 + $0x1b0] sm:$0xff]
  %v124 = vld [vmem:[%s0 + $0x1b8] sm:$0xff]
  %v125 = vld [vmem:[%s0 + $0x1c0] sm:$0xff]
  %v126 = vld [vmem:[%s0 + $0x1c8] sm:$0xff]
  %v127 = vld [vmem:[%s0 + $0x1d0] sm:$0xff]
  %v128 = vld [vmem:[%s0 + $0x1d8] sm:$0xff]
  %v129 = vld [vmem:[%s0 + $0x1e0] sm:$0xff]
  %v130 = vld [vmem:[%s0 + $0x1e8] sm:$0xff]
  %v131 = vld [vmem:[%s0 + $0x1f0] sm:$0xff]
  %v132 = vld [vmem:[%s0 + $0x1f8] sm:$0xff]
  %v133 = vmax.f32 %v69, %v71
  %v134 = vmax.f32 %v70, %v72
  %v135 = vmax.f32 %v73, %v75
  %v136 = vmax.f32 %v74, %v76
  %v137 = vmax.f32 %v77, %v79
  %v138 = vmax.f32 %v78, %v80
  %v139 = vmax.f32 %v81, %v83
  %v140 = vmax.f32 %v82, %v84
  %v141 = vmax.f32 %v85, %v87
  %v142 = vmax.f32 %v86, %v88
  %v143 = vmax.f32 %v89, %v91
  %v144 = vmax.f32 %v90, %v92
  %v145 = vmax.f32 %v93, %v95
  %v146 = vmax.f32 %v94, %v96
  %v147 = vmax.f32 %v97, %v99
  %v148 = vmax.f32 %v98, %v100
  %v149 = vmax.f32 %v101, %v103
  %v150 = vmax.f32 %v102, %v104
  %v151 = vmax.f32 %v105, %v107
  %v152 = vmax.f32 %v106, %v108
  %v153 = vmax.f32 %v109, %v111
  %v154 = vmax.f32 %v110, %v112
  %v155 = vmax.f32 %v113, %v115
  %v156 = vmax.f32 %v114, %v116
  %v157 = vmax.f32 %v117, %v119
  %v158 = vmax.f32 %v118, %v120
  %v159 = vmax.f32 %v121, %v123
  %v160 = vmax.f32 %v122, %v124
  %v161 = vmax.f32 %v125, %v127
  %v162 = vmax.f32 %v126, %v128
  %v163 = vmax.f32 %v129, %v131
  %v164 = vmax.f32 %v130, %v132
  %v165 = vmax.f32 %v133, %v134
  %v166 = vmax.f32 %v135, %v136
  %v167 = vmax.f32 %v137, %v138
  %v168 = vmax.f32 %v139, %v140
  %v169 = vmax.f32 %v141, %v142
  %v170 = vmax.f32 %v143, %v144
  %v171 = vmax.f32 %v145, %v146
  %v172 = vmax.f32 %v147, %v148
  %v173 = vmax.f32 %v149, %v150
  %v174 = vmax.f32 %v151, %v152
  %v175 = vmax.f32 %v153, %v154
  %v176 = vmax.f32 %v155, %v156
  %v177 = vmax.f32 %v157, %v158
  %v178 = vmax.f32 %v159, %v160
  %v179 = vmax.f32 %v161, %v162
  %v180 = vmax.f32 %v163, %v164
  %s181 = scalar_lea.vmem [#allocation2], 16
  %182 = vst [vmem:[%s181 + $0x1] sm:$0xff] %v165
  %183 = vst [vmem:[%s181 + $0x11] sm:$0xff] %v166
  %184 = vst [vmem:[%s181 + $0x21] sm:$0xff] %v167
  %185 = vst [vmem:[%s181 + $0x31] sm:$0xff] %v168
  %186 = vst [vmem:[%s181 + $0x41] sm:$0xff] %v169
  %187 = vst [vmem:[%s181 + $0x51] sm:$0xff] %v170
  %188 = vst [vmem:[%s181 + $0x61] sm:$0xff] %v171
  %189 = vst [vmem:[%s181 + $0x71] sm:$0xff] %v172
  %190 = vst [vmem:[%s181 + $0xa1] sm:$0xff] %v173
  %191 = vst [vmem:[%s181 + $0xb1] sm:$0xff] %v174
  %192 = vst [vmem:[%s181 + $0xc1] sm:$0xff] %v175
  %193 = vst [vmem:[%s181 + $0xd1] sm:$0xff] %v176
  %194 = vst [vmem:[%s181 + $0xe1] sm:$0xff] %v177
  %195 = vst [vmem:[%s181 + $0xf1] sm:$0xff] %v178
  %196 = vst [vmem:[%s181 + $0x101] sm:$0xff] %v179
  %197 = vst [vmem:[%s181 + $0x111] sm:$0xff] %v180
  %v198 = vld [vmem:[#allocation2] sm:$0xff]
  %v199 = vld [vmem:[#allocation2 + $0x10] sm:$0xff]
  %v200 = vld [vmem:[#allocation2 + $0x20] sm:$0xff]
  %v201 = vld [vmem:[#allocation2 + $0x30] sm:$0xff]
  %v202 = vld [vmem:[#allocation2 + $0x40] sm:$0xff]
  %v203 = vld [vmem:[#allocation2 + $0x50] sm:$0xff]
  %v204 = vld [vmem:[#allocation2 + $0x60] sm:$0xff]
  %v205 = vld [vmem:[#allocation2 + $0x70] sm:$0xff]
  %v206 = vld [vmem:[#allocation2 + $0xa0] sm:$0xff]
  %v207 = vld [vmem:[#allocation2 + $0xb0] sm:$0xff]
  %v208 = vld [vmem:[#allocation2 + $0xc0] sm:$0xff]
  %v209 = vld [vmem:[#allocation2 + $0xd0] sm:$0xff]
  %v210 = vld [vmem:[#allocation2 + $0xe0] sm:$0xff]
  %v211 = vld [vmem:[#allocation2 + $0xf0] sm:$0xff]
  %v212 = vld [vmem:[#allocation2 + $0x100] sm:$0xff]
  %v213 = vld [vmem:[#allocation2 + $0x110] sm:$0xff]
  %v214 = vld [vmem:[#allocation2 + $0x1] sm:$0xff]
  %v215 = vld [vmem:[#allocation2 + $0x11] sm:$0xff]
  %v216 = vld [vmem:[#allocation2 + $0x21] sm:$0xff]
  %v217 = vld [vmem:[#allocation2 + $0x31] sm:$0xff]
  %v218 = vld [vmem:[#allocation2 + $0x41] sm:$0xff]
  %v219 = vld [vmem:[#allocation2 + $0x51] sm:$0xff]
  %v220 = vld [vmem:[#allocation2 + $0x61] sm:$0xff]
  %v221 = vld [vmem:[#allocation2 + $0x71] sm:$0xff]
  %v222 = vld [vmem:[#allocation2 + $0xa1] sm:$0xff]
  %v223 = vld [vmem:[#allocation2 + $0xb1] sm:$0xff]
  %v224 = vld [vmem:[#allocation2 + $0xc1] sm:$0xff]
  %v225 = vld [vmem:[#allocation2 + $0xd1] sm:$0xff]
  %v226 = vld [vmem:[#allocation2 + $0xe1] sm:$0xff]
  %v227 = vld [vmem:[#allocation2 + $0xf1] sm:$0xff]
  %v228 = vld [vmem:[#allocation2 + $0x101] sm:$0xff]
  %v229 = vld [vmem:[#allocation2 + $0x111] sm:$0xff]
  %v230 = vld [vmem:[#allocation2 + $0x2] sm:$0xff]
  %v231 = vld [vmem:[#allocation2 + $0x12] sm:$0xff]
  %v232 = vld [vmem:[#allocation2 + $0x22] sm:$0xff]
  %v233 = vld [vmem:[#allocation2 + $0x32] sm:$0xff]
  %v234 = vld [vmem:[#allocation2 + $0x42] sm:$0xff]
  %v235 = vld [vmem:[#allocation2 + $0x52] sm:$0xff]
  %v236 = vld [vmem:[#allocation2 + $0x62] sm:$0xff]
  %v237 = vld [vmem:[#allocation2 + $0x72] sm:$0xff]
  %v238 = vld [vmem:[#allocation2 + $0xa2] sm:$0xff]
  %v239 = vld [vmem:[#allocation2 + $0xb2] sm:$0xff]
  %v240 = vld [vmem:[#allocation2 + $0xc2] sm:$0xff]
  %v241 = vld [vmem:[#allocation2 + $0xd2] sm:$0xff]
  %v242 = vld [vmem:[#allocation2 + $0xe2] sm:$0xff]
  %v243 = vld [vmem:[#allocation2 + $0xf2] sm:$0xff]
  %v244 = vld [vmem:[#allocation2 + $0x102] sm:$0xff]
  %v245 = vld [vmem:[#allocation2 + $0x112] sm:$0xff]
  %v246 = vld [vmem:[%s181] sm:$0xff]
  %v247 = vld [vmem:[%s181 + $0x10] sm:$0xff]
  %v248 = vld [vmem:[%s181 + $0x20] sm:$0xff]
  %v249 = vld [vmem:[%s181 + $0x30] sm:$0xff]
  %v250 = vld [vmem:[%s181 + $0x40] sm:$0xff]
  %v251 = vld [vmem:[%s181 + $0x50] sm:$0xff]
  %v252 = vld [vmem:[%s181 + $0x60] sm:$0xff]
  %v253 = vld [vmem:[%s181 + $0x70] sm:$0xff]
  %v254 = vld [vmem:[%s181 + $0xa0] sm:$0xff]
  %v255 = vld [vmem:[%s181 + $0xb0] sm:$0xff]
  %v256 = vld [vmem:[%s181 + $0xc0] sm:$0xff]
  %v257 = vld [vmem:[%s181 + $0xd0] sm:$0xff]
  %v258 = vld [vmem:[%s181 + $0xe0] sm:$0xff]
  %v259 = vld [vmem:[%s181 + $0xf0] sm:$0xff]
  %v260 = vld [vmem:[%s181 + $0x100] sm:$0xff]
  %v261 = vld [vmem:[%s181 + $0x110] sm:$0xff]
  %v262 = vld [vmem:[%s181 + $0x1] sm:$0xff]
  %v263 = vld [vmem:[%s181 + $0x11] sm:$0xff]
  %v264 = vld [vmem:[%s181 + $0x21] sm:$0xff]
  %v265 = vld [vmem:[%s181 + $0x31] sm:$0xff]
  %v266 = vld [vmem:[%s181 + $0x41] sm:$0xff]
  %v267 = vld [vmem:[%s181 + $0x51] sm:$0xff]
  %v268 = vld [vmem:[%s181 + $0x61] sm:$0xff]
  %v269 = vld [vmem:[%s181 + $0x71] sm:$0xff]
  %v270 = vld [vmem:[%s181 + $0xa1] sm:$0xff]
  %v271 = vld [vmem:[%s181 + $0xb1] sm:$0xff]
  %v272 = vld [vmem:[%s181 + $0xc1] sm:$0xff]
  %v273 = vld [vmem:[%s181 + $0xd1] sm:$0xff]
  %v274 = vld [vmem:[%s181 + $0xe1] sm:$0xff]
  %v275 = vld [vmem:[%s181 + $0xf1] sm:$0xff]
  %v276 = vld [vmem:[%s181 + $0x101] sm:$0xff]
  %v277 = vld [vmem:[%s181 + $0x111] sm:$0xff]
  %v278 = vld [vmem:[%s181 + $0x2] sm:$0xff]
  %v279 = vld [vmem:[%s181 + $0x12] sm:$0xff]
  %v280 = vld [vmem:[%s181 + $0x22] sm:$0xff]
  %v281 = vld [vmem:[%s181 + $0x32] sm:$0xff]
  %v282 = vld [vmem:[%s181 + $0x42] sm:$0xff]
  %v283 = vld [vmem:[%s181 + $0x52] sm:$0xff]
  %v284 = vld [vmem:[%s181 + $0x62] sm:$0xff]
  %v285 = vld [vmem:[%s181 + $0x72] sm:$0xff]
  %v286 = vld [vmem:[%s181 + $0xa2] sm:$0xff]
  %v287 = vld [vmem:[%s181 + $0xb2] sm:$0xff]
  %v288 = vld [vmem:[%s181 + $0xc2] sm:$0xff]
  %v289 = vld [vmem:[%s181 + $0xd2] sm:$0xff]
  %v290 = vld [vmem:[%s181 + $0xe2] sm:$0xff]
  %v291 = vld [vmem:[%s181 + $0xf2] sm:$0xff]
  %v292 = vld [vmem:[%s181 + $0x102] sm:$0xff]
  %v293 = vld [vmem:[%s181 + $0x112] sm:$0xff]
  %s294 = scalar_lea.vmem [#allocation2], 32
  %v295 = vld [vmem:[%s294] sm:$0xff]
  %v296 = vld [vmem:[%s294 + $0x10] sm:$0xff]
  %v297 = vld [vmem:[%s294 + $0x20] sm:$0xff]
  %v298 = vld [vmem:[%s294 + $0x30] sm:$0xff]
  %v299 = vld [vmem:[%s294 + $0x40] sm:$0xff]
  %v300 = vld [vmem:[%s294 + $0x50] sm:$0xff]
  %v301 = vld [vmem:[%s294 + $0x60] sm:$0xff]
  %v302 = vld [vmem:[%s294 + $0x70] sm:$0xff]
  %v303 = vld [vmem:[%s294 + $0xa0] sm:$0xff]
  %v304 = vld [vmem:[%s294 + $0xb0] sm:$0xff]
  %v305 = vld [vmem:[%s294 + $0xc0] sm:$0xff]
  %v306 = vld [vmem:[%s294 + $0xd0] sm:$0xff]
  %v307 = vld [vmem:[%s294 + $0xe0] sm:$0xff]
  %v308 = vld [vmem:[%s294 + $0xf0] sm:$0xff]
  %v309 = vld [vmem:[%s294 + $0x100] sm:$0xff]
  %v310 = vld [vmem:[%s294 + $0x110] sm:$0xff]
  %v311 = vld [vmem:[%s294 + $0x1] sm:$0xff]
  %v312 = vld [vmem:[%s294 + $0x11] sm:$0xff]
  %v313 = vld [vmem:[%s294 + $0x21] sm:$0xff]
  %v314 = vld [vmem:[%s294 + $0x31] sm:$0xff]
  %v315 = vld [vmem:[%s294 + $0x41] sm:$0xff]
  %v316 = vld [vmem:[%s294 + $0x51] sm:$0xff]
  %v317 = vld [vmem:[%s294 + $0x61] sm:$0xff]
  %v318 = vld [vmem:[%s294 + $0x71] sm:$0xff]
  %v319 = vld [vmem:[%s294 + $0xa1] sm:$0xff]
  %v320 = vld [vmem:[%s294 + $0xb1] sm:$0xff]
  %v321 = vld [vmem:[%s294 + $0xc1] sm:$0xff]
  %v322 = vld [vmem:[%s294 + $0xd1] sm:$0xff]
  %v323 = vld [vmem:[%s294 + $0xe1] sm:$0xff]
  %v324 = vld [vmem:[%s294 + $0xf1] sm:$0xff]
  %v325 = vld [vmem:[%s294 + $0x101] sm:$0xff]
  %v326 = vld [vmem:[%s294 + $0x111] sm:$0xff]
  %v327 = vld [vmem:[%s294 + $0x2] sm:$0xff]
  %v328 = vld [vmem:[%s294 + $0x12] sm:$0xff]
  %v329 = vld [vmem:[%s294 + $0x22] sm:$0xff]
  %v330 = vld [vmem:[%s294 + $0x32] sm:$0xff]
  %v331 = vld [vmem:[%s294 + $0x42] sm:$0xff]
  %v332 = vld [vmem:[%s294 + $0x52] sm:$0xff]
  %v333 = vld [vmem:[%s294 + $0x62] sm:$0xff]
  %v334 = vld [vmem:[%s294 + $0x72] sm:$0xff]
  %v335 = vld [vmem:[%s294 + $0xa2] sm:$0xff]
  %v336 = vld [vmem:[%s294 + $0xb2] sm:$0xff]
  %v337 = vld [vmem:[%s294 + $0xc2] sm:$0xff]
  %v338 = vld [vmem:[%s294 + $0xd2] sm:$0xff]
  %v339 = vld [vmem:[%s294 + $0xe2] sm:$0xff]
  %v340 = vld [vmem:[%s294 + $0xf2] sm:$0xff]
  %v341 = vld [vmem:[%s294 + $0x102] sm:$0xff]
  %v342 = vld [vmem:[%s294 + $0x112] sm:$0xff]
  %v343 = vld [vmem:[%s1] sm:$0xff]
  %v344 = vld [vmem:[%s1 + $0x8] sm:$0xff]
  %v345 = vld [vmem:[%s1 + $0x10] sm:$0xff]
  %v346 = vld [vmem:[%s1 + $0x18] sm:$0xff]
  %v347 = vld [vmem:[%s1 + $0x20] sm:$0xff]
  %v348 = vld [vmem:[%s1 + $0x28] sm:$0xff]
  %v349 = vld [vmem:[%s1 + $0x30] sm:$0xff]
  %v350 = vld [vmem:[%s1 + $0x38] sm:$0xff]
  %v351 = vld [vmem:[%s1 + $0x40] sm:$0xff]
  %v352 = vld [vmem:[%s1 + $0x48] sm:$0xff]
  %v353 = vld [vmem:[%s1 + $0x50] sm:$0xff]
  %v354 = vld [vmem:[%s1 + $0x58] sm:$0xff]
  %v355 = vld [vmem:[%s1 + $0x60] sm:$0xff]
  %v356 = vld [vmem:[%s1 + $0x68] sm:$0xff]
  %v357 = vld [vmem:[%s1 + $0x70] sm:$0xff]
  %v358 = vld [vmem:[%s1 + $0x78] sm:$0xff]
  %v359 = vld [vmem:[%s1 + $0x80] sm:$0xff]
  %v360 = vld [vmem:[%s1 + $0x88] sm:$0xff]
  %v361 = vld [vmem:[%s1 + $0x90] sm:$0xff]
  %v362 = vld [vmem:[%s1 + $0x98] sm:$0xff]
  %v363 = vld [vmem:[%s1 + $0xa0] sm:$0xff]
  %v364 = vld [vmem:[%s1 + $0xa8] sm:$0xff]
  %v365 = vld [vmem:[%s1 + $0xb0] sm:$0xff]
  %v366 = vld [vmem:[%s1 + $0xb8] sm:$0xff]
  %v367 = vld [vmem:[%s1 + $0xc0] sm:$0xff]
  %v368 = vld [vmem:[%s1 + $0xc8] sm:$0xff]
  %v369 = vld [vmem:[%s1 + $0xd0] sm:$0xff]
  %v370 = vld [vmem:[%s1 + $0xd8] sm:$0xff]
  %v371 = vld [vmem:[%s1 + $0xe0] sm:$0xff]
  %v372 = vld [vmem:[%s1 + $0xe8] sm:$0xff]
  %v373 = vld [vmem:[%s1 + $0xf0] sm:$0xff]
  %v374 = vld [vmem:[%s1 + $0xf8] sm:$0xff]
  %v375 = vld [vmem:[%s1 + $0x100] sm:$0xff]
  %v376 = vld [vmem:[%s1 + $0x108] sm:$0xff]
  %v377 = vld [vmem:[%s1 + $0x110] sm:$0xff]
  %v378 = vld [vmem:[%s1 + $0x118] sm:$0xff]
  %v379 = vld [vmem:[%s1 + $0x120] sm:$0xff]
  %v380 = vld [vmem:[%s1 + $0x128] sm:$0xff]
  %v381 = vld [vmem:[%s1 + $0x130] sm:$0xff]
  %v382 = vld [vmem:[%s1 + $0x138] sm:$0xff]
  %v383 = vld [vmem:[%s1 + $0x140] sm:$0xff]
  %v384 = vld [vmem:[%s1 + $0x148] sm:$0xff]
  %v385 = vld [vmem:[%s1 + $0x150] sm:$0xff]
  %v386 = vld [vmem:[%s1 + $0x158] sm:$0xff]
  %v387 = vld [vmem:[%s1 + $0x160] sm:$0xff]
  %v388 = vld [vmem:[%s1 + $0x168] sm:$0xff]
  %v389 = vld [vmem:[%s1 + $0x170] sm:$0xff]
  %v390 = vld [vmem:[%s1 + $0x178] sm:$0xff]
  %v391 = vld [vmem:[%s1 + $0x180] sm:$0xff]
  %v392 = vld [vmem:[%s1 + $0x188] sm:$0xff]
  %v393 = vld [vmem:[%s1 + $0x190] sm:$0xff]
  %v394 = vld [vmem:[%s1 + $0x198] sm:$0xff]
  %v395 = vld [vmem:[%s1 + $0x1a0] sm:$0xff]
  %v396 = vld [vmem:[%s1 + $0x1a8] sm:$0xff]
  %v397 = vld [vmem:[%s1 + $0x1b0] sm:$0xff]
  %v398 = vld [vmem:[%s1 + $0x1b8] sm:$0xff]
  %v399 = vld [vmem:[%s1 + $0x1c0] sm:$0xff]
  %v400 = vld [vmem:[%s1 + $0x1c8] sm:$0xff]
  %v401 = vld [vmem:[%s1 + $0x1d0] sm:$0xff]
  %v402 = vld [vmem:[%s1 + $0x1d8] sm:$0xff]
  %v403 = vld [vmem:[%s1 + $0x1e0] sm:$0xff]
  %v404 = vld [vmem:[%s1 + $0x1e8] sm:$0xff]
  %v405 = vld [vmem:[%s1 + $0x1f0] sm:$0xff]
  %v406 = vld [vmem:[%s1 + $0x1f8] sm:$0xff]
  %v407 = vld [vmem:[%s1 + $0x200] sm:$0xff]
  %v408 = vld [vmem:[%s1 + $0x208] sm:$0xff]
  %v409 = vld [vmem:[%s1 + $0x210] sm:$0xff]
  %v410 = vld [vmem:[%s1 + $0x218] sm:$0xff]
  %v411 = vld [vmem:[%s1 + $0x220] sm:$0xff]
  %v412 = vld [vmem:[%s1 + $0x228] sm:$0xff]
  %v413 = vld [vmem:[%s1 + $0x230] sm:$0xff]
  %v414 = vld [vmem:[%s1 + $0x238] sm:$0xff]
  %v415 = vld [vmem:[%s1 + $0x240] sm:$0xff]
  %v416 = vld [vmem:[%s1 + $0x248] sm:$0xff]
  %v417 = vld [vmem:[%s1 + $0x250] sm:$0xff]
  %v418 = vld [vmem:[%s1 + $0x258] sm:$0xff]
  %v419 = vld [vmem:[%s1 + $0x260] sm:$0xff]
  %v420 = vld [vmem:[%s1 + $0x268] sm:$0xff]
  %v421 = vld [vmem:[%s1 + $0x270] sm:$0xff]
  %v422 = vld [vmem:[%s1 + $0x278] sm:$0xff]
  %v423 = vld [vmem:[%s1 + $0x280] sm:$0xff]
  %v424 = vld [vmem:[%s1 + $0x288] sm:$0xff]
  %v425 = vld [vmem:[%s1 + $0x290] sm:$0xff]
  %v426 = vld [vmem:[%s1 + $0x298] sm:$0xff]
  %v427 = vld [vmem:[%s1 + $0x2a0] sm:$0xff]
  %v428 = vld [vmem:[%s1 + $0x2a8] sm:$0xff]
  %v429 = vld [vmem:[%s1 + $0x2b0] sm:$0xff]
  %v430 = vld [vmem:[%s1 + $0x2b8] sm:$0xff]
  %v431 = vld [vmem:[%s1 + $0x2c0] sm:$0xff]
  %v432 = vld [vmem:[%s1 + $0x2c8] sm:$0xff]
  %v433 = vld [vmem:[%s1 + $0x2d0] sm:$0xff]
  %v434 = vld [vmem:[%s1 + $0x2d8] sm:$0xff]
  %v435 = vld [vmem:[%s1 + $0x2e0] sm:$0xff]
  %v436 = vld [vmem:[%s1 + $0x2e8] sm:$0xff]
  %v437 = vld [vmem:[%s1 + $0x2f0] sm:$0xff]
  %v438 = vld [vmem:[%s1 + $0x2f8] sm:$0xff]
  %v439 = vld [vmem:[%s1 + $0x300] sm:$0xff]
  %v440 = vld [vmem:[%s1 + $0x308] sm:$0xff]
  %v441 = vld [vmem:[%s1 + $0x310] sm:$0xff]
  %v442 = vld [vmem:[%s1 + $0x318] sm:$0xff]
  %v443 = vld [vmem:[%s1 + $0x320] sm:$0xff]
  %v444 = vld [vmem:[%s1 + $0x328] sm:$0xff]
  %v445 = vld [vmem:[%s1 + $0x330] sm:$0xff]
  %v446 = vld [vmem:[%s1 + $0x338] sm:$0xff]
  %v447 = vld [vmem:[%s1 + $0x340] sm:$0xff]
  %v448 = vld [vmem:[%s1 + $0x348] sm:$0xff]
  %v449 = vld [vmem:[%s1 + $0x350] sm:$0xff]
  %v450 = vld [vmem:[%s1 + $0x358] sm:$0xff]
  %v451 = vld [vmem:[%s1 + $0x360] sm:$0xff]
  %v452 = vld [vmem:[%s1 + $0x368] sm:$0xff]
  %v453 = vld [vmem:[%s1 + $0x370] sm:$0xff]
  %v454 = vld [vmem:[%s1 + $0x378] sm:$0xff]
  %v455 = vld [vmem:[%s1 + $0x380] sm:$0xff]
  %v456 = vld [vmem:[%s1 + $0x388] sm:$0xff]
  %v457 = vld [vmem:[%s1 + $0x390] sm:$0xff]
  %v458 = vld [vmem:[%s1 + $0x398] sm:$0xff]
  %v459 = vld [vmem:[%s1 + $0x3a0] sm:$0xff]
  %v460 = vld [vmem:[%s1 + $0x3a8] sm:$0xff]
  %v461 = vld [vmem:[%s1 + $0x3b0] sm:$0xff]
  %v462 = vld [vmem:[%s1 + $0x3b8] sm:$0xff]
  %v463 = vld [vmem:[%s1 + $0x3c0] sm:$0xff]
  %v464 = vld [vmem:[%s1 + $0x3c8] sm:$0xff]
  %v465 = vld [vmem:[%s1 + $0x3d0] sm:$0xff]
  %v466 = vld [vmem:[%s1 + $0x3d8] sm:$0xff]
  %v467 = vld [vmem:[%s1 + $0x3e0] sm:$0xff]
  %v468 = vld [vmem:[%s1 + $0x3e8] sm:$0xff]
  %v469 = vld [vmem:[%s1 + $0x3f0] sm:$0xff]
  %v470 = vld [vmem:[%s1 + $0x3f8] sm:$0xff]
  %v471 = vld [vmem:[%s1 + $0x400] sm:$0xff]
  %v472 = vld [vmem:[%s1 + $0x408] sm:$0xff]
  %v473 = vld [vmem:[%s1 + $0x410] sm:$0xff]
  %v474 = vld [vmem:[%s1 + $0x418] sm:$0xff]
  %v475 = vld [vmem:[%s1 + $0x420] sm:$0xff]
  %v476 = vld [vmem:[%s1 + $0x428] sm:$0xff]
  %v477 = vld [vmem:[%s1 + $0x430] sm:$0xff]
  %v478 = vld [vmem:[%s1 + $0x438] sm:$0xff]
  %v479 = vld [vmem:[%s1 + $0x440] sm:$0xff]
  %v480 = vld [vmem:[%s1 + $0x448] sm:$0xff]
  %v481 = vld [vmem:[%s1 + $0x450] sm:$0xff]
  %v482 = vld [vmem:[%s1 + $0x458] sm:$0xff]
  %v483 = vld [vmem:[%s1 + $0x460] sm:$0xff]
  %v484 = vld [vmem:[%s1 + $0x468] sm:$0xff]
  %v485 = vld [vmem:[%s1 + $0x470] sm:$0xff]
  %v486 = vld [vmem:[%s1 + $0x478] sm:$0xff]
  %v487 = vld [vmem:[%s2] sm:$0x1]
  %v489 = vlaneseq
  %v490 = vshrl.u32 %v489, 7
  %v491 = vsub.s32 0, %v490
  %v492 = vrot.slane %v487, %v491
  %494 = vmatprep.subr.mxu0 0.0
  %495 = vmatpush1.msra.mxu0 %v343
  %496 = vmatprep.subr.mxu0 0.0
  %497 = vmatpush1.msra.mxu0 %v344
  %498 = vmatprep.subr.mxu0 0.0
  %499 = vmatpush1.msra.mxu0 %v345
  %500 = vmatprep.subr.mxu0 0.0
  %501 = vmatpush1.msra.mxu0 %v346
  %502 = vmatprep.subr.mxu0 0.0
  %503 = vmatpush1.msra.mxu0 %v347
  %504 = vmatprep.subr.mxu0 0.0
  %505 = vmatpush1.msra.mxu0 %v348
  %506 = vmatprep.subr.mxu0 0.0
  %507 = vmatpush1.msra.mxu0 %v349
  %508 = vmatprep.subr.mxu0 0.0
  %509 = vmatpush1.msra.mxu0 %v350
  %510 = vmatprep.subr.mxu0 0.0
  %511 = vmatpush1.msra.mxu0 %v351
  %512 = vmatprep.subr.mxu0 0.0
  %513 = vmatpush1.msra.mxu0 %v352
  %514 = vmatprep.subr.mxu0 0.0
  %515 = vmatpush1.msra.mxu0 %v353
  %516 = vmatprep.subr.mxu0 0.0
  %517 = vmatpush1.msra.mxu0 %v354
  %518 = vmatprep.subr.mxu0 0.0
  %519 = vmatpush1.msra.mxu0 %v355
  %520 = vmatprep.subr.mxu0 0.0
  %521 = vmatpush1.msra.mxu0 %v356
  %522 = vmatprep.subr.mxu0 0.0
  %523 = vmatpush1.msra.mxu0 %v357
  %524 = vmatprep.subr.mxu0 0.0
  %525 = vmatpush1.msra.mxu0 %v358
  %526 = vmatprep.subr.mxu0 0.0
  %527 = vmatpush1.msra.mxu0 %v359
  %528 = vmatprep.subr.mxu0 0.0
  %529 = vmatpush1.msra.mxu0 %v360
  %530 = vmatprep.subr.mxu0 0.0
  %531 = vmatpush1.msra.mxu0 %v361
  %532 = vmatprep.subr.mxu0 0.0
  %533 = vmatpush1.msra.mxu0 %v362
  %534 = vmatprep.subr.mxu0 0.0
  %535 = vmatpush1.msra.mxu0 %v363
  %536 = vmatprep.subr.mxu0 0.0
  %537 = vmatpush1.msra.mxu0 %v364
  %538 = vmatprep.subr.mxu0 0.0
  %539 = vmatpush1.msra.mxu0 %v365
  %540 = vmatprep.subr.mxu0 0.0
  %541 = vmatpush1.msra.mxu0 %v366
  %542 = vmatprep.subr.mxu0 0.0
  %543 = vmatpush1.msra.mxu0 %v367
  %544 = vmatprep.subr.mxu0 0.0
  %545 = vmatpush1.msra.mxu0 %v368
  %546 = vmatprep.subr.mxu0 0.0
  %547 = vmatpush1.msra.mxu0 %v369
  %548 = vmatprep.subr.mxu0 0.0
  %549 = vmatpush1.msra.mxu0 %v370
  %550 = vmatprep.subr.mxu0 0.0
  %551 = vmatpush1.msra.mxu0 %v371
  %552 = vmatprep.subr.mxu0 0.0
  %553 = vmatpush1.msra.mxu0 %v372
  %554 = vmatprep.subr.mxu0 0.0
  %555 = vmatpush1.msra.mxu0 %v373
  %556 = vmatprep.subr.mxu0 0.0
  %557 = vmatpush1.msra.mxu0 %v374
  %558 = vmatprep.mubr.f32.mxu0 %v214
  %559 = vmatmul.mubr.f32.gmra.mrb[0].mxu0 %v198
  %v560 = vpop.f32.mrb[0].mxu0
  %v561 = vadd.f32 %v492, %v560
  %v562 = vpop.f32.mrb[0].mxu0
  %563 = vmatprep.mubr.f32.mxu0 %v215
  %564 = vmatmul.mubr.f32.gmra.mrb[0].mxu0 %v199
  %v565 = vpop.f32.mrb[0].mxu0
  %v566 = vadd.f32 %v492, %v565
  %v567 = vpop.f32.mrb[0].mxu0
  %568 = vmatprep.mubr.f32.mxu0 %v216
  %569 = vmatmul.mubr.f32.gmra.mrb[0].mxu0 %v200
  %v570 = vpop.f32.mrb[0].mxu0
  %v571 = vadd.f32 %v492, %v570
  %v572 = vpop.f32.mrb[0].mxu0
  %573 = vmatprep.mubr.f32.mxu0 %v217
  %574 = vmatmul.mubr.f32.gmra.mrb[0].mxu0 %v201
  %v575 = vpop.f32.mrb[0].mxu0
  %v576 = vadd.f32 %v492, %v575
  %v577 = vpop.f32.mrb[0].mxu0
  %578 = vmatprep.mubr.f32.mxu0 %v218
  %579 = vmatmul.mubr.f32.gmra.mrb[0].mxu0 %v202
  %v580 = vpop.f32.mrb[0].mxu0
  %v581 = vadd.f32 %v492, %v580
  %v582 = vpop.f32.mrb[0].mxu0
  %583 = vmatprep.mubr.f32.mxu0 %v219
  %584 = vmatmul.mubr.f32.gmra.mrb[0].mxu0 %v203
  %v585 = vpop.f32.mrb[0].mxu0
  %v586 = vadd.f32 %v492, %v585
  %v587 = vpop.f32.mrb[0].mxu0
  %588 = vmatprep.mubr.f32.mxu0 %v220
  %589 = vmatmul.mubr.f32.gmra.mrb[0].mxu0 %v204
  %v590 = vpop.f32.mrb[0].mxu0
  %v591 = vadd.f32 %v492, %v590
  %v592 = vpop.f32.mrb[0].mxu0
  %593 = vmatprep.mubr.f32.mxu0 %v221
  %594 = vmatmul.mubr.f32.gmra.mrb[0].mxu0 %v205
  %v595 = vpop.f32.mrb[0].mxu0
  %v596 = vadd.f32 %v492, %v595
  %v597 = vpop.f32.mrb[0].mxu0
  %598 = vmatprep.mubr.f32.mxu0 %v222
  %599 = vmatmul.mubr.f32.gmra.mrb[0].mxu0 %v206
  %v600 = vpop.f32.mrb[0].mxu0
  %v601 = vadd.f32 %v492, %v600
  %v602 = vpop.f32.mrb[0].mxu0
  %603 = vmatprep.mubr.f32.mxu0 %v223
  %604 = vmatmul.mubr.f32.gmra.mrb[0].mxu0 %v207
  %v605 = vpop.f32.mrb[0].mxu0
  %v606 = vadd.f32 %v492, %v605
  %v607 = vpop.f32.mrb[0].mxu0
  %608 = vmatprep.mubr.f32.mxu0 %v224
  %609 = vmatmul.mubr.f32.gmra.mrb[0].mxu0 %v208
  %v610 = vpop.f32.mrb[0].mxu0
  %v611 = vadd.f32 %v492, %v610
  %v612 = vpop.f32.mrb[0].mxu0
  %613 = vmatprep.mubr.f32.mxu0 %v225
  %614 = vmatmul.mubr.f32.gmra.mrb[0].mxu0 %v209
  %v615 = vpop.f32.mrb[0].mxu0
  %v616 = vadd.f32 %v492, %v615
  %v617 = vpop.f32.mrb[0].mxu0
  %618 = vmatprep.mubr.f32.mxu0 %v226
  %619 = vmatmul.mubr.f32.gmra.mrb[0].mxu0 %v210
  %v620 = vpop.f32.mrb[0].mxu0
  %v621 = vadd.f32 %v492, %v620
  %v622 = vpop.f32.mrb[0].mxu0
  %623 = vmatprep.mubr.f32.mxu0 %v227
  %624 = vmatmul.mubr.f32.gmra.mrb[0].mxu0 %v211
  %v625 = vpop.f32.mrb[0].mxu0
  %v626 = vadd.f32 %v492, %v625
  %v627 = vpop.f32.mrb[0].mxu0
  %628 = vmatprep.mubr.f32.mxu0 %v228
  %629 = vmatmul.mubr.f32.gmra.mrb[0].mxu0 %v212
  %v630 = vpop.f32.mrb[0].mxu0
  %v631 = vadd.f32 %v492, %v630
  %v632 = vpop.f32.mrb[0].mxu0
  %633 = vmatprep.mubr.f32.mxu0 %v229
  %634 = vmatmul.mubr.f32.gmra.mrb[0].mxu0 %v213
  %v635 = vpop.f32.mrb[0].mxu0
  %v636 = vadd.f32 %v492, %v635
  %v637 = vpop.f32.mrb[0].mxu0
  %638 = vdwg.mxu0
  %639 = vmatprep.subr.mxu0 0.0
  %640 = vmatpush1.msra.mxu0 %v375
  %641 = vmatprep.subr.mxu0 0.0
  %642 = vmatpush1.msra.mxu0 %v376
  %643 = vmatprep.subr.mxu0 0.0
  %644 = vmatpush1.msra.mxu0 %v377
  %645 = vmatprep.subr.mxu0 0.0
  %646 = vmatpush1.msra.mxu0 %v378
  %647 = vmatprep.subr.mxu0 0.0
  %648 = vmatpush1.msra.mxu0 %v379
  %649 = vmatprep.subr.mxu0 0.0
  %650 = vmatpush1.msra.mxu0 %v380
  %651 = vmatprep.subr.mxu0 0.0
  %652 = vmatpush1.msra.mxu0 %v381
  %653 = vmatprep.subr.mxu0 0.0
  %654 = vmatpush1.msra.mxu0 %v382
  %655 = vmatprep.subr.mxu0 0.0
  %656 = vmatpush1.msra.mxu0 %v383
  %657 = vmatprep.subr.mxu0 0.0
  %658 = vmatpush1.msra.mxu0 %v384
  %659 = vmatprep.subr.mxu0 0.0
  %660 = vmatpush1.msra.mxu0 %v385
  %661 = vmatprep.subr.mxu0 0.0
  %662 = vmatpush1.msra.mxu0 %v386
  %663 = vmatprep.subr.mxu0 0.0
  %664 = vmatpush1.msra.mxu0 %v387
  %665 = vmatprep.subr.mxu0 0.0
  %666 = vmatpush1.msra.mxu0 %v388
  %667 = vmatprep.subr.mxu0 0.0
  %668 = vmatpush1.msra.mxu0 %v389
  %669 = vmatprep.subr.mxu0 0.0
  %670 = vmatpush1.msra.mxu0 %v390
  %671 = vmatprep.subr.mxu0 0.0
  %672 = vmatpush1.msra.mxu0 %v391
  %673 = vmatprep.subr.mxu0 0.0
  %674 = vmatpush1.msra.mxu0 %v392
  %675 = vmatprep.subr.mxu0 0.0
  %676 = vmatpush1.msra.mxu0 %v393
  %677 = vmatprep.subr.mxu0 0.0
  %678 = vmatpush1.msra.mxu0 %v394
  %679 = vmatprep.subr.mxu0 0.0
  %680 = vmatpush1.msra.mxu0 %v395
  %681 = vmatprep.subr.mxu0 0.0
  %682 = vmatpush1.msra.mxu0 %v396
  %683 = vmatprep.subr.mxu0 0.0
  %684 = vmatpush1.msra.mxu0 %v397
  %685 = vmatprep.subr.mxu0 0.0
  %686 = vmatpush1.msra.mxu0 %v398
  %687 = vmatprep.subr.mxu0 0.0
  %688 = vmatpush1.msra.mxu0 %v399
  %689 = vmatprep.subr.mxu0 0.0
  %690 = vmatpush1.msra.mxu0 %v400
  %691 = vmatprep.subr.mxu0 0.0
  %692 = vmatpush1.msra.mxu0 %v401
  %693 = vmatprep.subr.mxu0 0.0
  %694 = vmatpush1.msra.mxu0 %v402
  %695 = vmatprep.subr.mxu0 0.0
  %696 = vmatpush1.msra.mxu0 %v403
  %697 = vmatprep.subr.mxu0 0.0
  %698 = vmatpush1.msra.mxu0 %v404
  %699 = vmatprep.subr.mxu0 0.0
  %700 = vmatpush1.msra.mxu0 %v405
  %701 = vmatprep.subr.mxu0 0.0
  %702 = vmatpush1.msra.mxu0 %v406
  %703 = vmatprep.mubr.f32.mxu0 %v246
  %704 = vmatmul.mubr.f32.gmra.mrb[0].mxu0 %v230
  %v705 = vpop.f32.mrb[0].mxu0
  %v706 = vadd.f32 %v561, %v705
  %v707 = vpop.f32.mrb[0].mxu0
  %708 = vmatprep.mubr.f32.mxu0 %v247
  %709 = vmatmul.mubr.f32.gmra.mrb[0].mxu0 %v231
  %v710 = vpop.f32.mrb[0].mxu0
  %v711 = vadd.f32 %v566, %v710
  %v712 = vpop.f32.mrb[0].mxu0
  %713 = vmatprep.mubr.f32.mxu0 %v248
  %714 = vmatmul.mubr.f32.gmra.mrb[0].mxu0 %v232
  %v715 = vpop.f32.mrb[0].mxu0
  %v716 = vadd.f32 %v571, %v715
  %v717 = vpop.f32.mrb[0].mxu0
  %718 = vmatprep.mubr.f32.mxu0 %v249
  %719 = vmatmul.mubr.f32.gmra.mrb[0].mxu0 %v233
  %v720 = vpop.f32.mrb[0].mxu0
  %v721 = vadd.f32 %v576, %v720
  %v722 = vpop.f32.mrb[0].mxu0
  %723 = vmatprep.mubr.f32.mxu0 %v250
  %724 = vmatmul.mubr.f32.gmra.mrb[0].mxu0 %v234
  %v725 = vpop.f32.mrb[0].mxu0
  %v726 = vadd.f32 %v581, %v725
  %v727 = vpop.f32.mrb[0].mxu0
  %728 = vmatprep.mubr.f32.mxu0 %v251
  %729 = vmatmul.mubr.f32.gmra.mrb[0].mxu0 %v235
  %v730 = vpop.f32.mrb[0].mxu0
  %v731 = vadd.f32 %v586, %v730
  %v732 = vpop.f32.mrb[0].mxu0
  %733 = vmatprep.mubr.f32.mxu0 %v252
  %734 = vmatmul.mubr.f32.gmra.mrb[0].mxu0 %v236
  %v735 = vpop.f32.mrb[0].mxu0
  %v736 = vadd.f32 %v591, %v735
  %v737 = vpop.f32.mrb[0].mxu0
  %738 = vmatprep.mubr.f32.mxu0 %v253
  %739 = vmatmul.mubr.f32.gmra.mrb[0].mxu0 %v237
  %v740 = vpop.f32.mrb[0].mxu0
  %v741 = vadd.f32 %v596, %v740
  %v742 = vpop.f32.mrb[0].mxu0
  %743 = vmatprep.mubr.f32.mxu0 %v254
  %744 = vmatmul.mubr.f32.gmra.mrb[0].mxu0 %v238
  %v745 = vpop.f32.mrb[0].mxu0
  %v746 = vadd.f32 %v601, %v745
  %v747 = vpop.f32.mrb[0].mxu0
  %748 = vmatprep.mubr.f32.mxu0 %v255
  %749 = vmatmul.mubr.f32.gmra.mrb[0].mxu0 %v239
  %v750 = vpop.f32.mrb[0].mxu0
  %v751 = vadd.f32 %v606, %v750
  %v752 = vpop.f32.mrb[0].mxu0
  %753 = vmatprep.mubr.f32.mxu0 %v256
  %754 = vmatmul.mubr.f32.gmra.mrb[0].mxu0 %v240
  %v755 = vpop.f32.mrb[0].mxu0
  %v756 = vadd.f32 %v611, %v755
  %v757 = vpop.f32.mrb[0].mxu0
  %758 = vmatprep.mubr.f32.mxu0 %v257
  %759 = vmatmul.mubr.f32.gmra.mrb[0].mxu0 %v241
  %v760 = vpop.f32.mrb[0].mxu0
  %v761 = vadd.f32 %v616, %v760
  %v762 = vpop.f32.mrb[0].mxu0
  %763 = vmatprep.mubr.f32.mxu0 %v258
  %764 = vmatmul.mubr.f32.gmra.mrb[0].mxu0 %v242
  %v765 = vpop.f32.mrb[0].mxu0
  %v766 = vadd.f32 %v621, %v765
  %v767 = vpop.f32.mrb[0].mxu0
  %768 = vmatprep.mubr.f32.mxu0 %v259
  %769 = vmatmul.mubr.f32.gmra.mrb[0].mxu0 %v243
  %v770 = vpop.f32.mrb[0].mxu0
  %v771 = vadd.f32 %v626, %v770
  %v772 = vpop.f32.mrb[0].mxu0
  %773 = vmatprep.mubr.f32.mxu0 %v260
  %774 = vmatmul.mubr.f32.gmra.mrb[0].mxu0 %v244
  %v775 = vpop.f32.mrb[0].mxu0
  %v776 = vadd.f32 %v631, %v775
  %v777 = vpop.f32.mrb[0].mxu0
  %778 = vmatprep.mubr.f32.mxu0 %v261
  %779 = vmatmul.mubr.f32.gmra.mrb[0].mxu0 %v245
  %v780 = vpop.f32.mrb[0].mxu0
  %v781 = vadd.f32 %v636, %v780
  %v782 = vpop.f32.mrb[0].mxu0
  %783 = vdwg.mxu0
  %784 = vmatprep.subr.mxu0 0.0
  %785 = vmatpush1.msra.mxu0 %v407
  %786 = vmatprep.subr.mxu0 0.0
  %787 = vmatpush1.msra.mxu0 %v408
  %788 = vmatprep.subr.mxu0 0.0
  %789 = vmatpush1.msra.mxu0 %v409
  %790 = vmatprep.subr.mxu0 0.0
  %791 = vmatpush1.msra.mxu0 %v410
  %792 = vmatprep.subr.mxu0 0.0
  %793 = vmatpush1.msra.mxu0 %v411
  %794 = vmatprep.subr.mxu0 0.0
  %795 = vmatpush1.msra.mxu0 %v412
  %796 = vmatprep.subr.mxu0 0.0
  %797 = vmatpush1.msra.mxu0 %v413
  %798 = vmatprep.subr.mxu0 0.0
  %799 = vmatpush1.msra.mxu0 %v414
  %800 = vmatprep.subr.mxu0 0.0
  %801 = vmatpush1.msra.mxu0 %v415
  %802 = vmatprep.subr.mxu0 0.0
  %803 = vmatpush1.msra.mxu0 %v416
  %804 = vmatprep.subr.mxu0 0.0
  %805 = vmatpush1.msra.mxu0 %v417
  %806 = vmatprep.subr.mxu0 0.0
  %807 = vmatpush1.msra.mxu0 %v418
  %808 = vmatprep.subr.mxu0 0.0
  %809 = vmatpush1.msra.mxu0 %v419
  %810 = vmatprep.subr.mxu0 0.0
  %811 = vmatpush1.msra.mxu0 %v420
  %812 = vmatprep.subr.mxu0 0.0
  %813 = vmatpush1.msra.mxu0 %v421
  %814 = vmatprep.subr.mxu0 0.0
  %815 = vmatpush1.msra.mxu0 %v422
  %816 = vmatprep.subr.mxu0 0.0
  %817 = vmatpush1.msra.mxu0 %v423
  %818 = vmatprep.subr.mxu0 0.0
  %819 = vmatpush1.msra.mxu0 %v424
  %820 = vmatprep.subr.mxu0 0.0
  %821 = vmatpush1.msra.mxu0 %v425
  %822 = vmatprep.subr.mxu0 0.0
  %823 = vmatpush1.msra.mxu0 %v426
  %824 = vmatprep.subr.mxu0 0.0
  %825 = vmatpush1.msra.mxu0 %v427
  %826 = vmatprep.subr.mxu0 0.0
  %827 = vmatpush1.msra.mxu0 %v428
  %828 = vmatprep.subr.mxu0 0.0
  %829 = vmatpush1.msra.mxu0 %v429
  %830 = vmatprep.subr.mxu0 0.0
  %831 = vmatpush1.msra.mxu0 %v430
  %832 = vmatprep.subr.mxu0 0.0
  %833 = vmatpush1.msra.mxu0 %v431
  %834 = vmatprep.subr.mxu0 0.0
  %835 = vmatpush1.msra.mxu0 %v432
  %836 = vmatprep.subr.mxu0 0.0
  %837 = vmatpush1.msra.mxu0 %v433
  %838 = vmatprep.subr.mxu0 0.0
  %839 = vmatpush1.msra.mxu0 %v434
  %840 = vmatprep.subr.mxu0 0.0
  %841 = vmatpush1.msra.mxu0 %v435
  %842 = vmatprep.subr.mxu0 0.0
  %843 = vmatpush1.msra.mxu0 %v436
  %844 = vmatprep.subr.mxu0 0.0
  %845 = vmatpush1.msra.mxu0 %v437
  %846 = vmatprep.subr.mxu0 0.0
  %847 = vmatpush1.msra.mxu0 %v438
  %848 = vmatprep.mubr.f32.mxu0 %v278
  %849 = vmatmul.mubr.f32.gmra.mrb[0].mxu0 %v262
  %v850 = vpop.f32.mrb[0].mxu0
  %v851 = vadd.f32 %v706, %v850
  %v852 = vpop.f32.mrb[0].mxu0
  %853 = vmatprep.mubr.f32.mxu0 %v279
  %854 = vmatmul.mubr.f32.gmra.mrb[0].mxu0 %v263
  %v855 = vpop.f32.mrb[0].mxu0
  %v856 = vadd.f32 %v711, %v855
  %v857 = vpop.f32.mrb[0].mxu0
  %858 = vmatprep.mubr.f32.mxu0 %v280
  %859 = vmatmul.mubr.f32.gmra.mrb[0].mxu0 %v264
  %v860 = vpop.f32.mrb[0].mxu0
  %v861 = vadd.f32 %v716, %v860
  %v862 = vpop.f32.mrb[0].mxu0
  %863 = vmatprep.mubr.f32.mxu0 %v281
  %864 = vmatmul.mubr.f32.gmra.mrb[0].mxu0 %v265
  %v865 = vpop.f32.mrb[0].mxu0
  %v866 = vadd.f32 %v721, %v865
  %v867 = vpop.f32.mrb[0].mxu0
  %868 = vmatprep.mubr.f32.mxu0 %v282
  %869 = vmatmul.mubr.f32.gmra.mrb[0].mxu0 %v266
  %v870 = vpop.f32.mrb[0].mxu0
  %v871 = vadd.f32 %v726, %v870
  %v872 = vpop.f32.mrb[0].mxu0
  %873 = vmatprep.mubr.f32.mxu0 %v283
  %874 = vmatmul.mubr.f32.gmra.mrb[0].mxu0 %v267
  %v875 = vpop.f32.mrb[0].mxu0
  %v876 = vadd.f32 %v731, %v875
  %v877 = vpop.f32.mrb[0].mxu0
  %878 = vmatprep.mubr.f32.mxu0 %v284
  %879 = vmatmul.mubr.f32.gmra.mrb[0].mxu0 %v268
  %v880 = vpop.f32.mrb[0].mxu0
  %v881 = vadd.f32 %v736, %v880
  %v882 = vpop.f32.mrb[0].mxu0
  %883 = vmatprep.mubr.f32.mxu0 %v285
  %884 = vmatmul.mubr.f32.gmra.mrb[0].mxu0 %v269
  %v885 = vpop.f32.mrb[0].mxu0
  %v886 = vadd.f32 %v741, %v885
  %v887 = vpop.f32.mrb[0].mxu0
  %888 = vmatprep.mubr.f32.mxu0 %v286
  %889 = vmatmul.mubr.f32.gmra.mrb[0].mxu0 %v270
  %v890 = vpop.f32.mrb[0].mxu0
  %v891 = vadd.f32 %v746, %v890
  %v892 = vpop.f32.mrb[0].mxu0
  %893 = vmatprep.mubr.f32.mxu0 %v287
  %894 = vmatmul.mubr.f32.gmra.mrb[0].mxu0 %v271
  %v895 = vpop.f32.mrb[0].mxu0
  %v896 = vadd.f32 %v751, %v895
  %v897 = vpop.f32.mrb[0].mxu0
  %898 = vmatprep.mubr.f32.mxu0 %v288
  %899 = vmatmul.mubr.f32.gmra.mrb[0].mxu0 %v272
  %v900 = vpop.f32.mrb[0].mxu0
  %v901 = vadd.f32 %v756, %v900
  %v902 = vpop.f32.mrb[0].mxu0
  %903 = vmatprep.mubr.f32.mxu0 %v289
  %904 = vmatmul.mubr.f32.gmra.mrb[0].mxu0 %v273
  %v905 = vpop.f32.mrb[0].mxu0
  %v906 = vadd.f32 %v761, %v905
  %v907 = vpop.f32.mrb[0].mxu0
  %908 = vmatprep.mubr.f32.mxu0 %v290
  %909 = vmatmul.mubr.f32.gmra.mrb[0].mxu0 %v274
  %v910 = vpop.f32.mrb[0].mxu0
  %v911 = vadd.f32 %v766, %v910
  %v912 = vpop.f32.mrb[0].mxu0
  %913 = vmatprep.mubr.f32.mxu0 %v291
  %914 = vmatmul.mubr.f32.gmra.mrb[0].mxu0 %v275
  %v915 = vpop.f32.mrb[0].mxu0
  %v916 = vadd.f32 %v771, %v915
  %v917 = vpop.f32.mrb[0].mxu0
  %918 = vmatprep.mubr.f32.mxu0 %v292
  %919 = vmatmul.mubr.f32.gmra.mrb[0].mxu0 %v276
  %v920 = vpop.f32.mrb[0].mxu0
  %v921 = vadd.f32 %v776, %v920
  %v922 = vpop.f32.mrb[0].mxu0
  %923 = vmatprep.mubr.f32.mxu0 %v293
  %924 = vmatmul.mubr.f32.gmra.mrb[0].mxu0 %v277
  %v925 = vpop.f32.mrb[0].mxu0
  %v926 = vadd.f32 %v781, %v925
  %v927 = vpop.f32.mrb[0].mxu0
  %928 = vdwg.mxu0
  %929 = vmatprep.subr.mxu0 0.0
  %930 = vmatpush1.msra.mxu0 %v439
  %931 = vmatprep.subr.mxu0 0.0
  %932 = vmatpush1.msra.mxu0 %v440
  %933 = vmatprep.subr.mxu0 0.0
  %934 = vmatpush1.msra.mxu0 %v441
  %935 = vmatprep.subr.mxu0 0.0
  %936 = vmatpush1.msra.mxu0 %v442
  %937 = vmatprep.subr.mxu0 0.0
  %938 = vmatpush1.msra.mxu0 %v443
  %939 = vmatprep.subr.mxu0 0.0
  %940 = vmatpush1.msra.mxu0 %v444
  %941 = vmatprep.subr.mxu0 0.0
  %942 = vmatpush1.msra.mxu0 %v445
  %943 = vmatprep.subr.mxu0 0.0
  %944 = vmatpush1.msra.mxu0 %v446
  %945 = vmatprep.subr.mxu0 0.0
  %946 = vmatpush1.msra.mxu0 %v447
  %947 = vmatprep.subr.mxu0 0.0
  %948 = vmatpush1.msra.mxu0 %v448
  %949 = vmatprep.subr.mxu0 0.0
  %950 = vmatpush1.msra.mxu0 %v449
  %951 = vmatprep.subr.mxu0 0.0
  %952 = vmatpush1.msra.mxu0 %v450
  %953 = vmatprep.subr.mxu0 0.0
  %954 = vmatpush1.msra.mxu0 %v451
  %955 = vmatprep.subr.mxu0 0.0
  %956 = vmatpush1.msra.mxu0 %v452
  %957 = vmatprep.subr.mxu0 0.0
  %958 = vmatpush1.msra.mxu0 %v453
  %959 = vmatprep.subr.mxu0 0.0
  %960 = vmatpush1.msra.mxu0 %v454
  %961 = vmatprep.subr.mxu0 0.0
  %962 = vmatpush1.msra.mxu0 %v455
  %963 = vmatprep.subr.mxu0 0.0
  %964 = vmatpush1.msra.mxu0 %v456
  %965 = vmatprep.subr.mxu0 0.0
  %966 = vmatpush1.msra.mxu0 %v457
  %967 = vmatprep.subr.mxu0 0.0
  %968 = vmatpush1.msra.mxu0 %v458
  %969 = vmatprep.subr.mxu0 0.0
  %970 = vmatpush1.msra.mxu0 %v459
  %971 = vmatprep.subr.mxu0 0.0
  %972 = vmatpush1.msra.mxu0 %v460
  %973 = vmatprep.subr.mxu0 0.0
  %974 = vmatpush1.msra.mxu0 %v461
  %975 = vmatprep.subr.mxu0 0.0
  %976 = vmatpush1.msra.mxu0 %v462
  %977 = vmatprep.subr.mxu0 0.0
  %978 = vmatpush1.msra.mxu0 %v463
  %979 = vmatprep.subr.mxu0 0.0
  %980 = vmatpush1.msra.mxu0 %v464
  %981 = vmatprep.subr.mxu0 0.0
  %982 = vmatpush1.msra.mxu0 %v465
  %983 = vmatprep.subr.mxu0 0.0
  %984 = vmatpush1.msra.mxu0 %v466
  %985 = vmatprep.subr.mxu0 0.0
  %986 = vmatpush1.msra.mxu0 %v467
  %987 = vmatprep.subr.mxu0 0.0
  %988 = vmatpush1.msra.mxu0 %v468
  %989 = vmatprep.subr.mxu0 0.0
  %990 = vmatpush1.msra.mxu0 %v469
  %991 = vmatprep.subr.mxu0 0.0
  %992 = vmatpush1.msra.mxu0 %v470
  %993 = vmatprep.mubr.f32.mxu0 %v311
  %994 = vmatmul.mubr.f32.gmra.mrb[0].mxu0 %v295
  %v995 = vpop.f32.mrb[0].mxu0
  %v996 = vadd.f32 %v851, %v995
  %v997 = vpop.f32.mrb[0].mxu0
  %998 = vmatprep.mubr.f32.mxu0 %v312
  %999 = vmatmul.mubr.f32.gmra.mrb[0].mxu0 %v296
  %v1000 = vpop.f32.mrb[0].mxu0
  %v1001 = vadd.f32 %v856, %v1000
  %v1002 = vpop.f32.mrb[0].mxu0
  %1003 = vmatprep.mubr.f32.mxu0 %v313
  %1004 = vmatmul.mubr.f32.gmra.mrb[0].mxu0 %v297
  %v1005 = vpop.f32.mrb[0].mxu0
  %v1006 = vadd.f32 %v861, %v1005
  %v1007 = vpop.f32.mrb[0].mxu0
  %1008 = vmatprep.mubr.f32.mxu0 %v314
  %1009 = vmatmul.mubr.f32.gmra.mrb[0].mxu0 %v298
  %v1010 = vpop.f32.mrb[0].mxu0
  %v1011 = vadd.f32 %v866, %v1010
  %v1012 = vpop.f32.mrb[0].mxu0
  %1013 = vmatprep.mubr.f32.mxu0 %v315
  %1014 = vmatmul.mubr.f32.gmra.mrb[0].mxu0 %v299
  %v1015 = vpop.f32.mrb[0].mxu0
  %v1016 = vadd.f32 %v871, %v1015
  %v1017 = vpop.f32.mrb[0].mxu0
  %1018 = vmatprep.mubr.f32.mxu0 %v316
  %1019 = vmatmul.mubr.f32.gmra.mrb[0].mxu0 %v300
  %v1020 = vpop.f32.mrb[0].mxu0
  %v1021 = vadd.f32 %v876, %v1020
  %v1022 = vpop.f32.mrb[0].mxu0
  %1023 = vmatprep.mubr.f32.mxu0 %v317
  %1024 = vmatmul.mubr.f32.gmra.mrb[0].mxu0 %v301
  %v1025 = vpop.f32.mrb[0].mxu0
  %v1026 = vadd.f32 %v881, %v1025
  %v1027 = vpop.f32.mrb[0].mxu0
  %1028 = vmatprep.mubr.f32.mxu0 %v318
  %1029 = vmatmul.mubr.f32.gmra.mrb[0].mxu0 %v302
  %v1030 = vpop.f32.mrb[0].mxu0
  %v1031 = vadd.f32 %v886, %v1030
  %v1032 = vpop.f32.mrb[0].mxu0
  %1033 = vmatprep.mubr.f32.mxu0 %v319
  %1034 = vmatmul.mubr.f32.gmra.mrb[0].mxu0 %v303
  %v1035 = vpop.f32.mrb[0].mxu0
  %v1036 = vadd.f32 %v891, %v1035
  %v1037 = vpop.f32.mrb[0].mxu0
  %1038 = vmatprep.mubr.f32.mxu0 %v320
  %1039 = vmatmul.mubr.f32.gmra.mrb[0].mxu0 %v304
  %v1040 = vpop.f32.mrb[0].mxu0
  %v1041 = vadd.f32 %v896, %v1040
  %v1042 = vpop.f32.mrb[0].mxu0
  %1043 = vmatprep.mubr.f32.mxu0 %v321
  %1044 = vmatmul.mubr.f32.gmra.mrb[0].mxu0 %v305
  %v1045 = vpop.f32.mrb[0].mxu0
  %v1046 = vadd.f32 %v901, %v1045
  %v1047 = vpop.f32.mrb[0].mxu0
  %1048 = vmatprep.mubr.f32.mxu0 %v322
  %1049 = vmatmul.mubr.f32.gmra.mrb[0].mxu0 %v306
  %v1050 = vpop.f32.mrb[0].mxu0
  %v1051 = vadd.f32 %v906, %v1050
  %v1052 = vpop.f32.mrb[0].mxu0
  %1053 = vmatprep.mubr.f32.mxu0 %v323
  %1054 = vmatmul.mubr.f32.gmra.mrb[0].mxu0 %v307
  %v1055 = vpop.f32.mrb[0].mxu0
  %v1056 = vadd.f32 %v911, %v1055
  %v1057 = vpop.f32.mrb[0].mxu0
  %1058 = vmatprep.mubr.f32.mxu0 %v324
  %1059 = vmatmul.mubr.f32.gmra.mrb[0].mxu0 %v308
  %v1060 = vpop.f32.mrb[0].mxu0
  %v1061 = vadd.f32 %v916, %v1060
  %v1062 = vpop.f32.mrb[0].mxu0
  %1063 = vmatprep.mubr.f32.mxu0 %v325
  %1064 = vmatmul.mubr.f32.gmra.mrb[0].mxu0 %v309
  %v1065 = vpop.f32.mrb[0].mxu0
  %v1066 = vadd.f32 %v921, %v1065
  %v1067 = vpop.f32.mrb[0].mxu0
  %1068 = vmatprep.mubr.f32.mxu0 %v326
  %1069 = vmatmul.mubr.f32.gmra.mrb[0].mxu0 %v310
  %v1070 = vpop.f32.mrb[0].mxu0
  %v1071 = vadd.f32 %v926, %v1070
  %v1072 = vpop.f32.mrb[0].mxu0
  %1073 = vdwg.mxu0
  %1074 = vmatprep.subr.mxu0 0.0
  %1075 = vmatpush1.msra.mxu0 %v471
  %1076 = vmatprep.subr.mxu0 0.0
  %1077 = vmatpush1.msra.mxu0 %v472
  %1078 = vmatprep.subr.mxu0 0.0
  %1079 = vmatpush1.msra.mxu0 %v473
  %1080 = vmatprep.subr.mxu0 0.0
  %1081 = vmatpush1.msra.mxu0 %v474
  %1082 = vmatprep.subr.mxu0 0.0
  %1083 = vmatpush1.msra.mxu0 %v475
  %1084 = vmatprep.subr.mxu0 0.0
  %1085 = vmatpush1.msra.mxu0 %v476
  %1086 = vmatprep.subr.mxu0 0.0
  %1087 = vmatpush1.msra.mxu0 %v477
  %1088 = vmatprep.subr.mxu0 0.0
  %1089 = vmatpush1.msra.mxu0 %v478
  %1090 = vmatprep.subr.mxu0 0.0
  %1091 = vmatpush1.msra.mxu0 %v479
  %1092 = vmatprep.subr.mxu0 0.0
  %1093 = vmatpush1.msra.mxu0 %v480
  %1094 = vmatprep.subr.mxu0 0.0
  %1095 = vmatpush1.msra.mxu0 %v481
  %1096 = vmatprep.subr.mxu0 0.0
  %1097 = vmatpush1.msra.mxu0 %v482
  %1098 = vmatprep.subr.mxu0 0.0
  %1099 = vmatpush1.msra.mxu0 %v483
  %1100 = vmatprep.subr.mxu0 0.0
  %1101 = vmatpush1.msra.mxu0 %v484
  %1102 = vmatprep.subr.mxu0 0.0
  %1103 = vmatpush1.msra.mxu0 %v485
  %1104 = vmatprep.subr.mxu0 0.0
  %1105 = vmatpush1.msra.mxu0 %v486
  %1106 = vmatprep.subr.mxu0 0.0
  %1107 = vmatpush1.msra.mxu0 0.0
  %1108 = vmatprep.subr.mxu0 0.0
  %1109 = vmatpush1.msra.mxu0 0.0
  %1110 = vmatprep.subr.mxu0 0.0
  %1111 = vmatpush1.msra.mxu0 0.0
  %1112 = vmatprep.subr.mxu0 0.0
  %1113 = vmatpush1.msra.mxu0 0.0
  %1114 = vmatprep.subr.mxu0 0.0
  %1115 = vmatpush1.msra.mxu0 0.0
  %1116 = vmatprep.subr.mxu0 0.0
  %1117 = vmatpush1.msra.mxu0 0.0
  %1118 = vmatprep.subr.mxu0 0.0
  %1119 = vmatpush1.msra.mxu0 0.0
  %1120 = vmatprep.subr.mxu0 0.0
  %1121 = vmatpush1.msra.mxu0 0.0
  %1122 = vmatprep.subr.mxu0 0.0
  %1123 = vmatpush1.msra.mxu0 0.0
  %1124 = vmatprep.subr.mxu0 0.0
  %1125 = vmatpush1.msra.mxu0 0.0
  %1126 = vmatprep.subr.mxu0 0.0
  %1127 = vmatpush1.msra.mxu0 0.0
  %1128 = vmatprep.subr.mxu0 0.0
  %1129 = vmatpush1.msra.mxu0 0.0
  %1130 = vmatprep.subr.mxu0 0.0
  %1131 = vmatpush1.msra.mxu0 0.0
  %1132 = vmatprep.subr.mxu0 0.0
  %1133 = vmatpush1.msra.mxu0 0.0
  %1134 = vmatprep.subr.mxu0 0.0
  %1135 = vmatpush1.msra.mxu0 0.0
  %1136 = vmatprep.subr.mxu0 0.0
  %1137 = vmatpush1.msra.mxu0 0.0
  %1138 = vmatprep.mubr.f32.mxu0 0.0
  %1139 = vmatmul.mubr.f32.gmra.mrb[0].mxu0 %v327
  %v1140 = vpop.f32.mrb[0].mxu0
  %v1141 = vadd.f32 %v996, %v1140
  %v1142 = vpop.f32.mrb[0].mxu0
  %1143 = vmatprep.mubr.f32.mxu0 0.0
  %1144 = vmatmul.mubr.f32.gmra.mrb[0].mxu0 %v328
  %v1145 = vpop.f32.mrb[0].mxu0
  %v1146 = vadd.f32 %v1001, %v1145
  %v1147 = vpop.f32.mrb[0].mxu0
  %1148 = vmatprep.mubr.f32.mxu0 0.0
  %1149 = vmatmul.mubr.f32.gmra.mrb[0].mxu0 %v329
  %v1150 = vpop.f32.mrb[0].mxu0
  %v1151 = vadd.f32 %v1006, %v1150
  %v1152 = vpop.f32.mrb[0].mxu0
  %1153 = vmatprep.mubr.f32.mxu0 0.0
  %1154 = vmatmul.mubr.f32.gmra.mrb[0].mxu0 %v330
  %v1155 = vpop.f32.mrb[0].mxu0
  %v1156 = vadd.f32 %v1011, %v1155
  %v1157 = vpop.f32.mrb[0].mxu0
  %1158 = vmatprep.mubr.f32.mxu0 0.0
  %1159 = vmatmul.mubr.f32.gmra.mrb[0].mxu0 %v331
  %v1160 = vpop.f32.mrb[0].mxu0
  %v1161 = vadd.f32 %v1016, %v1160
  %v1162 = vpop.f32.mrb[0].mxu0
  %1163 = vmatprep.mubr.f32.mxu0 0.0
  %1164 = vmatmul.mubr.f32.gmra.mrb[0].mxu0 %v332
  %v1165 = vpop.f32.mrb[0].mxu0
  %v1166 = vadd.f32 %v1021, %v1165
  %v1167 = vpop.f32.mrb[0].mxu0
  %1168 = vmatprep.mubr.f32.mxu0 0.0
  %1169 = vmatmul.mubr.f32.gmra.mrb[0].mxu0 %v333
  %v1170 = vpop.f32.mrb[0].mxu0
  %v1171 = vadd.f32 %v1026, %v1170
  %v1172 = vpop.f32.mrb[0].mxu0
  %1173 = vmatprep.mubr.f32.mxu0 0.0
  %1174 = vmatmul.mubr.f32.gmra.mrb[0].mxu0 %v334
  %v1175 = vpop.f32.mrb[0].mxu0
  %v1176 = vadd.f32 %v1031, %v1175
  %v1177 = vpop.f32.mrb[0].mxu0
  %1178 = vmatprep.mubr.f32.mxu0 0.0
  %1179 = vmatmul.mubr.f32.gmra.mrb[0].mxu0 %v335
  %v1180 = vpop.f32.mrb[0].mxu0
  %v1181 = vadd.f32 %v1036, %v1180
  %v1182 = vpop.f32.mrb[0].mxu0
  %1183 = vmatprep.mubr.f32.mxu0 0.0
  %1184 = vmatmul.mubr.f32.gmra.mrb[0].mxu0 %v336
  %v1185 = vpop.f32.mrb[0].mxu0
  %v1186 = vadd.f32 %v1041, %v1185
  %v1187 = vpop.f32.mrb[0].mxu0
  %1188 = vmatprep.mubr.f32.mxu0 0.0
  %1189 = vmatmul.mubr.f32.gmra.mrb[0].mxu0 %v337
  %v1190 = vpop.f32.mrb[0].mxu0
  %v1191 = vadd.f32 %v1046, %v1190
  %v1192 = vpop.f32.mrb[0].mxu0
  %1193 = vmatprep.mubr.f32.mxu0 0.0
  %1194 = vmatmul.mubr.f32.gmra.mrb[0].mxu0 %v338
  %v1195 = vpop.f32.mrb[0].mxu0
  %v1196 = vadd.f32 %v1051, %v1195
  %v1197 = vpop.f32.mrb[0].mxu0
  %1198 = vmatprep.mubr.f32.mxu0 0.0
  %1199 = vmatmul.mubr.f32.gmra.mrb[0].mxu0 %v339
  %v1200 = vpop.f32.mrb[0].mxu0
  %v1201 = vadd.f32 %v1056, %v1200
  %v1202 = vpop.f32.mrb[0].mxu0
  %1203 = vmatprep.mubr.f32.mxu0 0.0
  %1204 = vmatmul.mubr.f32.gmra.mrb[0].mxu0 %v340
  %v1205 = vpop.f32.mrb[0].mxu0
  %v1206 = vadd.f32 %v1061, %v1205
  %v1207 = vpop.f32.mrb[0].mxu0
  %1208 = vmatprep.mubr.f32.mxu0 0.0
  %1209 = vmatmul.mubr.f32.gmra.mrb[0].mxu0 %v341
  %v1210 = vpop.f32.mrb[0].mxu0
  %v1211 = vadd.f32 %v1066, %v1210
  %v1212 = vpop.f32.mrb[0].mxu0
  %1213 = vmatprep.mubr.f32.mxu0 0.0
  %1214 = vmatmul.mubr.f32.gmra.mrb[0].mxu0 %v342
  %v1215 = vpop.f32.mrb[0].mxu0
  %v1216 = vadd.f32 %v1071, %v1215
  %v1217 = vpop.f32.mrb[0].mxu0
  %1218 = vdwg.mxu0
  %v1219 = vadd.f32 %v1141, %v1146
  %v1220 = vadd.f32 %v1219, %v1151
  %v1221 = vadd.f32 %v1220, %v1156
  %v1222 = vadd.f32 %v1221, %v1161
  %v1223 = vadd.f32 %v1222, %v1166
  %v1224 = vadd.f32 %v1223, %v1171
  %v1225 = vadd.f32 %v1224, %v1176
  %v1226 = vadd.f32 %v1225, %v1181
  %v1227 = vadd.f32 %v1226, %v1186
  %v1228 = vadd.f32 %v1227, %v1191
  %v1229 = vadd.f32 %v1228, %v1196
  %v1230 = vadd.f32 %v1229, %v1201
  %v1231 = vadd.f32 %v1230, %v1206
  %v1232 = vadd.f32 %v1231, %v1211
  %v1233 = vadd.f32 %v1232, %v1216
  %v1234 = vrot.slane %v1233, 4
  %v1235 = vadd.f32 %v1233, %v1234
  %v1236 = vrot.slane %v1235, 2
  %v1237 = vadd.f32 %v1235, %v1236
  %v1238 = vrot.slane %v1237, 1
  %v1239 = vadd.f32 %v1237, %v1238
  %v1240 = vmul.f32 %v1141, %v1141
  %v1241 = vmul.f32 %v1146, %v1146
  %v1242 = vmul.f32 %v1151, %v1151
  %v1243 = vmul.f32 %v1156, %v1156
  %v1244 = vmul.f32 %v1161, %v1161
  %v1245 = vmul.f32 %v1166, %v1166
  %v1246 = vmul.f32 %v1171, %v1171
  %v1247 = vmul.f32 %v1176, %v1176
  %v1248 = vmul.f32 %v1181, %v1181
  %v1249 = vmul.f32 %v1186, %v1186
  %v1250 = vmul.f32 %v1191, %v1191
  %v1251 = vmul.f32 %v1196, %v1196
  %v1252 = vmul.f32 %v1201, %v1201
  %v1253 = vmul.f32 %v1206, %v1206
  %v1254 = vmul.f32 %v1211, %v1211
  %v1255 = vmul.f32 %v1216, %v1216
  %v1256 = vadd.f32 %v1240, %v1241
  %v1257 = vadd.f32 %v1256, %v1242
  %v1258 = vadd.f32 %v1257, %v1243
  %v1259 = vadd.f32 %v1258, %v1244
  %v1260 = vadd.f32 %v1259, %v1245
  %v1261 = vadd.f32 %v1260, %v1246
  %v1262 = vadd.f32 %v1261, %v1247
  %v1263 = vadd.f32 %v1262, %v1248
  %v1264 = vadd.f32 %v1263, %v1249
  %v1265 = vadd.f32 %v1264, %v1250
  %v1266 = vadd.f32 %v1265, %v1251
  %v1267 = vadd.f32 %v1266, %v1252
  %v1268 = vadd.f32 %v1267, %v1253
  %v1269 = vadd.f32 %v1268, %v1254
  %v1270 = vadd.f32 %v1269, %v1255
  %v1271 = vrot.slane %v1270, 4
  %v1272 = vadd.f32 %v1270, %v1271
  %v1273 = vrot.slane %v1272, 2
  %v1274 = vadd.f32 %v1272, %v1273
  %v1275 = vrot.slane %v1274, 1
  %v1276 = vadd.f32 %v1274, %v1275
  %vm1277 = vcmask 1040384
  %v1278 = vsel %vm1277, %v1239, %v1276
  %1279 = vst [vmem:[%s4] sm:$0x3] %v1278
  %1280 = vst [vmem:[%s3] sm:$0xff] %v1141
  %1281 = vst [vmem:[%s3 + $0x8] sm:$0xff] %v1146
  %1282 = vst [vmem:[%s3 + $0x10] sm:$0xff] %v1151
  %1283 = vst [vmem:[%s3 + $0x18] sm:$0xff] %v1156
  %1284 = vst [vmem:[%s3 + $0x20] sm:$0xff] %v1161
  %1285 = vst [vmem:[%s3 + $0x28] sm:$0xff] %v1166
  %1286 = vst [vmem:[%s3 + $0x30] sm:$0xff] %v1171
  %1287 = vst [vmem:[%s3 + $0x38] sm:$0xff] %v1176
  %1288 = vst [vmem:[%s3 + $0x40] sm:$0xff] %v1181
  %1289 = vst [vmem:[%s3 + $0x48] sm:$0xff] %v1186
  %1290 = vst [vmem:[%s3 + $0x50] sm:$0xff] %v1191
  %1291 = vst [vmem:[%s3 + $0x58] sm:$0xff] %v1196
  %1292 = vst [vmem:[%s3 + $0x60] sm:$0xff] %v1201
  %1293 = vst [vmem:[%s3 + $0x68] sm:$0xff] %v1206
  %1294 = vst [vmem:[%s3 + $0x70] sm:$0xff] %v1211
  %1295 = vst [vmem:[%s3 + $0x78] sm:$0xff] %v1216
  // Predicated region
  $region18: #{down_forward.2} parent=0 // pred_check
    _
  $region19: #{down_forward.2} parent=0 // pred_check_branch
    %1297 = sbr.rel (0) target = $region21
  $region20: #{down_forward.2} parent=0 // pred_region
    _
  $region21: #{down_forward.2} parent=0 // pred_fallthru
    _
  // Predicated region
  $region22: #{down_forward.2} parent=0 // pred_check
    _
  $region23: #{down_forward.2} parent=0 // pred_check_branch
    %1299 = sbr.rel (0) target = $region25
  $region24: #{down_forward.2} parent=0 // pred_region
    _
  $region25: #{down_forward.2} parent=0 // pred_fallthru
    _
  // Predicated region
  $region26: #{down_forward.2} parent=0 // pred_check
    _
  $region27: #{down_forward.2} parent=0 // pred_check_branch
    %1301 = sbr.rel (0) target = $region29
  $region28: #{down_forward.2} parent=0 // pred_region
    _
  $region29: #{down_forward.2} parent=0 // pred_fallthru
    _
  // Predicated region
  $region30: #{down_forward.2} parent=0 // pred_check
    _
  $region31: #{down_forward.2} parent=0 // pred_check_branch
    %1303 = sbr.rel (0) target = $region33
  $region32: #{down_forward.2} parent=0 // pred_region
    _
  $region33: #{down_forward.2} parent=0 // pred_fallthru
    _

</llo_original>
